<compile_context>
chip_gen: v7x
topology: tpu7x:2x2x1
jax: 0.10.0
libtpu: 0.0.40
codegen_flags: <defaults>
</compile_context>

<pallas_src>
import functools

import numpy as np
import jax
import jax.numpy as jnp
from jax.experimental import pallas as pl
from jax.experimental.pallas import tpu as pltpu

LANES = 128  # distances packed per output "super-row" (one full lane group)


def _rbf_kernel(limbs_ref, e_ref, centers_ref, out_ref, *, neg_inv_gap):
    # limbs_ref:   (tr, 3*LANES)        bf16  3 exact bf16 limbs per distance
    # e_ref:       (3*LANES, LANES*nb)  bf16  0/1 expansion matrix (resident)
    # centers_ref: (1, LANES*nb)        f32   centers tiled LANES times (resident)
    # out_ref:     (tr, LANES*nb)       f32   lane-dense output block
    #
    # MXU demux: out lane-group c gets distance c, reconstructed exactly from
    # its bf16 limbs with f32 accumulation (3 MXU passes, no VALU select chain).
    d = jnp.dot(limbs_ref[...], e_ref[...], preferred_element_type=jnp.float32)
    diff = d - centers_ref[...]                      # 1 VALU (sublane broadcast)
    out_ref[...] = jnp.exp((diff * diff) * neg_inv_gap)  # 2 VALU + EUP exp


def rbf_expansion(dist, centers, gap, *, target_block_bytes=4 * 1024 * 1024):
    """exp(-(dist[..., None] - centers)**2 / gap); returns dist.shape + (n_bin,)."""
    centers = jnp.asarray(centers, jnp.float32).reshape(-1)
    n_bin = int(centers.shape[0])
    width = LANES * n_bin                      # output row width (mult of 128)

    orig_shape = dist.shape
    flat = dist.reshape(-1).astype(jnp.float32)
    n = int(flat.shape[0])
    rows = -(-n // LANES)                      # packed rows (128 dists per row)
    n_pad = rows * LANES
    if n_pad != n:
        flat = jnp.pad(flat, (0, n_pad - n))   # pad only the tiny input
    d2 = flat.reshape(rows, LANES)

    # Exact 3-limb bf16 decomposition: l0 + l1 + l2 == d bit-exactly, so the
    # bf16 MXU matmul against a 0/1 matrix reproduces the f32 distances.
    l0 = d2.astype(jnp.bfloat16)
    r0 = d2 - l0.astype(jnp.float32)
    l1 = r0.astype(jnp.bfloat16)
    l2 = (r0 - l1.astype(jnp.float32)).astype(jnp.bfloat16)
    limbs = jnp.concatenate([l0, l1, l2], axis=1)            # (rows, 3*LANES)

    # Expansion matrix: E[c, c*n_bin + j] = 1, stacked 3x along K for the limbs.
    # (Sized for modest n_bin; e.g. n_bin=32 -> 3 MiB resident in VMEM.)
    e = np.zeros((LANES, width), np.float32)
    for c in range(LANES):
        e[c, c * n_bin:(c + 1) * n_bin] = 1.0
    e3 = jnp.asarray(np.concatenate([e, e, e], axis=0), jnp.bfloat16)

    centers_tiled = jnp.tile(centers.reshape(1, -1), (1, LANES))      # (1, width)

    # Tile rows: ~4 MiB f32 output block, multiple of 8, and capped so the grid
    # has >= ~4 steps when possible (v7x megacore + pipelining).
    row_bytes = width * 4
    tr_cap = max(8, (target_block_bytes // row_bytes) // 8 * 8)
    if rows <= 8:
        tr = rows                              # tiny input: single full block
    else:
        tr = min(tr_cap, max(8, (rows // 4) // 8 * 8))
    grid = (pl.cdiv(rows, tr),)                # last block masked if partial

    neg_inv_gap = -1.0 / float(gap)            # gap is a static module param
    kernel = functools.partial(_rbf_kernel, neg_inv_gap=neg_inv_gap)

    out = pl.pallas_call(
        kernel,
        out_shape=jax.ShapeDtypeStruct((rows, width), jnp.float32),
        grid=grid,
        in_specs=[
            pl.BlockSpec((tr, 3 * LANES), lambda i: (i, 0)),
            pl.BlockSpec((3 * LANES, width), lambda i: (0, 0)),  # resident
            pl.BlockSpec((1, width), lambda i: (0, 0)),          # resident
        ],
        out_specs=pl.BlockSpec((tr, width), lambda i: (i, 0)),
        compiler_params=pltpu.CompilerParams(
            dimension_semantics=("parallel",),
            vmem_limit_bytes=32 * 1024 * 1024,
        ),
    )(limbs, e3, centers_tiled)

    rbf = out.reshape(n_pad, n_bin)            # free: row-major contiguous
    if n_pad != n:                             # only when n % 128 != 0
        rbf = rbf[:n]
    return rbf.reshape(*orig_shape, n_bin)


def rbf_reference(dist, centers, gap):
    diff = dist[..., None] - jnp.asarray(centers, jnp.float32).reshape(1, -1)
    return jnp.exp(-(diff ** 2) / gap)


if __name__ == "__main__":
    # Module parameters (mirrors __init__): n_bin=32, low=0, high=20
    n_bin, low, high = 32, 0.0, 20.0
    gap = (high - low) / n_bin
    centers = jnp.asarray(np.linspace(low, high, n_bin), dtype=jnp.float32)

    # Small example input: b=2, n_v=8 -> N = b*n_v*n_v = 128 distances
    b, n_v = 2, 8
    N = b * n_v * n_v
    key = jax.random.PRNGKey(0)
    dist = jax.random.uniform(key, (N,), dtype=jnp.float32, minval=0.0, maxval=20.0)

    out = jax.block_until_ready(rbf_expansion(dist, centers, gap))
    ref = rbf_reference(dist, centers, gap)
    np.testing.assert_allclose(np.asarray(out), np.asarray(ref), rtol=1e-5, atol=1e-5)

    # Ragged length (exercises input-only padding + output tail slice)
    dist_ragged = dist[:100]
    out_r = jax.block_until_ready(rbf_expansion(dist_ragged, centers, gap))
    ref_r = rbf_reference(dist_ragged, centers, gap)
    np.testing.assert_allclose(np.asarray(out_r), np.asarray(ref_r), rtol=1e-5, atol=1e-5)

    print("KERNEL_OK")
</pallas_src>

<mosaic_0001>
module attributes {stable_mosaic.version = 11 : i64} {
  func.func @_rbf_kernel(%arg0: i32, %arg1: memref<1x384xbf16, #tpu.memory_space<vmem>>, %arg2: memref<384x4096xbf16, #tpu.memory_space<vmem>>, %arg3: memref<1x4096xf32, #tpu.memory_space<vmem>>, %arg4: memref<1x4096xf32, #tpu.memory_space<vmem>>) attributes {dimension_semantics = [#tpu.dimension_semantics<parallel>], iteration_bounds = array<i64: 1>, scalar_prefetch = 0 : i64, scratch_operands = 0 : i64, tpu.core_type = #tpu.core_type<tc>, window_params = [{transform_indices = @transform_0, window_bounds = array<i64: 1, 384>}, {pipeline_mode = #tpu.pipeline_mode<synchronous>, transform_indices = @transform_1, window_bounds = array<i64: 384, 4096>}, {pipeline_mode = #tpu.pipeline_mode<synchronous>, transform_indices = @transform_2, window_bounds = array<i64: 1, 4096>}, {transform_indices = @transform_3, window_bounds = array<i64: 1, 4096>}]} {
    %c0 = arith.constant 0 : index
    %c0_0 = arith.constant 0 : index
    %0 = vector.load %arg1[%c0, %c0_0] : memref<1x384xbf16, #tpu.memory_space<vmem>>, vector<1x384xbf16>
    %c0_1 = arith.constant 0 : index
    %c0_2 = arith.constant 0 : index
    %1 = vector.load %arg2[%c0_1, %c0_2] : memref<384x4096xbf16, #tpu.memory_space<vmem>>, vector<384x4096xbf16>
    %cst = arith.constant dense<0.000000e+00> : vector<1x4096xf32>
    %2 = tpu.matmul %0, %1, %cst {dimension_numbers = #tpu.dot_dimension_numbers<[1], [0], [0], [1], [0, 0, 1, 1], [], []>} : vector<1x384xbf16>, vector<384x4096xbf16>, vector<1x4096xf32> -> vector<1x4096xf32>
    %c0_3 = arith.constant 0 : index
    %c0_4 = arith.constant 0 : index
    %3 = vector.load %arg3[%c0_3, %c0_4] : memref<1x4096xf32, #tpu.memory_space<vmem>>, vector<1x4096xf32>
    %4 = arith.subf %2, %3 : vector<1x4096xf32>
    %5 = arith.mulf %4, %4 : vector<1x4096xf32>
    %cst_5 = arith.constant -1.600000e+00 : f32
    %6 = vector.broadcast %cst_5 : f32 to vector<1x4096xf32>
    %7 = arith.mulf %5, %6 : vector<1x4096xf32>
    %8 = math.exp %7 : vector<1x4096xf32>
    %c0_6 = arith.constant 0 : index
    %c0_7 = arith.constant 0 : index
    %9 = vector.load %arg4[%c0_6, %c0_7] : memref<1x4096xf32, #tpu.memory_space<vmem>>, vector<1x4096xf32>
    tpu.vector_store %arg4[%c0_6, %c0_7], %8 {strides = array<i32>} : memref<1x4096xf32, #tpu.memory_space<vmem>>, vector<1x4096xf32>,
    return
  }
  func.func @transform_0(%arg0: i32) -> (i32, i32) {
    %c0_i32 = arith.constant 0 : i32
    %c0_i32_0 = arith.constant 0 : i32
    return %arg0, %c0_i32 : i32, i32
  }
  func.func @transform_1(%arg0: i32) -> (i32, i32) {
    %c0_i32 = arith.constant 0 : i32
    %c0_i32_0 = arith.constant 0 : i32
    %c0_i32_1 = arith.constant 0 : i32
    return %c0_i32, %c0_i32_0 : i32, i32
  }
  func.func @transform_2(%arg0: i32) -> (i32, i32) {
    %c0_i32 = arith.constant 0 : i32
    %c0_i32_0 = arith.constant 0 : i32
    %c0_i32_1 = arith.constant 0 : i32
    return %c0_i32, %c0_i32_0 : i32, i32
  }
  func.func @transform_3(%arg0: i32) -> (i32, i32) {
    %c0_i32 = arith.constant 0 : i32
    %c0_i32_0 = arith.constant 0 : i32
    return %arg0, %c0_i32 : i32, i32
  }
}

</mosaic_0001>

<llo_original>
// kernel: tpu_custom_call.1
$region0: #{tpu_custom_call.1}
  #allocation0 [shape = 'u32[]', space=smem, size = 0x4, offset = 0x4, fixed_abs, tag = 'smem constant byte address 0x4 - core index']
  #allocation1 [shape = 'u32[144,128]{1,0:T(1,128)}', space=vmem, size = 0x12000, scoped, tag = 'internal scratch']
  %s0 = inlined_call_operand.hbm [shape: bf16[1,384], index: 0, kind: input, shape index: {}]
  %s1 = inlined_call_operand.hbm [shape: bf16[384,4096], index: 1, kind: input, shape index: {}]
  %s2 = inlined_call_operand.hbm [shape: f32[1,4096], index: 2, kind: input, shape index: {}]
  %s3 = inlined_call_operand.hbm [shape: f32[1,4096], index: 3, kind: output, shape index: {}]
  %s4 = sld [smem:[#allocation0]]
  $region34: #{tpu_custom_call.1} parent=0
    _
  %s6 = ssub.s32 1, %s4
  %s7 = scalar_select 0, %s6, %s4
  $region1: #{tpu_custom_call.1} parent=0
    #allocation2 [shape = 'u8[1536]{0}', space=vmem, size = 0x800, scoped, tag = 'input window, operand 0, single buffered']
    #allocation3 [shape = 's32[1]{0}', space=sflag, size = 0x4, scoped, tag = 'scoped memory for tpu_custom_call.1']
    #allocation4 [shape = 's32[1]{0}', space=sflag, size = 0x4, scoped, tag = 'scoped memory for tpu_custom_call.1']
    #allocation5 [shape = 'u8[3145728]{0}', space=vmem, size = 0x300000, scoped, tag = 'input window, operand 1, single buffered']
    #allocation6 [shape = 's32[1]{0}', space=sflag, size = 0x4, scoped, tag = 'scoped memory for tpu_custom_call.1']
    #allocation7 [shape = 'u8[16384]{0}', space=vmem, size = 0x4000, scoped, tag = 'input window, operand 2, single buffered']
    #allocation8 [shape = 'u8[16384]{0}', space=vmem, size = 0x4000, scoped, tag = 'output window, operand 0, single buffered']
    %8 = vsyncpa [#allocation3], 0
    %9 = vsyncpa [#allocation6], 0
    %10 = vsyncpa [#allocation4], 0
    // Predicated region
    $region2: #{tpu_custom_call.1} parent=1 // pred_check
      _
    $region3: #{tpu_custom_call.1} parent=1 // pred_check_branch
      %12 = sbr.rel (0) target = $region5
    $region4: #{tpu_custom_call.1} parent=1 // pred_region
      %s14 = ssub.s32 48, 48
      %15 = vsyncadd [#allocation3], %s14
      %s17 = sshll.u32 [#allocation2], 4
      %s18 = int_to_ptr.vmem [resolvable:$true] %s17
      %20 = dma.hbm_to_vmem [thread:$0]  %s0, 48, %s18, [#allocation3]
    $region5: #{tpu_custom_call.1} parent=1 // pred_fallthru
      _
    // Predicated region
    $region6: #{tpu_custom_call.1} parent=1 // pred_check
      _
    $region7: #{tpu_custom_call.1} parent=1 // pred_check_branch
      %22 = sbr.rel (0) target = $region9
    $region8: #{tpu_custom_call.1} parent=1 // pred_region
      %s24 = ssub.s32 98304, 98304
      %25 = vsyncadd [#allocation6], %s24
      %s26 = sshll.u32 [#allocation5], 4
      %s27 = int_to_ptr.vmem [resolvable:$true] %s26
      %32 = dma.hbm_to_vmem [thread:$0]  %s1, 98304, %s27, [#allocation6], 2048, 2048, 128
    $region9: #{tpu_custom_call.1} parent=1 // pred_fallthru
      _
    // Predicated region
    $region10: #{tpu_custom_call.1} parent=1 // pred_check
      _
    $region11: #{tpu_custom_call.1} parent=1 // pred_check_branch
      %34 = sbr.rel (0) target = $region13
    $region12: #{tpu_custom_call.1} parent=1 // pred_region
      %s36 = ssub.s32 512, 512
      %37 = vsyncadd [#allocation6], %s36
      %s39 = sshll.u32 [#allocation7], 4
      %s40 = int_to_ptr.vmem [resolvable:$true] %s39
      %42 = dma.hbm_to_vmem [thread:$0]  %s2, 512, %s40, [#allocation6]
    $region13: #{tpu_custom_call.1} parent=1 // pred_fallthru
      _
    // Predicated region
    $region14: #{tpu_custom_call.1} parent=1 // pred_check
      _
    $region15: #{tpu_custom_call.1} parent=1 // pred_check_branch
      %44 = sbr.rel (0) target = $region17
    $region16: #{tpu_custom_call.1} parent=1 // pred_region
      %45 = dma.done [#allocation3], 48
    $region17: #{tpu_custom_call.1} parent=1 // pred_fallthru
      _
    // Predicated region
    $region18: #{tpu_custom_call.1} parent=1 // pred_check
      _
    $region19: #{tpu_custom_call.1} parent=1 // pred_check_branch
      %47 = sbr.rel (0) target = $region21
    $region20: #{tpu_custom_call.1} parent=1 // pred_region
      %48 = dma.done [#allocation6], 98304
    $region21: #{tpu_custom_call.1} parent=1 // pred_fallthru
      _
    // Predicated region
    $region22: #{tpu_custom_call.1} parent=1 // pred_check
      _
    $region23: #{tpu_custom_call.1} parent=1 // pred_check_branch
      %50 = sbr.rel (0) target = $region25
    $region24: #{tpu_custom_call.1} parent=1 // pred_region
      %51 = dma.done [#allocation6], 512
    $region25: #{tpu_custom_call.1} parent=1 // pred_fallthru
      _
    %v53 = vld [vmem:[#allocation2] sm:$0x7]
    %v54 = vld [vmem:[#allocation5] sm:$0xff]
    %v55 = vld [vmem:[#allocation5 + $0x8] sm:$0xff]
    %v56 = vld [vmem:[#allocation5 + $0x10] sm:$0xff]
    %v57 = vld [vmem:[#allocation5 + $0x18] sm:$0xff]
    %v58 = vld [vmem:[#allocation5 + $0x20] sm:$0xff]
    %v59 = vld [vmem:[#allocation5 + $0x28] sm:$0xff]
    %v60 = vld [vmem:[#allocation5 + $0x30] sm:$0xff]
    %v61 = vld [vmem:[#allocation5 + $0x38] sm:$0xff]
    %v62 = vld [vmem:[#allocation5 + $0x40] sm:$0xff]
    %v63 = vld [vmem:[#allocation5 + $0x48] sm:$0xff]
    %v64 = vld [vmem:[#allocation5 + $0x50] sm:$0xff]
    %v65 = vld [vmem:[#allocation5 + $0x58] sm:$0xff]
    %v66 = vld [vmem:[#allocation5 + $0x60] sm:$0xff]
    %v67 = vld [vmem:[#allocation5 + $0x68] sm:$0xff]
    %v68 = vld [vmem:[#allocation5 + $0x70] sm:$0xff]
    %v69 = vld [vmem:[#allocation5 + $0x78] sm:$0xff]
    %v70 = vld [vmem:[#allocation5 + $0x80] sm:$0xff]
    %v71 = vld [vmem:[#allocation5 + $0x88] sm:$0xff]
    %v72 = vld [vmem:[#allocation5 + $0x90] sm:$0xff]
    %v73 = vld [vmem:[#allocation5 + $0x98] sm:$0xff]
    %v74 = vld [vmem:[#allocation5 + $0xa0] sm:$0xff]
    %v75 = vld [vmem:[#allocation5 + $0xa8] sm:$0xff]
    %v76 = vld [vmem:[#allocation5 + $0xb0] sm:$0xff]
    %v77 = vld [vmem:[#allocation5 + $0xb8] sm:$0xff]
    %v78 = vld [vmem:[#allocation5 + $0xc0] sm:$0xff]
    %v79 = vld [vmem:[#allocation5 + $0xc8] sm:$0xff]
    %v80 = vld [vmem:[#allocation5 + $0xd0] sm:$0xff]
    %v81 = vld [vmem:[#allocation5 + $0xd8] sm:$0xff]
    %v82 = vld [vmem:[#allocation5 + $0xe0] sm:$0xff]
    %v83 = vld [vmem:[#allocation5 + $0xe8] sm:$0xff]
    %v84 = vld [vmem:[#allocation5 + $0xf0] sm:$0xff]
    %v85 = vld [vmem:[#allocation5 + $0xf8] sm:$0xff]
    %v86 = vld [vmem:[#allocation5 + $0x100] sm:$0xff]
    %v87 = vld [vmem:[#allocation5 + $0x108] sm:$0xff]
    %v88 = vld [vmem:[#allocation5 + $0x110] sm:$0xff]
    %v89 = vld [vmem:[#allocation5 + $0x118] sm:$0xff]
    %v90 = vld [vmem:[#allocation5 + $0x120] sm:$0xff]
    %v91 = vld [vmem:[#allocation5 + $0x128] sm:$0xff]
    %v92 = vld [vmem:[#allocation5 + $0x130] sm:$0xff]
    %v93 = vld [vmem:[#allocation5 + $0x138] sm:$0xff]
    %v94 = vld [vmem:[#allocation5 + $0x140] sm:$0xff]
    %v95 = vld [vmem:[#allocation5 + $0x148] sm:$0xff]
    %v96 = vld [vmem:[#allocation5 + $0x150] sm:$0xff]
    %v97 = vld [vmem:[#allocation5 + $0x158] sm:$0xff]
    %v98 = vld [vmem:[#allocation5 + $0x160] sm:$0xff]
    %v99 = vld [vmem:[#allocation5 + $0x168] sm:$0xff]
    %v100 = vld [vmem:[#allocation5 + $0x170] sm:$0xff]
    %v101 = vld [vmem:[#allocation5 + $0x178] sm:$0xff]
    %v102 = vld [vmem:[#allocation5 + $0x180] sm:$0xff]
    %v103 = vld [vmem:[#allocation5 + $0x188] sm:$0xff]
    %v104 = vld [vmem:[#allocation5 + $0x190] sm:$0xff]
    %v105 = vld [vmem:[#allocation5 + $0x198] sm:$0xff]
    %v106 = vld [vmem:[#allocation5 + $0x1a0] sm:$0xff]
    %v107 = vld [vmem:[#allocation5 + $0x1a8] sm:$0xff]
    %v108 = vld [vmem:[#allocation5 + $0x1b0] sm:$0xff]
    %v109 = vld [vmem:[#allocation5 + $0x1b8] sm:$0xff]
    %v110 = vld [vmem:[#allocation5 + $0x1c0] sm:$0xff]
    %v111 = vld [vmem:[#allocation5 + $0x1c8] sm:$0xff]
    %v112 = vld [vmem:[#allocation5 + $0x1d0] sm:$0xff]
    %v113 = vld [vmem:[#allocation5 + $0x1d8] sm:$0xff]
    %v114 = vld [vmem:[#allocation5 + $0x1e0] sm:$0xff]
    %v115 = vld [vmem:[#allocation5 + $0x1e8] sm:$0xff]
    %v116 = vld [vmem:[#allocation5 + $0x1f0] sm:$0xff]
    %v117 = vld [vmem:[#allocation5 + $0x1f8] sm:$0xff]
    %v118 = vld [vmem:[#allocation5 + $0x200] sm:$0xff]
    %v119 = vld [vmem:[#allocation5 + $0x208] sm:$0xff]
    %v120 = vld [vmem:[#allocation5 + $0x210] sm:$0xff]
    %v121 = vld [vmem:[#allocation5 + $0x218] sm:$0xff]
    %v122 = vld [vmem:[#allocation5 + $0x220] sm:$0xff]
    %v123 = vld [vmem:[#allocation5 + $0x228] sm:$0xff]
    %v124 = vld [vmem:[#allocation5 + $0x230] sm:$0xff]
    %v125 = vld [vmem:[#allocation5 + $0x238] sm:$0xff]
    %v126 = vld [vmem:[#allocation5 + $0x240] sm:$0xff]
    %v127 = vld [vmem:[#allocation5 + $0x248] sm:$0xff]
    %v128 = vld [vmem:[#allocation5 + $0x250] sm:$0xff]
    %v129 = vld [vmem:[#allocation5 + $0x258] sm:$0xff]
    %v130 = vld [vmem:[#allocation5 + $0x260] sm:$0xff]
    %v131 = vld [vmem:[#allocation5 + $0x268] sm:$0xff]
    %v132 = vld [vmem:[#allocation5 + $0x270] sm:$0xff]
    %v133 = vld [vmem:[#allocation5 + $0x278] sm:$0xff]
    %v134 = vld [vmem:[#allocation5 + $0x280] sm:$0xff]
    %v135 = vld [vmem:[#allocation5 + $0x288] sm:$0xff]
    %v136 = vld [vmem:[#allocation5 + $0x290] sm:$0xff]
    %v137 = vld [vmem:[#allocation5 + $0x298] sm:$0xff]
    %v138 = vld [vmem:[#allocation5 + $0x2a0] sm:$0xff]
    %v139 = vld [vmem:[#allocation5 + $0x2a8] sm:$0xff]
    %v140 = vld [vmem:[#allocation5 + $0x2b0] sm:$0xff]
    %v141 = vld [vmem:[#allocation5 + $0x2b8] sm:$0xff]
    %v142 = vld [vmem:[#allocation5 + $0x2c0] sm:$0xff]
    %v143 = vld [vmem:[#allocation5 + $0x2c8] sm:$0xff]
    %v144 = vld [vmem:[#allocation5 + $0x2d0] sm:$0xff]
    %v145 = vld [vmem:[#allocation5 + $0x2d8] sm:$0xff]
    %v146 = vld [vmem:[#allocation5 + $0x2e0] sm:$0xff]
    %v147 = vld [vmem:[#allocation5 + $0x2e8] sm:$0xff]
    %v148 = vld [vmem:[#allocation5 + $0x2f0] sm:$0xff]
    %v149 = vld [vmem:[#allocation5 + $0x2f8] sm:$0xff]
    %v150 = vld [vmem:[#allocation5 + $0x300] sm:$0xff]
    %v151 = vld [vmem:[#allocation5 + $0x308] sm:$0xff]
    %v152 = vld [vmem:[#allocation5 + $0x310] sm:$0xff]
    %v153 = vld [vmem:[#allocation5 + $0x318] sm:$0xff]
    %v154 = vld [vmem:[#allocation5 + $0x320] sm:$0xff]
    %v155 = vld [vmem:[#allocation5 + $0x328] sm:$0xff]
    %v156 = vld [vmem:[#allocation5 + $0x330] sm:$0xff]
    %v157 = vld [vmem:[#allocation5 + $0x338] sm:$0xff]
    %v158 = vld [vmem:[#allocation5 + $0x340] sm:$0xff]
    %v159 = vld [vmem:[#allocation5 + $0x348] sm:$0xff]
    %v160 = vld [vmem:[#allocation5 + $0x350] sm:$0xff]
    %v161 = vld [vmem:[#allocation5 + $0x358] sm:$0xff]
    %v162 = vld [vmem:[#allocation5 + $0x360] sm:$0xff]
    %v163 = vld [vmem:[#allocation5 + $0x368] sm:$0xff]
    %v164 = vld [vmem:[#allocation5 + $0x370] sm:$0xff]
    %v165 = vld [vmem:[#allocation5 + $0x378] sm:$0xff]
    %v166 = vld [vmem:[#allocation5 + $0x380] sm:$0xff]
    %v167 = vld [vmem:[#allocation5 + $0x388] sm:$0xff]
    %v168 = vld [vmem:[#allocation5 + $0x390] sm:$0xff]
    %v169 = vld [vmem:[#allocation5 + $0x398] sm:$0xff]
    %v170 = vld [vmem:[#allocation5 + $0x3a0] sm:$0xff]
    %v171 = vld [vmem:[#allocation5 + $0x3a8] sm:$0xff]
    %v172 = vld [vmem:[#allocation5 + $0x3b0] sm:$0xff]
    %v173 = vld [vmem:[#allocation5 + $0x3b8] sm:$0xff]
    %v174 = vld [vmem:[#allocation5 + $0x3c0] sm:$0xff]
    %v175 = vld [vmem:[#allocation5 + $0x3c8] sm:$0xff]
    %v176 = vld [vmem:[#allocation5 + $0x3d0] sm:$0xff]
    %v177 = vld [vmem:[#allocation5 + $0x3d8] sm:$0xff]
    %v178 = vld [vmem:[#allocation5 + $0x3e0] sm:$0xff]
    %v179 = vld [vmem:[#allocation5 + $0x3e8] sm:$0xff]
    %v180 = vld [vmem:[#allocation5 + $0x3f0] sm:$0xff]
    %v181 = vld [vmem:[#allocation5 + $0x3f8] sm:$0xff]
    %v182 = vld [vmem:[#allocation5 + $0x400] sm:$0xff]
    %v183 = vld [vmem:[#allocation5 + $0x408] sm:$0xff]
    %v184 = vld [vmem:[#allocation5 + $0x410] sm:$0xff]
    %v185 = vld [vmem:[#allocation5 + $0x418] sm:$0xff]
    %v186 = vld [vmem:[#allocation5 + $0x420] sm:$0xff]
    %v187 = vld [vmem:[#allocation5 + $0x428] sm:$0xff]
    %v188 = vld [vmem:[#allocation5 + $0x430] sm:$0xff]
    %v189 = vld [vmem:[#allocation5 + $0x438] sm:$0xff]
    %v190 = vld [vmem:[#allocation5 + $0x440] sm:$0xff]
    %v191 = vld [vmem:[#allocation5 + $0x448] sm:$0xff]
    %v192 = vld [vmem:[#allocation5 + $0x450] sm:$0xff]
    %v193 = vld [vmem:[#allocation5 + $0x458] sm:$0xff]
    %v194 = vld [vmem:[#allocation5 + $0x460] sm:$0xff]
    %v195 = vld [vmem:[#allocation5 + $0x468] sm:$0xff]
    %v196 = vld [vmem:[#allocation5 + $0x470] sm:$0xff]
    %v197 = vld [vmem:[#allocation5 + $0x478] sm:$0xff]
    %v198 = vld [vmem:[#allocation5 + $0x480] sm:$0xff]
    %v199 = vld [vmem:[#allocation5 + $0x488] sm:$0xff]
    %v200 = vld [vmem:[#allocation5 + $0x490] sm:$0xff]
    %v201 = vld [vmem:[#allocation5 + $0x498] sm:$0xff]
    %v202 = vld [vmem:[#allocation5 + $0x4a0] sm:$0xff]
    %v203 = vld [vmem:[#allocation5 + $0x4a8] sm:$0xff]
    %v204 = vld [vmem:[#allocation5 + $0x4b0] sm:$0xff]
    %v205 = vld [vmem:[#allocation5 + $0x4b8] sm:$0xff]
    %v206 = vld [vmem:[#allocation5 + $0x4c0] sm:$0xff]
    %v207 = vld [vmem:[#allocation5 + $0x4c8] sm:$0xff]
    %v208 = vld [vmem:[#allocation5 + $0x4d0] sm:$0xff]
    %v209 = vld [vmem:[#allocation5 + $0x4d8] sm:$0xff]
    %v210 = vld [vmem:[#allocation5 + $0x4e0] sm:$0xff]
    %v211 = vld [vmem:[#allocation5 + $0x4e8] sm:$0xff]
    %v212 = vld [vmem:[#allocation5 + $0x4f0] sm:$0xff]
    %v213 = vld [vmem:[#allocation5 + $0x4f8] sm:$0xff]
    %v214 = vld [vmem:[#allocation5 + $0x500] sm:$0xff]
    %v215 = vld [vmem:[#allocation5 + $0x508] sm:$0xff]
    %v216 = vld [vmem:[#allocation5 + $0x510] sm:$0xff]
    %v217 = vld [vmem:[#allocation5 + $0x518] sm:$0xff]
    %v218 = vld [vmem:[#allocation5 + $0x520] sm:$0xff]
    %v219 = vld [vmem:[#allocation5 + $0x528] sm:$0xff]
    %v220 = vld [vmem:[#allocation5 + $0x530] sm:$0xff]
    %v221 = vld [vmem:[#allocation5 + $0x538] sm:$0xff]
    %v222 = vld [vmem:[#allocation5 + $0x540] sm:$0xff]
    %v223 = vld [vmem:[#allocation5 + $0x548] sm:$0xff]
    %v224 = vld [vmem:[#allocation5 + $0x550] sm:$0xff]
    %v225 = vld [vmem:[#allocation5 + $0x558] sm:$0xff]
    %v226 = vld [vmem:[#allocation5 + $0x560] sm:$0xff]
    %v227 = vld [vmem:[#allocation5 + $0x568] sm:$0xff]
    %v228 = vld [vmem:[#allocation5 + $0x570] sm:$0xff]
    %v229 = vld [vmem:[#allocation5 + $0x578] sm:$0xff]
    %v230 = vld [vmem:[#allocation5 + $0x580] sm:$0xff]
    %v231 = vld [vmem:[#allocation5 + $0x588] sm:$0xff]
    %v232 = vld [vmem:[#allocation5 + $0x590] sm:$0xff]
    %v233 = vld [vmem:[#allocation5 + $0x598] sm:$0xff]
    %v234 = vld [vmem:[#allocation5 + $0x5a0] sm:$0xff]
    %v235 = vld [vmem:[#allocation5 + $0x5a8] sm:$0xff]
    %v236 = vld [vmem:[#allocation5 + $0x5b0] sm:$0xff]
    %v237 = vld [vmem:[#allocation5 + $0x5b8] sm:$0xff]
    %v238 = vld [vmem:[#allocation5 + $0x5c0] sm:$0xff]
    %v239 = vld [vmem:[#allocation5 + $0x5c8] sm:$0xff]
    %v240 = vld [vmem:[#allocation5 + $0x5d0] sm:$0xff]
    %v241 = vld [vmem:[#allocation5 + $0x5d8] sm:$0xff]
    %v242 = vld [vmem:[#allocation5 + $0x5e0] sm:$0xff]
    %v243 = vld [vmem:[#allocation5 + $0x5e8] sm:$0xff]
    %v244 = vld [vmem:[#allocation5 + $0x5f0] sm:$0xff]
    %v245 = vld [vmem:[#allocation5 + $0x5f8] sm:$0xff]
    %v246 = vld [vmem:[#allocation5 + $0x600] sm:$0xff]
    %v247 = vld [vmem:[#allocation5 + $0x608] sm:$0xff]
    %v248 = vld [vmem:[#allocation5 + $0x610] sm:$0xff]
    %v249 = vld [vmem:[#allocation5 + $0x618] sm:$0xff]
    %v250 = vld [vmem:[#allocation5 + $0x620] sm:$0xff]
    %v251 = vld [vmem:[#allocation5 + $0x628] sm:$0xff]
    %v252 = vld [vmem:[#allocation5 + $0x630] sm:$0xff]
    %v253 = vld [vmem:[#allocation5 + $0x638] sm:$0xff]
    %v254 = vld [vmem:[#allocation5 + $0x640] sm:$0xff]
    %v255 = vld [vmem:[#allocation5 + $0x648] sm:$0xff]
    %v256 = vld [vmem:[#allocation5 + $0x650] sm:$0xff]
    %v257 = vld [vmem:[#allocation5 + $0x658] sm:$0xff]
    %v258 = vld [vmem:[#allocation5 + $0x660] sm:$0xff]
    %v259 = vld [vmem:[#allocation5 + $0x668] sm:$0xff]
    %v260 = vld [vmem:[#allocation5 + $0x670] sm:$0xff]
    %v261 = vld [vmem:[#allocation5 + $0x678] sm:$0xff]
    %v262 = vld [vmem:[#allocation5 + $0x680] sm:$0xff]
    %v263 = vld [vmem:[#allocation5 + $0x688] sm:$0xff]
    %v264 = vld [vmem:[#allocation5 + $0x690] sm:$0xff]
    %v265 = vld [vmem:[#allocation5 + $0x698] sm:$0xff]
    %v266 = vld [vmem:[#allocation5 + $0x6a0] sm:$0xff]
    %v267 = vld [vmem:[#allocation5 + $0x6a8] sm:$0xff]
    %v268 = vld [vmem:[#allocation5 + $0x6b0] sm:$0xff]
    %v269 = vld [vmem:[#allocation5 + $0x6b8] sm:$0xff]
    %v270 = vld [vmem:[#allocation5 + $0x6c0] sm:$0xff]
    %v271 = vld [vmem:[#allocation5 + $0x6c8] sm:$0xff]
    %v272 = vld [vmem:[#allocation5 + $0x6d0] sm:$0xff]
    %v273 = vld [vmem:[#allocation5 + $0x6d8] sm:$0xff]
    %v274 = vld [vmem:[#allocation5 + $0x6e0] sm:$0xff]
    %v275 = vld [vmem:[#allocation5 + $0x6e8] sm:$0xff]
    %v276 = vld [vmem:[#allocation5 + $0x6f0] sm:$0xff]
    %v277 = vld [vmem:[#allocation5 + $0x6f8] sm:$0xff]
    %v278 = vld [vmem:[#allocation5 + $0x700] sm:$0xff]
    %v279 = vld [vmem:[#allocation5 + $0x708] sm:$0xff]
    %v280 = vld [vmem:[#allocation5 + $0x710] sm:$0xff]
    %v281 = vld [vmem:[#allocation5 + $0x718] sm:$0xff]
    %v282 = vld [vmem:[#allocation5 + $0x720] sm:$0xff]
    %v283 = vld [vmem:[#allocation5 + $0x728] sm:$0xff]
    %v284 = vld [vmem:[#allocation5 + $0x730] sm:$0xff]
    %v285 = vld [vmem:[#allocation5 + $0x738] sm:$0xff]
    %v286 = vld [vmem:[#allocation5 + $0x740] sm:$0xff]
    %v287 = vld [vmem:[#allocation5 + $0x748] sm:$0xff]
    %v288 = vld [vmem:[#allocation5 + $0x750] sm:$0xff]
    %v289 = vld [vmem:[#allocation5 + $0x758] sm:$0xff]
    %v290 = vld [vmem:[#allocation5 + $0x760] sm:$0xff]
    %v291 = vld [vmem:[#allocation5 + $0x768] sm:$0xff]
    %v292 = vld [vmem:[#allocation5 + $0x770] sm:$0xff]
    %v293 = vld [vmem:[#allocation5 + $0x778] sm:$0xff]
    %v294 = vld [vmem:[#allocation5 + $0x780] sm:$0xff]
    %v295 = vld [vmem:[#allocation5 + $0x788] sm:$0xff]
    %v296 = vld [vmem:[#allocation5 + $0x790] sm:$0xff]
    %v297 = vld [vmem:[#allocation5 + $0x798] sm:$0xff]
    %v298 = vld [vmem:[#allocation5 + $0x7a0] sm:$0xff]
    %v299 = vld [vmem:[#allocation5 + $0x7a8] sm:$0xff]
    %v300 = vld [vmem:[#allocation5 + $0x7b0] sm:$0xff]
    %v301 = vld [vmem:[#allocation5 + $0x7b8] sm:$0xff]
    %v302 = vld [vmem:[#allocation5 + $0x7c0] sm:$0xff]
    %v303 = vld [vmem:[#allocation5 + $0x7c8] sm:$0xff]
    %v304 = vld [vmem:[#allocation5 + $0x7d0] sm:$0xff]
    %v305 = vld [vmem:[#allocation5 + $0x7d8] sm:$0xff]
    %v306 = vld [vmem:[#allocation5 + $0x7e0] sm:$0xff]
    %v307 = vld [vmem:[#allocation5 + $0x7e8] sm:$0xff]
    %v308 = vld [vmem:[#allocation5 + $0x7f0] sm:$0xff]
    %v309 = vld [vmem:[#allocation5 + $0x7f8] sm:$0xff]
    %v310 = vld [vmem:[#allocation5 + $0x800] sm:$0xff]
    %v311 = vld [vmem:[#allocation5 + $0x808] sm:$0xff]
    %v312 = vld [vmem:[#allocation5 + $0x810] sm:$0xff]
    %v313 = vld [vmem:[#allocation5 + $0x818] sm:$0xff]
    %v314 = vld [vmem:[#allocation5 + $0x820] sm:$0xff]
    %v315 = vld [vmem:[#allocation5 + $0x828] sm:$0xff]
    %v316 = vld [vmem:[#allocation5 + $0x830] sm:$0xff]
    %v317 = vld [vmem:[#allocation5 + $0x838] sm:$0xff]
    %v318 = vld [vmem:[#allocation5 + $0x840] sm:$0xff]
    %v319 = vld [vmem:[#allocation5 + $0x848] sm:$0xff]
    %v320 = vld [vmem:[#allocation5 + $0x850] sm:$0xff]
    %v321 = vld [vmem:[#allocation5 + $0x858] sm:$0xff]
    %v322 = vld [vmem:[#allocation5 + $0x860] sm:$0xff]
    %v323 = vld [vmem:[#allocation5 + $0x868] sm:$0xff]
    %v324 = vld [vmem:[#allocation5 + $0x870] sm:$0xff]
    %v325 = vld [vmem:[#allocation5 + $0x878] sm:$0xff]
    %v326 = vld [vmem:[#allocation5 + $0x880] sm:$0xff]
    %v327 = vld [vmem:[#allocation5 + $0x888] sm:$0xff]
    %v328 = vld [vmem:[#allocation5 + $0x890] sm:$0xff]
    %v329 = vld [vmem:[#allocation5 + $0x898] sm:$0xff]
    %v330 = vld [vmem:[#allocation5 + $0x8a0] sm:$0xff]
    %v331 = vld [vmem:[#allocation5 + $0x8a8] sm:$0xff]
    %v332 = vld [vmem:[#allocation5 + $0x8b0] sm:$0xff]
    %v333 = vld [vmem:[#allocation5 + $0x8b8] sm:$0xff]
    %v334 = vld [vmem:[#allocation5 + $0x8c0] sm:$0xff]
    %v335 = vld [vmem:[#allocation5 + $0x8c8] sm:$0xff]
    %v336 = vld [vmem:[#allocation5 + $0x8d0] sm:$0xff]
    %v337 = vld [vmem:[#allocation5 + $0x8d8] sm:$0xff]
    %v338 = vld [vmem:[#allocation5 + $0x8e0] sm:$0xff]
    %v339 = vld [vmem:[#allocation5 + $0x8e8] sm:$0xff]
    %v340 = vld [vmem:[#allocation5 + $0x8f0] sm:$0xff]
    %v341 = vld [vmem:[#allocation5 + $0x8f8] sm:$0xff]
    %v342 = vld [vmem:[#allocation5 + $0x900] sm:$0xff]
    %v343 = vld [vmem:[#allocation5 + $0x908] sm:$0xff]
    %v344 = vld [vmem:[#allocation5 + $0x910] sm:$0xff]
    %v345 = vld [vmem:[#allocation5 + $0x918] sm:$0xff]
    %v346 = vld [vmem:[#allocation5 + $0x920] sm:$0xff]
    %v347 = vld [vmem:[#allocation5 + $0x928] sm:$0xff]
    %v348 = vld [vmem:[#allocation5 + $0x930] sm:$0xff]
    %v349 = vld [vmem:[#allocation5 + $0x938] sm:$0xff]
    %v350 = vld [vmem:[#allocation5 + $0x940] sm:$0xff]
    %v351 = vld [vmem:[#allocation5 + $0x948] sm:$0xff]
    %v352 = vld [vmem:[#allocation5 + $0x950] sm:$0xff]
    %v353 = vld [vmem:[#allocation5 + $0x958] sm:$0xff]
    %v354 = vld [vmem:[#allocation5 + $0x960] sm:$0xff]
    %v355 = vld [vmem:[#allocation5 + $0x968] sm:$0xff]
    %v356 = vld [vmem:[#allocation5 + $0x970] sm:$0xff]
    %v357 = vld [vmem:[#allocation5 + $0x978] sm:$0xff]
    %v358 = vld [vmem:[#allocation5 + $0x980] sm:$0xff]
    %v359 = vld [vmem:[#allocation5 + $0x988] sm:$0xff]
    %v360 = vld [vmem:[#allocation5 + $0x990] sm:$0xff]
    %v361 = vld [vmem:[#allocation5 + $0x998] sm:$0xff]
    %v362 = vld [vmem:[#allocation5 + $0x9a0] sm:$0xff]
    %v363 = vld [vmem:[#allocation5 + $0x9a8] sm:$0xff]
    %v364 = vld [vmem:[#allocation5 + $0x9b0] sm:$0xff]
    %v365 = vld [vmem:[#allocation5 + $0x9b8] sm:$0xff]
    %v366 = vld [vmem:[#allocation5 + $0x9c0] sm:$0xff]
    %v367 = vld [vmem:[#allocation5 + $0x9c8] sm:$0xff]
    %v368 = vld [vmem:[#allocation5 + $0x9d0] sm:$0xff]
    %v369 = vld [vmem:[#allocation5 + $0x9d8] sm:$0xff]
    %v370 = vld [vmem:[#allocation5 + $0x9e0] sm:$0xff]
    %v371 = vld [vmem:[#allocation5 + $0x9e8] sm:$0xff]
    %v372 = vld [vmem:[#allocation5 + $0x9f0] sm:$0xff]
    %v373 = vld [vmem:[#allocation5 + $0x9f8] sm:$0xff]
    %v374 = vld [vmem:[#allocation5 + $0xa00] sm:$0xff]
    %v375 = vld [vmem:[#allocation5 + $0xa08] sm:$0xff]
    %v376 = vld [vmem:[#allocation5 + $0xa10] sm:$0xff]
    %v377 = vld [vmem:[#allocation5 + $0xa18] sm:$0xff]
    %v378 = vld [vmem:[#allocation5 + $0xa20] sm:$0xff]
    %v379 = vld [vmem:[#allocation5 + $0xa28] sm:$0xff]
    %v380 = vld [vmem:[#allocation5 + $0xa30] sm:$0xff]
    %v381 = vld [vmem:[#allocation5 + $0xa38] sm:$0xff]
    %v382 = vld [vmem:[#allocation5 + $0xa40] sm:$0xff]
    %v383 = vld [vmem:[#allocation5 + $0xa48] sm:$0xff]
    %v384 = vld [vmem:[#allocation5 + $0xa50] sm:$0xff]
    %v385 = vld [vmem:[#allocation5 + $0xa58] sm:$0xff]
    %v386 = vld [vmem:[#allocation5 + $0xa60] sm:$0xff]
    %v387 = vld [vmem:[#allocation5 + $0xa68] sm:$0xff]
    %v388 = vld [vmem:[#allocation5 + $0xa70] sm:$0xff]
    %v389 = vld [vmem:[#allocation5 + $0xa78] sm:$0xff]
    %v390 = vld [vmem:[#allocation5 + $0xa80] sm:$0xff]
    %v391 = vld [vmem:[#allocation5 + $0xa88] sm:$0xff]
    %v392 = vld [vmem:[#allocation5 + $0xa90] sm:$0xff]
    %v393 = vld [vmem:[#allocation5 + $0xa98] sm:$0xff]
    %v394 = vld [vmem:[#allocation5 + $0xaa0] sm:$0xff]
    %v395 = vld [vmem:[#allocation5 + $0xaa8] sm:$0xff]
    %v396 = vld [vmem:[#allocation5 + $0xab0] sm:$0xff]
    %v397 = vld [vmem:[#allocation5 + $0xab8] sm:$0xff]
    %v398 = vld [vmem:[#allocation5 + $0xac0] sm:$0xff]
    %v399 = vld [vmem:[#allocation5 + $0xac8] sm:$0xff]
    %v400 = vld [vmem:[#allocation5 + $0xad0] sm:$0xff]
    %v401 = vld [vmem:[#allocation5 + $0xad8] sm:$0xff]
    %v402 = vld [vmem:[#allocation5 + $0xae0] sm:$0xff]
    %v403 = vld [vmem:[#allocation5 + $0xae8] sm:$0xff]
    %v404 = vld [vmem:[#allocation5 + $0xaf0] sm:$0xff]
    %v405 = vld [vmem:[#allocation5 + $0xaf8] sm:$0xff]
    %v406 = vld [vmem:[#allocation5 + $0xb00] sm:$0xff]
    %v407 = vld [vmem:[#allocation5 + $0xb08] sm:$0xff]
    %v408 = vld [vmem:[#allocation5 + $0xb10] sm:$0xff]
    %v409 = vld [vmem:[#allocation5 + $0xb18] sm:$0xff]
    %v410 = vld [vmem:[#allocation5 + $0xb20] sm:$0xff]
    %v411 = vld [vmem:[#allocation5 + $0xb28] sm:$0xff]
    %v412 = vld [vmem:[#allocation5 + $0xb30] sm:$0xff]
    %v413 = vld [vmem:[#allocation5 + $0xb38] sm:$0xff]
    %v414 = vld [vmem:[#allocation5 + $0xb40] sm:$0xff]
    %v415 = vld [vmem:[#allocation5 + $0xb48] sm:$0xff]
    %v416 = vld [vmem:[#allocation5 + $0xb50] sm:$0xff]
    %v417 = vld [vmem:[#allocation5 + $0xb58] sm:$0xff]
    %v418 = vld [vmem:[#allocation5 + $0xb60] sm:$0xff]
    %v419 = vld [vmem:[#allocation5 + $0xb68] sm:$0xff]
    %v420 = vld [vmem:[#allocation5 + $0xb70] sm:$0xff]
    %v421 = vld [vmem:[#allocation5 + $0xb78] sm:$0xff]
    %v422 = vld [vmem:[#allocation5 + $0xb80] sm:$0xff]
    %v423 = vld [vmem:[#allocation5 + $0xb88] sm:$0xff]
    %v424 = vld [vmem:[#allocation5 + $0xb90] sm:$0xff]
    %v425 = vld [vmem:[#allocation5 + $0xb98] sm:$0xff]
    %v426 = vld [vmem:[#allocation5 + $0xba0] sm:$0xff]
    %v427 = vld [vmem:[#allocation5 + $0xba8] sm:$0xff]
    %v428 = vld [vmem:[#allocation5 + $0xbb0] sm:$0xff]
    %v429 = vld [vmem:[#allocation5 + $0xbb8] sm:$0xff]
    %v430 = vld [vmem:[#allocation5 + $0xbc0] sm:$0xff]
    %v431 = vld [vmem:[#allocation5 + $0xbc8] sm:$0xff]
    %v432 = vld [vmem:[#allocation5 + $0xbd0] sm:$0xff]
    %v433 = vld [vmem:[#allocation5 + $0xbd8] sm:$0xff]
    %v434 = vld [vmem:[#allocation5 + $0xbe0] sm:$0xff]
    %v435 = vld [vmem:[#allocation5 + $0xbe8] sm:$0xff]
    %v436 = vld [vmem:[#allocation5 + $0xbf0] sm:$0xff]
    %v437 = vld [vmem:[#allocation5 + $0xbf8] sm:$0xff]
    %v438 = vld [vmem:[#allocation5 + $0xc00] sm:$0xff]
    %v439 = vld [vmem:[#allocation5 + $0xc08] sm:$0xff]
    %v440 = vld [vmem:[#allocation5 + $0xc10] sm:$0xff]
    %v441 = vld [vmem:[#allocation5 + $0xc18] sm:$0xff]
    %v442 = vld [vmem:[#allocation5 + $0xc20] sm:$0xff]
    %v443 = vld [vmem:[#allocation5 + $0xc28] sm:$0xff]
    %v444 = vld [vmem:[#allocation5 + $0xc30] sm:$0xff]
    %v445 = vld [vmem:[#allocation5 + $0xc38] sm:$0xff]
    %v446 = vld [vmem:[#allocation5 + $0xc40] sm:$0xff]
    %v447 = vld [vmem:[#allocation5 + $0xc48] sm:$0xff]
    %v448 = vld [vmem:[#allocation5 + $0xc50] sm:$0xff]
    %v449 = vld [vmem:[#allocation5 + $0xc58] sm:$0xff]
    %v450 = vld [vmem:[#allocation5 + $0xc60] sm:$0xff]
    %v451 = vld [vmem:[#allocation5 + $0xc68] sm:$0xff]
    %v452 = vld [vmem:[#allocation5 + $0xc70] sm:$0xff]
    %v453 = vld [vmem:[#allocation5 + $0xc78] sm:$0xff]
    %v454 = vld [vmem:[#allocation5 + $0xc80] sm:$0xff]
    %v455 = vld [vmem:[#allocation5 + $0xc88] sm:$0xff]
    %v456 = vld [vmem:[#allocation5 + $0xc90] sm:$0xff]
    %v457 = vld [vmem:[#allocation5 + $0xc98] sm:$0xff]
    %v458 = vld [vmem:[#allocation5 + $0xca0] sm:$0xff]
    %v459 = vld [vmem:[#allocation5 + $0xca8] sm:$0xff]
    %v460 = vld [vmem:[#allocation5 + $0xcb0] sm:$0xff]
    %v461 = vld [vmem:[#allocation5 + $0xcb8] sm:$0xff]
    %v462 = vld [vmem:[#allocation5 + $0xcc0] sm:$0xff]
    %v463 = vld [vmem:[#allocation5 + $0xcc8] sm:$0xff]
    %v464 = vld [vmem:[#allocation5 + $0xcd0] sm:$0xff]
    %v465 = vld [vmem:[#allocation5 + $0xcd8] sm:$0xff]
    %v466 = vld [vmem:[#allocation5 + $0xce0] sm:$0xff]
    %v467 = vld [vmem:[#allocation5 + $0xce8] sm:$0xff]
    %v468 = vld [vmem:[#allocation5 + $0xcf0] sm:$0xff]
    %v469 = vld [vmem:[#allocation5 + $0xcf8] sm:$0xff]
    %v470 = vld [vmem:[#allocation5 + $0xd00] sm:$0xff]
    %v471 = vld [vmem:[#allocation5 + $0xd08] sm:$0xff]
    %v472 = vld [vmem:[#allocation5 + $0xd10] sm:$0xff]
    %v473 = vld [vmem:[#allocation5 + $0xd18] sm:$0xff]
    %v474 = vld [vmem:[#allocation5 + $0xd20] sm:$0xff]
    %v475 = vld [vmem:[#allocation5 + $0xd28] sm:$0xff]
    %v476 = vld [vmem:[#allocation5 + $0xd30] sm:$0xff]
    %v477 = vld [vmem:[#allocation5 + $0xd38] sm:$0xff]
    %v478 = vld [vmem:[#allocation5 + $0xd40] sm:$0xff]
    %v479 = vld [vmem:[#allocation5 + $0xd48] sm:$0xff]
    %v480 = vld [vmem:[#allocation5 + $0xd50] sm:$0xff]
    %v481 = vld [vmem:[#allocation5 + $0xd58] sm:$0xff]
    %v482 = vld [vmem:[#allocation5 + $0xd60] sm:$0xff]
    %v483 = vld [vmem:[#allocation5 + $0xd68] sm:$0xff]
    %v484 = vld [vmem:[#allocation5 + $0xd70] sm:$0xff]
    %v485 = vld [vmem:[#allocation5 + $0xd78] sm:$0xff]
    %v486 = vld [vmem:[#allocation5 + $0xd80] sm:$0xff]
    %v487 = vld [vmem:[#allocation5 + $0xd88] sm:$0xff]
    %v488 = vld [vmem:[#allocation5 + $0xd90] sm:$0xff]
    %v489 = vld [vmem:[#allocation5 + $0xd98] sm:$0xff]
    %v490 = vld [vmem:[#allocation5 + $0xda0] sm:$0xff]
    %v491 = vld [vmem:[#allocation5 + $0xda8] sm:$0xff]
    %v492 = vld [vmem:[#allocation5 + $0xdb0] sm:$0xff]
    %v493 = vld [vmem:[#allocation5 + $0xdb8] sm:$0xff]
    %v494 = vld [vmem:[#allocation5 + $0xdc0] sm:$0xff]
    %v495 = vld [vmem:[#allocation5 + $0xdc8] sm:$0xff]
    %v496 = vld [vmem:[#allocation5 + $0xdd0] sm:$0xff]
    %v497 = vld [vmem:[#allocation5 + $0xdd8] sm:$0xff]
    %v498 = vld [vmem:[#allocation5 + $0xde0] sm:$0xff]
    %v499 = vld [vmem:[#allocation5 + $0xde8] sm:$0xff]
    %v500 = vld [vmem:[#allocation5 + $0xdf0] sm:$0xff]
    %v501 = vld [vmem:[#allocation5 + $0xdf8] sm:$0xff]
    %v502 = vld [vmem:[#allocation5 + $0xe00] sm:$0xff]
    %v503 = vld [vmem:[#allocation5 + $0xe08] sm:$0xff]
    %v504 = vld [vmem:[#allocation5 + $0xe10] sm:$0xff]
    %v505 = vld [vmem:[#allocation5 + $0xe18] sm:$0xff]
    %v506 = vld [vmem:[#allocation5 + $0xe20] sm:$0xff]
    %v507 = vld [vmem:[#allocation5 + $0xe28] sm:$0xff]
    %v508 = vld [vmem:[#allocation5 + $0xe30] sm:$0xff]
    %v509 = vld [vmem:[#allocation5 + $0xe38] sm:$0xff]
    %v510 = vld [vmem:[#allocation5 + $0xe40] sm:$0xff]
    %v511 = vld [vmem:[#allocation5 + $0xe48] sm:$0xff]
    %v512 = vld [vmem:[#allocation5 + $0xe50] sm:$0xff]
    %v513 = vld [vmem:[#allocation5 + $0xe58] sm:$0xff]
    %v514 = vld [vmem:[#allocation5 + $0xe60] sm:$0xff]
    %v515 = vld [vmem:[#allocation5 + $0xe68] sm:$0xff]
    %v516 = vld [vmem:[#allocation5 + $0xe70] sm:$0xff]
    %v517 = vld [vmem:[#allocation5 + $0xe78] sm:$0xff]
    %v518 = vld [vmem:[#allocation5 + $0xe80] sm:$0xff]
    %v519 = vld [vmem:[#allocation5 + $0xe88] sm:$0xff]
    %v520 = vld [vmem:[#allocation5 + $0xe90] sm:$0xff]
    %v521 = vld [vmem:[#allocation5 + $0xe98] sm:$0xff]
    %v522 = vld [vmem:[#allocation5 + $0xea0] sm:$0xff]
    %v523 = vld [vmem:[#allocation5 + $0xea8] sm:$0xff]
    %v524 = vld [vmem:[#allocation5 + $0xeb0] sm:$0xff]
    %v525 = vld [vmem:[#allocation5 + $0xeb8] sm:$0xff]
    %v526 = vld [vmem:[#allocation5 + $0xec0] sm:$0xff]
    %v527 = vld [vmem:[#allocation5 + $0xec8] sm:$0xff]
    %v528 = vld [vmem:[#allocation5 + $0xed0] sm:$0xff]
    %v529 = vld [vmem:[#allocation5 + $0xed8] sm:$0xff]
    %v530 = vld [vmem:[#allocation5 + $0xee0] sm:$0xff]
    %v531 = vld [vmem:[#allocation5 + $0xee8] sm:$0xff]
    %v532 = vld [vmem:[#allocation5 + $0xef0] sm:$0xff]
    %v533 = vld [vmem:[#allocation5 + $0xef8] sm:$0xff]
    %v534 = vld [vmem:[#allocation5 + $0xf00] sm:$0xff]
    %v535 = vld [vmem:[#allocation5 + $0xf08] sm:$0xff]
    %v536 = vld [vmem:[#allocation5 + $0xf10] sm:$0xff]
    %v537 = vld [vmem:[#allocation5 + $0xf18] sm:$0xff]
    %v538 = vld [vmem:[#allocation5 + $0xf20] sm:$0xff]
    %v539 = vld [vmem:[#allocation5 + $0xf28] sm:$0xff]
    %v540 = vld [vmem:[#allocation5 + $0xf30] sm:$0xff]
    %v541 = vld [vmem:[#allocation5 + $0xf38] sm:$0xff]
    %v542 = vld [vmem:[#allocation5 + $0xf40] sm:$0xff]
    %v543 = vld [vmem:[#allocation5 + $0xf48] sm:$0xff]
    %v544 = vld [vmem:[#allocation5 + $0xf50] sm:$0xff]
    %v545 = vld [vmem:[#allocation5 + $0xf58] sm:$0xff]
    %v546 = vld [vmem:[#allocation5 + $0xf60] sm:$0xff]
    %v547 = vld [vmem:[#allocation5 + $0xf68] sm:$0xff]
    %v548 = vld [vmem:[#allocation5 + $0xf70] sm:$0xff]
    %v549 = vld [vmem:[#allocation5 + $0xf78] sm:$0xff]
    %v550 = vld [vmem:[#allocation5 + $0xf80] sm:$0xff]
    %v551 = vld [vmem:[#allocation5 + $0xf88] sm:$0xff]
    %v552 = vld [vmem:[#allocation5 + $0xf90] sm:$0xff]
    %v553 = vld [vmem:[#allocation5 + $0xf98] sm:$0xff]
    %v554 = vld [vmem:[#allocation5 + $0xfa0] sm:$0xff]
    %v555 = vld [vmem:[#allocation5 + $0xfa8] sm:$0xff]
    %v556 = vld [vmem:[#allocation5 + $0xfb0] sm:$0xff]
    %v557 = vld [vmem:[#allocation5 + $0xfb8] sm:$0xff]
    %v558 = vld [vmem:[#allocation5 + $0xfc0] sm:$0xff]
    %v559 = vld [vmem:[#allocation5 + $0xfc8] sm:$0xff]
    %v560 = vld [vmem:[#allocation5 + $0xfd0] sm:$0xff]
    %v561 = vld [vmem:[#allocation5 + $0xfd8] sm:$0xff]
    %v562 = vld [vmem:[#allocation5 + $0xfe0] sm:$0xff]
    %v563 = vld [vmem:[#allocation5 + $0xfe8] sm:$0xff]
    %v564 = vld [vmem:[#allocation5 + $0xff0] sm:$0xff]
    %v565 = vld [vmem:[#allocation5 + $0xff8] sm:$0xff]
    %v566 = vld [vmem:[#allocation5 + $0x1000] sm:$0xff]
    %v567 = vld [vmem:[#allocation5 + $0x1008] sm:$0xff]
    %v568 = vld [vmem:[#allocation5 + $0x1010] sm:$0xff]
    %v569 = vld [vmem:[#allocation5 + $0x1018] sm:$0xff]
    %v570 = vld [vmem:[#allocation5 + $0x1020] sm:$0xff]
    %v571 = vld [vmem:[#allocation5 + $0x1028] sm:$0xff]
    %v572 = vld [vmem:[#allocation5 + $0x1030] sm:$0xff]
    %v573 = vld [vmem:[#allocation5 + $0x1038] sm:$0xff]
    %v574 = vld [vmem:[#allocation5 + $0x1040] sm:$0xff]
    %v575 = vld [vmem:[#allocation5 + $0x1048] sm:$0xff]
    %v576 = vld [vmem:[#allocation5 + $0x1050] sm:$0xff]
    %v577 = vld [vmem:[#allocation5 + $0x1058] sm:$0xff]
    %v578 = vld [vmem:[#allocation5 + $0x1060] sm:$0xff]
    %v579 = vld [vmem:[#allocation5 + $0x1068] sm:$0xff]
    %v580 = vld [vmem:[#allocation5 + $0x1070] sm:$0xff]
    %v581 = vld [vmem:[#allocation5 + $0x1078] sm:$0xff]
    %v582 = vld [vmem:[#allocation5 + $0x1080] sm:$0xff]
    %v583 = vld [vmem:[#allocation5 + $0x1088] sm:$0xff]
    %v584 = vld [vmem:[#allocation5 + $0x1090] sm:$0xff]
    %v585 = vld [vmem:[#allocation5 + $0x1098] sm:$0xff]
    %v586 = vld [vmem:[#allocation5 + $0x10a0] sm:$0xff]
    %v587 = vld [vmem:[#allocation5 + $0x10a8] sm:$0xff]
    %v588 = vld [vmem:[#allocation5 + $0x10b0] sm:$0xff]
    %v589 = vld [vmem:[#allocation5 + $0x10b8] sm:$0xff]
    %v590 = vld [vmem:[#allocation5 + $0x10c0] sm:$0xff]
    %v591 = vld [vmem:[#allocation5 + $0x10c8] sm:$0xff]
    %v592 = vld [vmem:[#allocation5 + $0x10d0] sm:$0xff]
    %v593 = vld [vmem:[#allocation5 + $0x10d8] sm:$0xff]
    %v594 = vld [vmem:[#allocation5 + $0x10e0] sm:$0xff]
    %v595 = vld [vmem:[#allocation5 + $0x10e8] sm:$0xff]
    %v596 = vld [vmem:[#allocation5 + $0x10f0] sm:$0xff]
    %v597 = vld [vmem:[#allocation5 + $0x10f8] sm:$0xff]
    %v598 = vld [vmem:[#allocation5 + $0x1100] sm:$0xff]
    %v599 = vld [vmem:[#allocation5 + $0x1108] sm:$0xff]
    %v600 = vld [vmem:[#allocation5 + $0x1110] sm:$0xff]
    %v601 = vld [vmem:[#allocation5 + $0x1118] sm:$0xff]
    %v602 = vld [vmem:[#allocation5 + $0x1120] sm:$0xff]
    %v603 = vld [vmem:[#allocation5 + $0x1128] sm:$0xff]
    %v604 = vld [vmem:[#allocation5 + $0x1130] sm:$0xff]
    %v605 = vld [vmem:[#allocation5 + $0x1138] sm:$0xff]
    %v606 = vld [vmem:[#allocation5 + $0x1140] sm:$0xff]
    %v607 = vld [vmem:[#allocation5 + $0x1148] sm:$0xff]
    %v608 = vld [vmem:[#allocation5 + $0x1150] sm:$0xff]
    %v609 = vld [vmem:[#allocation5 + $0x1158] sm:$0xff]
    %v610 = vld [vmem:[#allocation5 + $0x1160] sm:$0xff]
    %v611 = vld [vmem:[#allocation5 + $0x1168] sm:$0xff]
    %v612 = vld [vmem:[#allocation5 + $0x1170] sm:$0xff]
    %v613 = vld [vmem:[#allocation5 + $0x1178] sm:$0xff]
    %v614 = vld [vmem:[#allocation5 + $0x1180] sm:$0xff]
    %v615 = vld [vmem:[#allocation5 + $0x1188] sm:$0xff]
    %v616 = vld [vmem:[#allocation5 + $0x1190] sm:$0xff]
    %v617 = vld [vmem:[#allocation5 + $0x1198] sm:$0xff]
    %v618 = vld [vmem:[#allocation5 + $0x11a0] sm:$0xff]
    %v619 = vld [vmem:[#allocation5 + $0x11a8] sm:$0xff]
    %v620 = vld [vmem:[#allocation5 + $0x11b0] sm:$0xff]
    %v621 = vld [vmem:[#allocation5 + $0x11b8] sm:$0xff]
    %v622 = vld [vmem:[#allocation5 + $0x11c0] sm:$0xff]
    %v623 = vld [vmem:[#allocation5 + $0x11c8] sm:$0xff]
    %v624 = vld [vmem:[#allocation5 + $0x11d0] sm:$0xff]
    %v625 = vld [vmem:[#allocation5 + $0x11d8] sm:$0xff]
    %v626 = vld [vmem:[#allocation5 + $0x11e0] sm:$0xff]
    %v627 = vld [vmem:[#allocation5 + $0x11e8] sm:$0xff]
    %v628 = vld [vmem:[#allocation5 + $0x11f0] sm:$0xff]
    %v629 = vld [vmem:[#allocation5 + $0x11f8] sm:$0xff]
    %v630 = vld [vmem:[#allocation5 + $0x1200] sm:$0xff]
    %v631 = vld [vmem:[#allocation5 + $0x1208] sm:$0xff]
    %v632 = vld [vmem:[#allocation5 + $0x1210] sm:$0xff]
    %v633 = vld [vmem:[#allocation5 + $0x1218] sm:$0xff]
    %v634 = vld [vmem:[#allocation5 + $0x1220] sm:$0xff]
    %v635 = vld [vmem:[#allocation5 + $0x1228] sm:$0xff]
    %v636 = vld [vmem:[#allocation5 + $0x1230] sm:$0xff]
    %v637 = vld [vmem:[#allocation5 + $0x1238] sm:$0xff]
    %v638 = vld [vmem:[#allocation5 + $0x1240] sm:$0xff]
    %v639 = vld [vmem:[#allocation5 + $0x1248] sm:$0xff]
    %v640 = vld [vmem:[#allocation5 + $0x1250] sm:$0xff]
    %v641 = vld [vmem:[#allocation5 + $0x1258] sm:$0xff]
    %v642 = vld [vmem:[#allocation5 + $0x1260] sm:$0xff]
    %v643 = vld [vmem:[#allocation5 + $0x1268] sm:$0xff]
    %v644 = vld [vmem:[#allocation5 + $0x1270] sm:$0xff]
    %v645 = vld [vmem:[#allocation5 + $0x1278] sm:$0xff]
    %v646 = vld [vmem:[#allocation5 + $0x1280] sm:$0xff]
    %v647 = vld [vmem:[#allocation5 + $0x1288] sm:$0xff]
    %v648 = vld [vmem:[#allocation5 + $0x1290] sm:$0xff]
    %v649 = vld [vmem:[#allocation5 + $0x1298] sm:$0xff]
    %v650 = vld [vmem:[#allocation5 + $0x12a0] sm:$0xff]
    %v651 = vld [vmem:[#allocation5 + $0x12a8] sm:$0xff]
    %v652 = vld [vmem:[#allocation5 + $0x12b0] sm:$0xff]
    %v653 = vld [vmem:[#allocation5 + $0x12b8] sm:$0xff]
    %v654 = vld [vmem:[#allocation5 + $0x12c0] sm:$0xff]
    %v655 = vld [vmem:[#allocation5 + $0x12c8] sm:$0xff]
    %v656 = vld [vmem:[#allocation5 + $0x12d0] sm:$0xff]
    %v657 = vld [vmem:[#allocation5 + $0x12d8] sm:$0xff]
    %v658 = vld [vmem:[#allocation5 + $0x12e0] sm:$0xff]
    %v659 = vld [vmem:[#allocation5 + $0x12e8] sm:$0xff]
    %v660 = vld [vmem:[#allocation5 + $0x12f0] sm:$0xff]
    %v661 = vld [vmem:[#allocation5 + $0x12f8] sm:$0xff]
    %v662 = vld [vmem:[#allocation5 + $0x1300] sm:$0xff]
    %v663 = vld [vmem:[#allocation5 + $0x1308] sm:$0xff]
    %v664 = vld [vmem:[#allocation5 + $0x1310] sm:$0xff]
    %v665 = vld [vmem:[#allocation5 + $0x1318] sm:$0xff]
    %v666 = vld [vmem:[#allocation5 + $0x1320] sm:$0xff]
    %v667 = vld [vmem:[#allocation5 + $0x1328] sm:$0xff]
    %v668 = vld [vmem:[#allocation5 + $0x1330] sm:$0xff]
    %v669 = vld [vmem:[#allocation5 + $0x1338] sm:$0xff]
    %v670 = vld [vmem:[#allocation5 + $0x1340] sm:$0xff]
    %v671 = vld [vmem:[#allocation5 + $0x1348] sm:$0xff]
    %v672 = vld [vmem:[#allocation5 + $0x1350] sm:$0xff]
    %v673 = vld [vmem:[#allocation5 + $0x1358] sm:$0xff]
    %v674 = vld [vmem:[#allocation5 + $0x1360] sm:$0xff]
    %v675 = vld [vmem:[#allocation5 + $0x1368] sm:$0xff]
    %v676 = vld [vmem:[#allocation5 + $0x1370] sm:$0xff]
    %v677 = vld [vmem:[#allocation5 + $0x1378] sm:$0xff]
    %v678 = vld [vmem:[#allocation5 + $0x1380] sm:$0xff]
    %v679 = vld [vmem:[#allocation5 + $0x1388] sm:$0xff]
    %v680 = vld [vmem:[#allocation5 + $0x1390] sm:$0xff]
    %v681 = vld [vmem:[#allocation5 + $0x1398] sm:$0xff]
    %v682 = vld [vmem:[#allocation5 + $0x13a0] sm:$0xff]
    %v683 = vld [vmem:[#allocation5 + $0x13a8] sm:$0xff]
    %v684 = vld [vmem:[#allocation5 + $0x13b0] sm:$0xff]
    %v685 = vld [vmem:[#allocation5 + $0x13b8] sm:$0xff]
    %v686 = vld [vmem:[#allocation5 + $0x13c0] sm:$0xff]
    %v687 = vld [vmem:[#allocation5 + $0x13c8] sm:$0xff]
    %v688 = vld [vmem:[#allocation5 + $0x13d0] sm:$0xff]
    %v689 = vld [vmem:[#allocation5 + $0x13d8] sm:$0xff]
    %v690 = vld [vmem:[#allocation5 + $0x13e0] sm:$0xff]
    %v691 = vld [vmem:[#allocation5 + $0x13e8] sm:$0xff]
    %v692 = vld [vmem:[#allocation5 + $0x13f0] sm:$0xff]
    %v693 = vld [vmem:[#allocation5 + $0x13f8] sm:$0xff]
    %v694 = vld [vmem:[#allocation5 + $0x1400] sm:$0xff]
    %v695 = vld [vmem:[#allocation5 + $0x1408] sm:$0xff]
    %v696 = vld [vmem:[#allocation5 + $0x1410] sm:$0xff]
    %v697 = vld [vmem:[#allocation5 + $0x1418] sm:$0xff]
    %v698 = vld [vmem:[#allocation5 + $0x1420] sm:$0xff]
    %v699 = vld [vmem:[#allocation5 + $0x1428] sm:$0xff]
    %v700 = vld [vmem:[#allocation5 + $0x1430] sm:$0xff]
    %v701 = vld [vmem:[#allocation5 + $0x1438] sm:$0xff]
    %v702 = vld [vmem:[#allocation5 + $0x1440] sm:$0xff]
    %v703 = vld [vmem:[#allocation5 + $0x1448] sm:$0xff]
    %v704 = vld [vmem:[#allocation5 + $0x1450] sm:$0xff]
    %v705 = vld [vmem:[#allocation5 + $0x1458] sm:$0xff]
    %v706 = vld [vmem:[#allocation5 + $0x1460] sm:$0xff]
    %v707 = vld [vmem:[#allocation5 + $0x1468] sm:$0xff]
    %v708 = vld [vmem:[#allocation5 + $0x1470] sm:$0xff]
    %v709 = vld [vmem:[#allocation5 + $0x1478] sm:$0xff]
    %v710 = vld [vmem:[#allocation5 + $0x1480] sm:$0xff]
    %v711 = vld [vmem:[#allocation5 + $0x1488] sm:$0xff]
    %v712 = vld [vmem:[#allocation5 + $0x1490] sm:$0xff]
    %v713 = vld [vmem:[#allocation5 + $0x1498] sm:$0xff]
    %v714 = vld [vmem:[#allocation5 + $0x14a0] sm:$0xff]
    %v715 = vld [vmem:[#allocation5 + $0x14a8] sm:$0xff]
    %v716 = vld [vmem:[#allocation5 + $0x14b0] sm:$0xff]
    %v717 = vld [vmem:[#allocation5 + $0x14b8] sm:$0xff]
    %v718 = vld [vmem:[#allocation5 + $0x14c0] sm:$0xff]
    %v719 = vld [vmem:[#allocation5 + $0x14c8] sm:$0xff]
    %v720 = vld [vmem:[#allocation5 + $0x14d0] sm:$0xff]
    %v721 = vld [vmem:[#allocation5 + $0x14d8] sm:$0xff]
    %v722 = vld [vmem:[#allocation5 + $0x14e0] sm:$0xff]
    %v723 = vld [vmem:[#allocation5 + $0x14e8] sm:$0xff]
    %v724 = vld [vmem:[#allocation5 + $0x14f0] sm:$0xff]
    %v725 = vld [vmem:[#allocation5 + $0x14f8] sm:$0xff]
    %v726 = vld [vmem:[#allocation5 + $0x1500] sm:$0xff]
    %v727 = vld [vmem:[#allocation5 + $0x1508] sm:$0xff]
    %v728 = vld [vmem:[#allocation5 + $0x1510] sm:$0xff]
    %v729 = vld [vmem:[#allocation5 + $0x1518] sm:$0xff]
    %v730 = vld [vmem:[#allocation5 + $0x1520] sm:$0xff]
    %v731 = vld [vmem:[#allocation5 + $0x1528] sm:$0xff]
    %v732 = vld [vmem:[#allocation5 + $0x1530] sm:$0xff]
    %v733 = vld [vmem:[#allocation5 + $0x1538] sm:$0xff]
    %v734 = vld [vmem:[#allocation5 + $0x1540] sm:$0xff]
    %v735 = vld [vmem:[#allocation5 + $0x1548] sm:$0xff]
    %v736 = vld [vmem:[#allocation5 + $0x1550] sm:$0xff]
    %v737 = vld [vmem:[#allocation5 + $0x1558] sm:$0xff]
    %v738 = vld [vmem:[#allocation5 + $0x1560] sm:$0xff]
    %v739 = vld [vmem:[#allocation5 + $0x1568] sm:$0xff]
    %v740 = vld [vmem:[#allocation5 + $0x1570] sm:$0xff]
    %v741 = vld [vmem:[#allocation5 + $0x1578] sm:$0xff]
    %v742 = vld [vmem:[#allocation5 + $0x1580] sm:$0xff]
    %v743 = vld [vmem:[#allocation5 + $0x1588] sm:$0xff]
    %v744 = vld [vmem:[#allocation5 + $0x1590] sm:$0xff]
    %v745 = vld [vmem:[#allocation5 + $0x1598] sm:$0xff]
    %v746 = vld [vmem:[#allocation5 + $0x15a0] sm:$0xff]
    %v747 = vld [vmem:[#allocation5 + $0x15a8] sm:$0xff]
    %v748 = vld [vmem:[#allocation5 + $0x15b0] sm:$0xff]
    %v749 = vld [vmem:[#allocation5 + $0x15b8] sm:$0xff]
    %v750 = vld [vmem:[#allocation5 + $0x15c0] sm:$0xff]
    %v751 = vld [vmem:[#allocation5 + $0x15c8] sm:$0xff]
    %v752 = vld [vmem:[#allocation5 + $0x15d0] sm:$0xff]
    %v753 = vld [vmem:[#allocation5 + $0x15d8] sm:$0xff]
    %v754 = vld [vmem:[#allocation5 + $0x15e0] sm:$0xff]
    %v755 = vld [vmem:[#allocation5 + $0x15e8] sm:$0xff]
    %v756 = vld [vmem:[#allocation5 + $0x15f0] sm:$0xff]
    %v757 = vld [vmem:[#allocation5 + $0x15f8] sm:$0xff]
    %v758 = vld [vmem:[#allocation5 + $0x1600] sm:$0xff]
    %v759 = vld [vmem:[#allocation5 + $0x1608] sm:$0xff]
    %v760 = vld [vmem:[#allocation5 + $0x1610] sm:$0xff]
    %v761 = vld [vmem:[#allocation5 + $0x1618] sm:$0xff]
    %v762 = vld [vmem:[#allocation5 + $0x1620] sm:$0xff]
    %v763 = vld [vmem:[#allocation5 + $0x1628] sm:$0xff]
    %v764 = vld [vmem:[#allocation5 + $0x1630] sm:$0xff]
    %v765 = vld [vmem:[#allocation5 + $0x1638] sm:$0xff]
    %v766 = vld [vmem:[#allocation5 + $0x1640] sm:$0xff]
    %v767 = vld [vmem:[#allocation5 + $0x1648] sm:$0xff]
    %v768 = vld [vmem:[#allocation5 + $0x1650] sm:$0xff]
    %v769 = vld [vmem:[#allocation5 + $0x1658] sm:$0xff]
    %v770 = vld [vmem:[#allocation5 + $0x1660] sm:$0xff]
    %v771 = vld [vmem:[#allocation5 + $0x1668] sm:$0xff]
    %v772 = vld [vmem:[#allocation5 + $0x1670] sm:$0xff]
    %v773 = vld [vmem:[#allocation5 + $0x1678] sm:$0xff]
    %v774 = vld [vmem:[#allocation5 + $0x1680] sm:$0xff]
    %v775 = vld [vmem:[#allocation5 + $0x1688] sm:$0xff]
    %v776 = vld [vmem:[#allocation5 + $0x1690] sm:$0xff]
    %v777 = vld [vmem:[#allocation5 + $0x1698] sm:$0xff]
    %v778 = vld [vmem:[#allocation5 + $0x16a0] sm:$0xff]
    %v779 = vld [vmem:[#allocation5 + $0x16a8] sm:$0xff]
    %v780 = vld [vmem:[#allocation5 + $0x16b0] sm:$0xff]
    %v781 = vld [vmem:[#allocation5 + $0x16b8] sm:$0xff]
    %v782 = vld [vmem:[#allocation5 + $0x16c0] sm:$0xff]
    %v783 = vld [vmem:[#allocation5 + $0x16c8] sm:$0xff]
    %v784 = vld [vmem:[#allocation5 + $0x16d0] sm:$0xff]
    %v785 = vld [vmem:[#allocation5 + $0x16d8] sm:$0xff]
    %v786 = vld [vmem:[#allocation5 + $0x16e0] sm:$0xff]
    %v787 = vld [vmem:[#allocation5 + $0x16e8] sm:$0xff]
    %v788 = vld [vmem:[#allocation5 + $0x16f0] sm:$0xff]
    %v789 = vld [vmem:[#allocation5 + $0x16f8] sm:$0xff]
    %v790 = vld [vmem:[#allocation5 + $0x1700] sm:$0xff]
    %v791 = vld [vmem:[#allocation5 + $0x1708] sm:$0xff]
    %v792 = vld [vmem:[#allocation5 + $0x1710] sm:$0xff]
    %v793 = vld [vmem:[#allocation5 + $0x1718] sm:$0xff]
    %v794 = vld [vmem:[#allocation5 + $0x1720] sm:$0xff]
    %v795 = vld [vmem:[#allocation5 + $0x1728] sm:$0xff]
    %v796 = vld [vmem:[#allocation5 + $0x1730] sm:$0xff]
    %v797 = vld [vmem:[#allocation5 + $0x1738] sm:$0xff]
    %v798 = vld [vmem:[#allocation5 + $0x1740] sm:$0xff]
    %v799 = vld [vmem:[#allocation5 + $0x1748] sm:$0xff]
    %v800 = vld [vmem:[#allocation5 + $0x1750] sm:$0xff]
    %v801 = vld [vmem:[#allocation5 + $0x1758] sm:$0xff]
    %v802 = vld [vmem:[#allocation5 + $0x1760] sm:$0xff]
    %v803 = vld [vmem:[#allocation5 + $0x1768] sm:$0xff]
    %v804 = vld [vmem:[#allocation5 + $0x1770] sm:$0xff]
    %v805 = vld [vmem:[#allocation5 + $0x1778] sm:$0xff]
    %v806 = vld [vmem:[#allocation5 + $0x1780] sm:$0xff]
    %v807 = vld [vmem:[#allocation5 + $0x1788] sm:$0xff]
    %v808 = vld [vmem:[#allocation5 + $0x1790] sm:$0xff]
    %v809 = vld [vmem:[#allocation5 + $0x1798] sm:$0xff]
    %v810 = vld [vmem:[#allocation5 + $0x17a0] sm:$0xff]
    %v811 = vld [vmem:[#allocation5 + $0x17a8] sm:$0xff]
    %v812 = vld [vmem:[#allocation5 + $0x17b0] sm:$0xff]
    %v813 = vld [vmem:[#allocation5 + $0x17b8] sm:$0xff]
    %v814 = vld [vmem:[#allocation5 + $0x17c0] sm:$0xff]
    %v815 = vld [vmem:[#allocation5 + $0x17c8] sm:$0xff]
    %v816 = vld [vmem:[#allocation5 + $0x17d0] sm:$0xff]
    %v817 = vld [vmem:[#allocation5 + $0x17d8] sm:$0xff]
    %v818 = vld [vmem:[#allocation5 + $0x17e0] sm:$0xff]
    %v819 = vld [vmem:[#allocation5 + $0x17e8] sm:$0xff]
    %v820 = vld [vmem:[#allocation5 + $0x17f0] sm:$0xff]
    %v821 = vld [vmem:[#allocation5 + $0x17f8] sm:$0xff]
    %v824 = vunpack.c.l.s4 1966171168
    %v825 = vunpack.c.0.s8 %v824
    %v826 = vlaneseq
    %v827 = vshrl.u32 %v826, 7
    %v828 = vsub.s32 %v825, %v827
    %v829 = vrot.slane %v53, %v828
    %v830 = vcombine.high %v829, %v829
    %v832 = vunpack.c.l.s4 1966171168
    %v833 = vunpack.c.0.s8 %v832
    %v834 = vlaneseq
    %v835 = vshrl.u32 %v834, 7
    %v836 = vsub.s32 %v833, %v835
    %v837 = vrot.slane %v829, %v836
    %v839 = vunpack.c.l.s4 1966171168
    %v840 = vunpack.c.0.s8 %v839
    %v841 = vlaneseq
    %v842 = vshrl.u32 %v841, 7
    %v843 = vsub.s32 %v840, %v842
    %v844 = vrot.slane %v830, %v843
    %v845 = vcombine.high %v837, %v837
    %v1617 = vunpack.c.l.b16 %v54
    %v1618 = vunpack.c.h.b16 %v54
    %v1619 = vunpack.c.l.b16 %v55
    %v1620 = vunpack.c.h.b16 %v55
    %v1621 = vunpack.c.l.b16 %v56
    %v1622 = vunpack.c.h.b16 %v56
    %v1623 = vunpack.c.l.b16 %v57
    %v1624 = vunpack.c.h.b16 %v57
    %v1625 = vunpack.c.l.b16 %v58
    %v1626 = vunpack.c.h.b16 %v58
    %v1627 = vunpack.c.l.b16 %v59
    %v1628 = vunpack.c.h.b16 %v59
    %v1629 = vunpack.c.l.b16 %v60
    %v1630 = vunpack.c.h.b16 %v60
    %v1631 = vunpack.c.l.b16 %v61
    %v1632 = vunpack.c.h.b16 %v61
    %v1633 = vunpack.c.l.b16 %v62
    %v1634 = vunpack.c.h.b16 %v62
    %v1635 = vunpack.c.l.b16 %v63
    %v1636 = vunpack.c.h.b16 %v63
    %v1637 = vunpack.c.l.b16 %v64
    %v1638 = vunpack.c.h.b16 %v64
    %v1639 = vunpack.c.l.b16 %v65
    %v1640 = vunpack.c.h.b16 %v65
    %v1641 = vunpack.c.l.b16 %v66
    %v1642 = vunpack.c.h.b16 %v66
    %v1643 = vunpack.c.l.b16 %v67
    %v1644 = vunpack.c.h.b16 %v67
    %v1645 = vunpack.c.l.b16 %v68
    %v1646 = vunpack.c.h.b16 %v68
    %v1647 = vunpack.c.l.b16 %v69
    %v1648 = vunpack.c.h.b16 %v69
    %v1649 = vunpack.c.l.b16 %v70
    %v1650 = vunpack.c.h.b16 %v70
    %v1651 = vunpack.c.l.b16 %v71
    %v1652 = vunpack.c.h.b16 %v71
    %v1653 = vunpack.c.l.b16 %v72
    %v1654 = vunpack.c.h.b16 %v72
    %v1655 = vunpack.c.l.b16 %v73
    %v1656 = vunpack.c.h.b16 %v73
    %v1657 = vunpack.c.l.b16 %v74
    %v1658 = vunpack.c.h.b16 %v74
    %v1659 = vunpack.c.l.b16 %v75
    %v1660 = vunpack.c.h.b16 %v75
    %v1661 = vunpack.c.l.b16 %v76
    %v1662 = vunpack.c.h.b16 %v76
    %v1663 = vunpack.c.l.b16 %v77
    %v1664 = vunpack.c.h.b16 %v77
    %v1665 = vunpack.c.l.b16 %v78
    %v1666 = vunpack.c.h.b16 %v78
    %v1667 = vunpack.c.l.b16 %v79
    %v1668 = vunpack.c.h.b16 %v79
    %v1669 = vunpack.c.l.b16 %v80
    %v1670 = vunpack.c.h.b16 %v80
    %v1671 = vunpack.c.l.b16 %v81
    %v1672 = vunpack.c.h.b16 %v81
    %v1673 = vunpack.c.l.b16 %v82
    %v1674 = vunpack.c.h.b16 %v82
    %v1675 = vunpack.c.l.b16 %v83
    %v1676 = vunpack.c.h.b16 %v83
    %v1677 = vunpack.c.l.b16 %v84
    %v1678 = vunpack.c.h.b16 %v84
    %v1679 = vunpack.c.l.b16 %v85
    %v1680 = vunpack.c.h.b16 %v85
    %v1681 = vunpack.c.l.b16 %v86
    %v1682 = vunpack.c.h.b16 %v86
    %v1683 = vunpack.c.l.b16 %v87
    %v1684 = vunpack.c.h.b16 %v87
    %v1685 = vunpack.c.l.b16 %v88
    %v1686 = vunpack.c.h.b16 %v88
    %v1687 = vunpack.c.l.b16 %v89
    %v1688 = vunpack.c.h.b16 %v89
    %v1689 = vunpack.c.l.b16 %v90
    %v1690 = vunpack.c.h.b16 %v90
    %v1691 = vunpack.c.l.b16 %v91
    %v1692 = vunpack.c.h.b16 %v91
    %v1693 = vunpack.c.l.b16 %v92
    %v1694 = vunpack.c.h.b16 %v92
    %v1695 = vunpack.c.l.b16 %v93
    %v1696 = vunpack.c.h.b16 %v93
    %v1697 = vunpack.c.l.b16 %v94
    %v1698 = vunpack.c.h.b16 %v94
    %v1699 = vunpack.c.l.b16 %v95
    %v1700 = vunpack.c.h.b16 %v95
    %v1701 = vunpack.c.l.b16 %v96
    %v1702 = vunpack.c.h.b16 %v96
    %v1703 = vunpack.c.l.b16 %v97
    %v1704 = vunpack.c.h.b16 %v97
    %v1705 = vunpack.c.l.b16 %v98
    %v1706 = vunpack.c.h.b16 %v98
    %v1707 = vunpack.c.l.b16 %v99
    %v1708 = vunpack.c.h.b16 %v99
    %v1709 = vunpack.c.l.b16 %v100
    %v1710 = vunpack.c.h.b16 %v100
    %v1711 = vunpack.c.l.b16 %v101
    %v1712 = vunpack.c.h.b16 %v101
    %v1713 = vunpack.c.l.b16 %v102
    %v1714 = vunpack.c.h.b16 %v102
    %v1715 = vunpack.c.l.b16 %v103
    %v1716 = vunpack.c.h.b16 %v103
    %v1717 = vunpack.c.l.b16 %v104
    %v1718 = vunpack.c.h.b16 %v104
    %v1719 = vunpack.c.l.b16 %v105
    %v1720 = vunpack.c.h.b16 %v105
    %v1721 = vunpack.c.l.b16 %v106
    %v1722 = vunpack.c.h.b16 %v106
    %v1723 = vunpack.c.l.b16 %v107
    %v1724 = vunpack.c.h.b16 %v107
    %v1725 = vunpack.c.l.b16 %v108
    %v1726 = vunpack.c.h.b16 %v108
    %v1727 = vunpack.c.l.b16 %v109
    %v1728 = vunpack.c.h.b16 %v109
    %v1729 = vunpack.c.l.b16 %v110
    %v1730 = vunpack.c.h.b16 %v110
    %v1731 = vunpack.c.l.b16 %v111
    %v1732 = vunpack.c.h.b16 %v111
    %v1733 = vunpack.c.l.b16 %v112
    %v1734 = vunpack.c.h.b16 %v112
    %v1735 = vunpack.c.l.b16 %v113
    %v1736 = vunpack.c.h.b16 %v113
    %v1737 = vunpack.c.l.b16 %v114
    %v1738 = vunpack.c.h.b16 %v114
    %v1739 = vunpack.c.l.b16 %v115
    %v1740 = vunpack.c.h.b16 %v115
    %v1741 = vunpack.c.l.b16 %v116
    %v1742 = vunpack.c.h.b16 %v116
    %v1743 = vunpack.c.l.b16 %v117
    %v1744 = vunpack.c.h.b16 %v117
    %v1745 = vunpack.c.l.b16 %v118
    %v1746 = vunpack.c.h.b16 %v118
    %v1747 = vunpack.c.l.b16 %v119
    %v1748 = vunpack.c.h.b16 %v119
    %v1749 = vunpack.c.l.b16 %v120
    %v1750 = vunpack.c.h.b16 %v120
    %v1751 = vunpack.c.l.b16 %v121
    %v1752 = vunpack.c.h.b16 %v121
    %v1753 = vunpack.c.l.b16 %v122
    %v1754 = vunpack.c.h.b16 %v122
    %v1755 = vunpack.c.l.b16 %v123
    %v1756 = vunpack.c.h.b16 %v123
    %v1757 = vunpack.c.l.b16 %v124
    %v1758 = vunpack.c.h.b16 %v124
    %v1759 = vunpack.c.l.b16 %v125
    %v1760 = vunpack.c.h.b16 %v125
    %v1761 = vunpack.c.l.b16 %v126
    %v1762 = vunpack.c.h.b16 %v126
    %v1763 = vunpack.c.l.b16 %v127
    %v1764 = vunpack.c.h.b16 %v127
    %v1765 = vunpack.c.l.b16 %v128
    %v1766 = vunpack.c.h.b16 %v128
    %v1767 = vunpack.c.l.b16 %v129
    %v1768 = vunpack.c.h.b16 %v129
    %v1769 = vunpack.c.l.b16 %v130
    %v1770 = vunpack.c.h.b16 %v130
    %v1771 = vunpack.c.l.b16 %v131
    %v1772 = vunpack.c.h.b16 %v131
    %v1773 = vunpack.c.l.b16 %v132
    %v1774 = vunpack.c.h.b16 %v132
    %v1775 = vunpack.c.l.b16 %v133
    %v1776 = vunpack.c.h.b16 %v133
    %v1777 = vunpack.c.l.b16 %v134
    %v1778 = vunpack.c.h.b16 %v134
    %v1779 = vunpack.c.l.b16 %v135
    %v1780 = vunpack.c.h.b16 %v135
    %v1781 = vunpack.c.l.b16 %v136
    %v1782 = vunpack.c.h.b16 %v136
    %v1783 = vunpack.c.l.b16 %v137
    %v1784 = vunpack.c.h.b16 %v137
    %v1785 = vunpack.c.l.b16 %v138
    %v1786 = vunpack.c.h.b16 %v138
    %v1787 = vunpack.c.l.b16 %v139
    %v1788 = vunpack.c.h.b16 %v139
    %v1789 = vunpack.c.l.b16 %v140
    %v1790 = vunpack.c.h.b16 %v140
    %v1791 = vunpack.c.l.b16 %v141
    %v1792 = vunpack.c.h.b16 %v141
    %v1793 = vunpack.c.l.b16 %v142
    %v1794 = vunpack.c.h.b16 %v142
    %v1795 = vunpack.c.l.b16 %v143
    %v1796 = vunpack.c.h.b16 %v143
    %v1797 = vunpack.c.l.b16 %v144
    %v1798 = vunpack.c.h.b16 %v144
    %v1799 = vunpack.c.l.b16 %v145
    %v1800 = vunpack.c.h.b16 %v145
    %v1801 = vunpack.c.l.b16 %v146
    %v1802 = vunpack.c.h.b16 %v146
    %v1803 = vunpack.c.l.b16 %v147
    %v1804 = vunpack.c.h.b16 %v147
    %v1805 = vunpack.c.l.b16 %v148
    %v1806 = vunpack.c.h.b16 %v148
    %v1807 = vunpack.c.l.b16 %v149
    %v1808 = vunpack.c.h.b16 %v149
    %v1809 = vunpack.c.l.b16 %v150
    %v1810 = vunpack.c.h.b16 %v150
    %v1811 = vunpack.c.l.b16 %v151
    %v1812 = vunpack.c.h.b16 %v151
    %v1813 = vunpack.c.l.b16 %v152
    %v1814 = vunpack.c.h.b16 %v152
    %v1815 = vunpack.c.l.b16 %v153
    %v1816 = vunpack.c.h.b16 %v153
    %v1817 = vunpack.c.l.b16 %v154
    %v1818 = vunpack.c.h.b16 %v154
    %v1819 = vunpack.c.l.b16 %v155
    %v1820 = vunpack.c.h.b16 %v155
    %v1821 = vunpack.c.l.b16 %v156
    %v1822 = vunpack.c.h.b16 %v156
    %v1823 = vunpack.c.l.b16 %v157
    %v1824 = vunpack.c.h.b16 %v157
    %v1825 = vunpack.c.l.b16 %v158
    %v1826 = vunpack.c.h.b16 %v158
    %v1827 = vunpack.c.l.b16 %v159
    %v1828 = vunpack.c.h.b16 %v159
    %v1829 = vunpack.c.l.b16 %v160
    %v1830 = vunpack.c.h.b16 %v160
    %v1831 = vunpack.c.l.b16 %v161
    %v1832 = vunpack.c.h.b16 %v161
    %v1833 = vunpack.c.l.b16 %v162
    %v1834 = vunpack.c.h.b16 %v162
    %v1835 = vunpack.c.l.b16 %v163
    %v1836 = vunpack.c.h.b16 %v163
    %v1837 = vunpack.c.l.b16 %v164
    %v1838 = vunpack.c.h.b16 %v164
    %v1839 = vunpack.c.l.b16 %v165
    %v1840 = vunpack.c.h.b16 %v165
    %v1841 = vunpack.c.l.b16 %v166
    %v1842 = vunpack.c.h.b16 %v166
    %v1843 = vunpack.c.l.b16 %v167
    %v1844 = vunpack.c.h.b16 %v167
    %v1845 = vunpack.c.l.b16 %v168
    %v1846 = vunpack.c.h.b16 %v168
    %v1847 = vunpack.c.l.b16 %v169
    %v1848 = vunpack.c.h.b16 %v169
    %v1849 = vunpack.c.l.b16 %v170
    %v1850 = vunpack.c.h.b16 %v170
    %v1851 = vunpack.c.l.b16 %v171
    %v1852 = vunpack.c.h.b16 %v171
    %v1853 = vunpack.c.l.b16 %v172
    %v1854 = vunpack.c.h.b16 %v172
    %v1855 = vunpack.c.l.b16 %v173
    %v1856 = vunpack.c.h.b16 %v173
    %v1857 = vunpack.c.l.b16 %v174
    %v1858 = vunpack.c.h.b16 %v174
    %v1859 = vunpack.c.l.b16 %v175
    %v1860 = vunpack.c.h.b16 %v175
    %v1861 = vunpack.c.l.b16 %v176
    %v1862 = vunpack.c.h.b16 %v176
    %v1863 = vunpack.c.l.b16 %v177
    %v1864 = vunpack.c.h.b16 %v177
    %v1865 = vunpack.c.l.b16 %v178
    %v1866 = vunpack.c.h.b16 %v178
    %v1867 = vunpack.c.l.b16 %v179
    %v1868 = vunpack.c.h.b16 %v179
    %v1869 = vunpack.c.l.b16 %v180
    %v1870 = vunpack.c.h.b16 %v180
    %v1871 = vunpack.c.l.b16 %v181
    %v1872 = vunpack.c.h.b16 %v181
    %v1873 = vunpack.c.l.b16 %v182
    %v1874 = vunpack.c.h.b16 %v182
    %v1875 = vunpack.c.l.b16 %v183
    %v1876 = vunpack.c.h.b16 %v183
    %v1877 = vunpack.c.l.b16 %v184
    %v1878 = vunpack.c.h.b16 %v184
    %v1879 = vunpack.c.l.b16 %v185
    %v1880 = vunpack.c.h.b16 %v185
    %v1881 = vunpack.c.l.b16 %v186
    %v1882 = vunpack.c.h.b16 %v186
    %v1883 = vunpack.c.l.b16 %v187
    %v1884 = vunpack.c.h.b16 %v187
    %v1885 = vunpack.c.l.b16 %v188
    %v1886 = vunpack.c.h.b16 %v188
    %v1887 = vunpack.c.l.b16 %v189
    %v1888 = vunpack.c.h.b16 %v189
    %v1889 = vunpack.c.l.b16 %v190
    %v1890 = vunpack.c.h.b16 %v190
    %v1891 = vunpack.c.l.b16 %v191
    %v1892 = vunpack.c.h.b16 %v191
    %v1893 = vunpack.c.l.b16 %v192
    %v1894 = vunpack.c.h.b16 %v192
    %v1895 = vunpack.c.l.b16 %v193
    %v1896 = vunpack.c.h.b16 %v193
    %v1897 = vunpack.c.l.b16 %v194
    %v1898 = vunpack.c.h.b16 %v194
    %v1899 = vunpack.c.l.b16 %v195
    %v1900 = vunpack.c.h.b16 %v195
    %v1901 = vunpack.c.l.b16 %v196
    %v1902 = vunpack.c.h.b16 %v196
    %v1903 = vunpack.c.l.b16 %v197
    %v1904 = vunpack.c.h.b16 %v197
    %v1905 = vunpack.c.l.b16 %v198
    %v1906 = vunpack.c.h.b16 %v198
    %v1907 = vunpack.c.l.b16 %v199
    %v1908 = vunpack.c.h.b16 %v199
    %v1909 = vunpack.c.l.b16 %v200
    %v1910 = vunpack.c.h.b16 %v200
    %v1911 = vunpack.c.l.b16 %v201
    %v1912 = vunpack.c.h.b16 %v201
    %v1913 = vunpack.c.l.b16 %v202
    %v1914 = vunpack.c.h.b16 %v202
    %v1915 = vunpack.c.l.b16 %v203
    %v1916 = vunpack.c.h.b16 %v203
    %v1917 = vunpack.c.l.b16 %v204
    %v1918 = vunpack.c.h.b16 %v204
    %v1919 = vunpack.c.l.b16 %v205
    %v1920 = vunpack.c.h.b16 %v205
    %v1921 = vunpack.c.l.b16 %v206
    %v1922 = vunpack.c.h.b16 %v206
    %v1923 = vunpack.c.l.b16 %v207
    %v1924 = vunpack.c.h.b16 %v207
    %v1925 = vunpack.c.l.b16 %v208
    %v1926 = vunpack.c.h.b16 %v208
    %v1927 = vunpack.c.l.b16 %v209
    %v1928 = vunpack.c.h.b16 %v209
    %v1929 = vunpack.c.l.b16 %v210
    %v1930 = vunpack.c.h.b16 %v210
    %v1931 = vunpack.c.l.b16 %v211
    %v1932 = vunpack.c.h.b16 %v211
    %v1933 = vunpack.c.l.b16 %v212
    %v1934 = vunpack.c.h.b16 %v212
    %v1935 = vunpack.c.l.b16 %v213
    %v1936 = vunpack.c.h.b16 %v213
    %v1937 = vunpack.c.l.b16 %v214
    %v1938 = vunpack.c.h.b16 %v214
    %v1939 = vunpack.c.l.b16 %v215
    %v1940 = vunpack.c.h.b16 %v215
    %v1941 = vunpack.c.l.b16 %v216
    %v1942 = vunpack.c.h.b16 %v216
    %v1943 = vunpack.c.l.b16 %v217
    %v1944 = vunpack.c.h.b16 %v217
    %v1945 = vunpack.c.l.b16 %v218
    %v1946 = vunpack.c.h.b16 %v218
    %v1947 = vunpack.c.l.b16 %v219
    %v1948 = vunpack.c.h.b16 %v219
    %v1949 = vunpack.c.l.b16 %v220
    %v1950 = vunpack.c.h.b16 %v220
    %v1951 = vunpack.c.l.b16 %v221
    %v1952 = vunpack.c.h.b16 %v221
    %v1953 = vunpack.c.l.b16 %v222
    %v1954 = vunpack.c.h.b16 %v222
    %v1955 = vunpack.c.l.b16 %v223
    %v1956 = vunpack.c.h.b16 %v223
    %v1957 = vunpack.c.l.b16 %v224
    %v1958 = vunpack.c.h.b16 %v224
    %v1959 = vunpack.c.l.b16 %v225
    %v1960 = vunpack.c.h.b16 %v225
    %v1961 = vunpack.c.l.b16 %v226
    %v1962 = vunpack.c.h.b16 %v226
    %v1963 = vunpack.c.l.b16 %v227
    %v1964 = vunpack.c.h.b16 %v227
    %v1965 = vunpack.c.l.b16 %v228
    %v1966 = vunpack.c.h.b16 %v228
    %v1967 = vunpack.c.l.b16 %v229
    %v1968 = vunpack.c.h.b16 %v229
    %v1969 = vunpack.c.l.b16 %v230
    %v1970 = vunpack.c.h.b16 %v230
    %v1971 = vunpack.c.l.b16 %v231
    %v1972 = vunpack.c.h.b16 %v231
    %v1973 = vunpack.c.l.b16 %v232
    %v1974 = vunpack.c.h.b16 %v232
    %v1975 = vunpack.c.l.b16 %v233
    %v1976 = vunpack.c.h.b16 %v233
    %v1977 = vunpack.c.l.b16 %v234
    %v1978 = vunpack.c.h.b16 %v234
    %v1979 = vunpack.c.l.b16 %v235
    %v1980 = vunpack.c.h.b16 %v235
    %v1981 = vunpack.c.l.b16 %v236
    %v1982 = vunpack.c.h.b16 %v236
    %v1983 = vunpack.c.l.b16 %v237
    %v1984 = vunpack.c.h.b16 %v237
    %v1985 = vunpack.c.l.b16 %v238
    %v1986 = vunpack.c.h.b16 %v238
    %v1987 = vunpack.c.l.b16 %v239
    %v1988 = vunpack.c.h.b16 %v239
    %v1989 = vunpack.c.l.b16 %v240
    %v1990 = vunpack.c.h.b16 %v240
    %v1991 = vunpack.c.l.b16 %v241
    %v1992 = vunpack.c.h.b16 %v241
    %v1993 = vunpack.c.l.b16 %v242
    %v1994 = vunpack.c.h.b16 %v242
    %v1995 = vunpack.c.l.b16 %v243
    %v1996 = vunpack.c.h.b16 %v243
    %v1997 = vunpack.c.l.b16 %v244
    %v1998 = vunpack.c.h.b16 %v244
    %v1999 = vunpack.c.l.b16 %v245
    %v2000 = vunpack.c.h.b16 %v245
    %v2001 = vunpack.c.l.b16 %v246
    %v2002 = vunpack.c.h.b16 %v246
    %v2003 = vunpack.c.l.b16 %v247
    %v2004 = vunpack.c.h.b16 %v247
    %v2005 = vunpack.c.l.b16 %v248
    %v2006 = vunpack.c.h.b16 %v248
    %v2007 = vunpack.c.l.b16 %v249
    %v2008 = vunpack.c.h.b16 %v249
    %v2009 = vunpack.c.l.b16 %v250
    %v2010 = vunpack.c.h.b16 %v250
    %v2011 = vunpack.c.l.b16 %v251
    %v2012 = vunpack.c.h.b16 %v251
    %v2013 = vunpack.c.l.b16 %v252
    %v2014 = vunpack.c.h.b16 %v252
    %v2015 = vunpack.c.l.b16 %v253
    %v2016 = vunpack.c.h.b16 %v253
    %v2017 = vunpack.c.l.b16 %v254
    %v2018 = vunpack.c.h.b16 %v254
    %v2019 = vunpack.c.l.b16 %v255
    %v2020 = vunpack.c.h.b16 %v255
    %v2021 = vunpack.c.l.b16 %v256
    %v2022 = vunpack.c.h.b16 %v256
    %v2023 = vunpack.c.l.b16 %v257
    %v2024 = vunpack.c.h.b16 %v257
    %v2025 = vunpack.c.l.b16 %v258
    %v2026 = vunpack.c.h.b16 %v258
    %v2027 = vunpack.c.l.b16 %v259
    %v2028 = vunpack.c.h.b16 %v259
    %v2029 = vunpack.c.l.b16 %v260
    %v2030 = vunpack.c.h.b16 %v260
    %v2031 = vunpack.c.l.b16 %v261
    %v2032 = vunpack.c.h.b16 %v261
    %v2033 = vunpack.c.l.b16 %v262
    %v2034 = vunpack.c.h.b16 %v262
    %v2035 = vunpack.c.l.b16 %v263
    %v2036 = vunpack.c.h.b16 %v263
    %v2037 = vunpack.c.l.b16 %v264
    %v2038 = vunpack.c.h.b16 %v264
    %v2039 = vunpack.c.l.b16 %v265
    %v2040 = vunpack.c.h.b16 %v265
    %v2041 = vunpack.c.l.b16 %v266
    %v2042 = vunpack.c.h.b16 %v266
    %v2043 = vunpack.c.l.b16 %v267
    %v2044 = vunpack.c.h.b16 %v267
    %v2045 = vunpack.c.l.b16 %v268
    %v2046 = vunpack.c.h.b16 %v268
    %v2047 = vunpack.c.l.b16 %v269
    %v2048 = vunpack.c.h.b16 %v269
    %v2049 = vunpack.c.l.b16 %v270
    %v2050 = vunpack.c.h.b16 %v270
    %v2051 = vunpack.c.l.b16 %v271
    %v2052 = vunpack.c.h.b16 %v271
    %v2053 = vunpack.c.l.b16 %v272
    %v2054 = vunpack.c.h.b16 %v272
    %v2055 = vunpack.c.l.b16 %v273
    %v2056 = vunpack.c.h.b16 %v273
    %v2057 = vunpack.c.l.b16 %v274
    %v2058 = vunpack.c.h.b16 %v274
    %v2059 = vunpack.c.l.b16 %v275
    %v2060 = vunpack.c.h.b16 %v275
    %v2061 = vunpack.c.l.b16 %v276
    %v2062 = vunpack.c.h.b16 %v276
    %v2063 = vunpack.c.l.b16 %v277
    %v2064 = vunpack.c.h.b16 %v277
    %v2065 = vunpack.c.l.b16 %v278
    %v2066 = vunpack.c.h.b16 %v278
    %v2067 = vunpack.c.l.b16 %v279
    %v2068 = vunpack.c.h.b16 %v279
    %v2069 = vunpack.c.l.b16 %v280
    %v2070 = vunpack.c.h.b16 %v280
    %v2071 = vunpack.c.l.b16 %v281
    %v2072 = vunpack.c.h.b16 %v281
    %v2073 = vunpack.c.l.b16 %v282
    %v2074 = vunpack.c.h.b16 %v282
    %v2075 = vunpack.c.l.b16 %v283
    %v2076 = vunpack.c.h.b16 %v283
    %v2077 = vunpack.c.l.b16 %v284
    %v2078 = vunpack.c.h.b16 %v284
    %v2079 = vunpack.c.l.b16 %v285
    %v2080 = vunpack.c.h.b16 %v285
    %v2081 = vunpack.c.l.b16 %v286
    %v2082 = vunpack.c.h.b16 %v286
    %v2083 = vunpack.c.l.b16 %v287
    %v2084 = vunpack.c.h.b16 %v287
    %v2085 = vunpack.c.l.b16 %v288
    %v2086 = vunpack.c.h.b16 %v288
    %v2087 = vunpack.c.l.b16 %v289
    %v2088 = vunpack.c.h.b16 %v289
    %v2089 = vunpack.c.l.b16 %v290
    %v2090 = vunpack.c.h.b16 %v290
    %v2091 = vunpack.c.l.b16 %v291
    %v2092 = vunpack.c.h.b16 %v291
    %v2093 = vunpack.c.l.b16 %v292
    %v2094 = vunpack.c.h.b16 %v292
    %v2095 = vunpack.c.l.b16 %v293
    %v2096 = vunpack.c.h.b16 %v293
    %v2097 = vunpack.c.l.b16 %v294
    %v2098 = vunpack.c.h.b16 %v294
    %v2099 = vunpack.c.l.b16 %v295
    %v2100 = vunpack.c.h.b16 %v295
    %v2101 = vunpack.c.l.b16 %v296
    %v2102 = vunpack.c.h.b16 %v296
    %v2103 = vunpack.c.l.b16 %v297
    %v2104 = vunpack.c.h.b16 %v297
    %v2105 = vunpack.c.l.b16 %v298
    %v2106 = vunpack.c.h.b16 %v298
    %v2107 = vunpack.c.l.b16 %v299
    %v2108 = vunpack.c.h.b16 %v299
    %v2109 = vunpack.c.l.b16 %v300
    %v2110 = vunpack.c.h.b16 %v300
    %v2111 = vunpack.c.l.b16 %v301
    %v2112 = vunpack.c.h.b16 %v301
    %v2113 = vunpack.c.l.b16 %v302
    %v2114 = vunpack.c.h.b16 %v302
    %v2115 = vunpack.c.l.b16 %v303
    %v2116 = vunpack.c.h.b16 %v303
    %v2117 = vunpack.c.l.b16 %v304
    %v2118 = vunpack.c.h.b16 %v304
    %v2119 = vunpack.c.l.b16 %v305
    %v2120 = vunpack.c.h.b16 %v305
    %v2121 = vunpack.c.l.b16 %v306
    %v2122 = vunpack.c.h.b16 %v306
    %v2123 = vunpack.c.l.b16 %v307
    %v2124 = vunpack.c.h.b16 %v307
    %v2125 = vunpack.c.l.b16 %v308
    %v2126 = vunpack.c.h.b16 %v308
    %v2127 = vunpack.c.l.b16 %v309
    %v2128 = vunpack.c.h.b16 %v309
    %v2129 = vunpack.c.l.b16 %v310
    %v2130 = vunpack.c.h.b16 %v310
    %v2131 = vunpack.c.l.b16 %v311
    %v2132 = vunpack.c.h.b16 %v311
    %v2133 = vunpack.c.l.b16 %v312
    %v2134 = vunpack.c.h.b16 %v312
    %v2135 = vunpack.c.l.b16 %v313
    %v2136 = vunpack.c.h.b16 %v313
    %v2137 = vunpack.c.l.b16 %v314
    %v2138 = vunpack.c.h.b16 %v314
    %v2139 = vunpack.c.l.b16 %v315
    %v2140 = vunpack.c.h.b16 %v315
    %v2141 = vunpack.c.l.b16 %v316
    %v2142 = vunpack.c.h.b16 %v316
    %v2143 = vunpack.c.l.b16 %v317
    %v2144 = vunpack.c.h.b16 %v317
    %v2145 = vunpack.c.l.b16 %v318
    %v2146 = vunpack.c.h.b16 %v318
    %v2147 = vunpack.c.l.b16 %v319
    %v2148 = vunpack.c.h.b16 %v319
    %v2149 = vunpack.c.l.b16 %v320
    %v2150 = vunpack.c.h.b16 %v320
    %v2151 = vunpack.c.l.b16 %v321
    %v2152 = vunpack.c.h.b16 %v321
    %v2153 = vunpack.c.l.b16 %v322
    %v2154 = vunpack.c.h.b16 %v322
    %v2155 = vunpack.c.l.b16 %v323
    %v2156 = vunpack.c.h.b16 %v323
    %v2157 = vunpack.c.l.b16 %v324
    %v2158 = vunpack.c.h.b16 %v324
    %v2159 = vunpack.c.l.b16 %v325
    %v2160 = vunpack.c.h.b16 %v325
    %v2161 = vunpack.c.l.b16 %v326
    %v2162 = vunpack.c.h.b16 %v326
    %v2163 = vunpack.c.l.b16 %v327
    %v2164 = vunpack.c.h.b16 %v327
    %v2165 = vunpack.c.l.b16 %v328
    %v2166 = vunpack.c.h.b16 %v328
    %v2167 = vunpack.c.l.b16 %v329
    %v2168 = vunpack.c.h.b16 %v329
    %v2169 = vunpack.c.l.b16 %v330
    %v2170 = vunpack.c.h.b16 %v330
    %v2171 = vunpack.c.l.b16 %v331
    %v2172 = vunpack.c.h.b16 %v331
    %v2173 = vunpack.c.l.b16 %v332
    %v2174 = vunpack.c.h.b16 %v332
    %v2175 = vunpack.c.l.b16 %v333
    %v2176 = vunpack.c.h.b16 %v333
    %v2177 = vunpack.c.l.b16 %v334
    %v2178 = vunpack.c.h.b16 %v334
    %v2179 = vunpack.c.l.b16 %v335
    %v2180 = vunpack.c.h.b16 %v335
    %v2181 = vunpack.c.l.b16 %v336
    %v2182 = vunpack.c.h.b16 %v336
    %v2183 = vunpack.c.l.b16 %v337
    %v2184 = vunpack.c.h.b16 %v337
    %v2185 = vunpack.c.l.b16 %v338
    %v2186 = vunpack.c.h.b16 %v338
    %v2187 = vunpack.c.l.b16 %v339
    %v2188 = vunpack.c.h.b16 %v339
    %v2189 = vunpack.c.l.b16 %v340
    %v2190 = vunpack.c.h.b16 %v340
    %v2191 = vunpack.c.l.b16 %v341
    %v2192 = vunpack.c.h.b16 %v341
    %v2193 = vunpack.c.l.b16 %v342
    %v2194 = vunpack.c.h.b16 %v342
    %v2195 = vunpack.c.l.b16 %v343
    %v2196 = vunpack.c.h.b16 %v343
    %v2197 = vunpack.c.l.b16 %v344
    %v2198 = vunpack.c.h.b16 %v344
    %v2199 = vunpack.c.l.b16 %v345
    %v2200 = vunpack.c.h.b16 %v345
    %v2201 = vunpack.c.l.b16 %v346
    %v2202 = vunpack.c.h.b16 %v346
    %v2203 = vunpack.c.l.b16 %v347
    %v2204 = vunpack.c.h.b16 %v347
    %v2205 = vunpack.c.l.b16 %v348
    %v2206 = vunpack.c.h.b16 %v348
    %v2207 = vunpack.c.l.b16 %v349
    %v2208 = vunpack.c.h.b16 %v349
    %v2209 = vunpack.c.l.b16 %v350
    %v2210 = vunpack.c.h.b16 %v350
    %v2211 = vunpack.c.l.b16 %v351
    %v2212 = vunpack.c.h.b16 %v351
    %v2213 = vunpack.c.l.b16 %v352
    %v2214 = vunpack.c.h.b16 %v352
    %v2215 = vunpack.c.l.b16 %v353
    %v2216 = vunpack.c.h.b16 %v353
    %v2217 = vunpack.c.l.b16 %v354
    %v2218 = vunpack.c.h.b16 %v354
    %v2219 = vunpack.c.l.b16 %v355
    %v2220 = vunpack.c.h.b16 %v355
    %v2221 = vunpack.c.l.b16 %v356
    %v2222 = vunpack.c.h.b16 %v356
    %v2223 = vunpack.c.l.b16 %v357
    %v2224 = vunpack.c.h.b16 %v357
    %v2225 = vunpack.c.l.b16 %v358
    %v2226 = vunpack.c.h.b16 %v358
    %v2227 = vunpack.c.l.b16 %v359
    %v2228 = vunpack.c.h.b16 %v359
    %v2229 = vunpack.c.l.b16 %v360
    %v2230 = vunpack.c.h.b16 %v360
    %v2231 = vunpack.c.l.b16 %v361
    %v2232 = vunpack.c.h.b16 %v361
    %v2233 = vunpack.c.l.b16 %v362
    %v2234 = vunpack.c.h.b16 %v362
    %v2235 = vunpack.c.l.b16 %v363
    %v2236 = vunpack.c.h.b16 %v363
    %v2237 = vunpack.c.l.b16 %v364
    %v2238 = vunpack.c.h.b16 %v364
    %v2239 = vunpack.c.l.b16 %v365
    %v2240 = vunpack.c.h.b16 %v365
    %v2241 = vunpack.c.l.b16 %v366
    %v2242 = vunpack.c.h.b16 %v366
    %v2243 = vunpack.c.l.b16 %v367
    %v2244 = vunpack.c.h.b16 %v367
    %v2245 = vunpack.c.l.b16 %v368
    %v2246 = vunpack.c.h.b16 %v368
    %v2247 = vunpack.c.l.b16 %v369
    %v2248 = vunpack.c.h.b16 %v369
    %v2249 = vunpack.c.l.b16 %v370
    %v2250 = vunpack.c.h.b16 %v370
    %v2251 = vunpack.c.l.b16 %v371
    %v2252 = vunpack.c.h.b16 %v371
    %v2253 = vunpack.c.l.b16 %v372
    %v2254 = vunpack.c.h.b16 %v372
    %v2255 = vunpack.c.l.b16 %v373
    %v2256 = vunpack.c.h.b16 %v373
    %v2257 = vunpack.c.l.b16 %v374
    %v2258 = vunpack.c.h.b16 %v374
    %v2259 = vunpack.c.l.b16 %v375
    %v2260 = vunpack.c.h.b16 %v375
    %v2261 = vunpack.c.l.b16 %v376
    %v2262 = vunpack.c.h.b16 %v376
    %v2263 = vunpack.c.l.b16 %v377
    %v2264 = vunpack.c.h.b16 %v377
    %v2265 = vunpack.c.l.b16 %v378
    %v2266 = vunpack.c.h.b16 %v378
    %v2267 = vunpack.c.l.b16 %v379
    %v2268 = vunpack.c.h.b16 %v379
    %v2269 = vunpack.c.l.b16 %v380
    %v2270 = vunpack.c.h.b16 %v380
    %v2271 = vunpack.c.l.b16 %v381
    %v2272 = vunpack.c.h.b16 %v381
    %v2273 = vunpack.c.l.b16 %v382
    %v2274 = vunpack.c.h.b16 %v382
    %v2275 = vunpack.c.l.b16 %v383
    %v2276 = vunpack.c.h.b16 %v383
    %v2277 = vunpack.c.l.b16 %v384
    %v2278 = vunpack.c.h.b16 %v384
    %v2279 = vunpack.c.l.b16 %v385
    %v2280 = vunpack.c.h.b16 %v385
    %v2281 = vunpack.c.l.b16 %v386
    %v2282 = vunpack.c.h.b16 %v386
    %v2283 = vunpack.c.l.b16 %v387
    %v2284 = vunpack.c.h.b16 %v387
    %v2285 = vunpack.c.l.b16 %v388
    %v2286 = vunpack.c.h.b16 %v388
    %v2287 = vunpack.c.l.b16 %v389
    %v2288 = vunpack.c.h.b16 %v389
    %v2289 = vunpack.c.l.b16 %v390
    %v2290 = vunpack.c.h.b16 %v390
    %v2291 = vunpack.c.l.b16 %v391
    %v2292 = vunpack.c.h.b16 %v391
    %v2293 = vunpack.c.l.b16 %v392
    %v2294 = vunpack.c.h.b16 %v392
    %v2295 = vunpack.c.l.b16 %v393
    %v2296 = vunpack.c.h.b16 %v393
    %v2297 = vunpack.c.l.b16 %v394
    %v2298 = vunpack.c.h.b16 %v394
    %v2299 = vunpack.c.l.b16 %v395
    %v2300 = vunpack.c.h.b16 %v395
    %v2301 = vunpack.c.l.b16 %v396
    %v2302 = vunpack.c.h.b16 %v396
    %v2303 = vunpack.c.l.b16 %v397
    %v2304 = vunpack.c.h.b16 %v397
    %v2305 = vunpack.c.l.b16 %v398
    %v2306 = vunpack.c.h.b16 %v398
    %v2307 = vunpack.c.l.b16 %v399
    %v2308 = vunpack.c.h.b16 %v399
    %v2309 = vunpack.c.l.b16 %v400
    %v2310 = vunpack.c.h.b16 %v400
    %v2311 = vunpack.c.l.b16 %v401
    %v2312 = vunpack.c.h.b16 %v401
    %v2313 = vunpack.c.l.b16 %v402
    %v2314 = vunpack.c.h.b16 %v402
    %v2315 = vunpack.c.l.b16 %v403
    %v2316 = vunpack.c.h.b16 %v403
    %v2317 = vunpack.c.l.b16 %v404
    %v2318 = vunpack.c.h.b16 %v404
    %v2319 = vunpack.c.l.b16 %v405
    %v2320 = vunpack.c.h.b16 %v405
    %v2321 = vunpack.c.l.b16 %v406
    %v2322 = vunpack.c.h.b16 %v406
    %v2323 = vunpack.c.l.b16 %v407
    %v2324 = vunpack.c.h.b16 %v407
    %v2325 = vunpack.c.l.b16 %v408
    %v2326 = vunpack.c.h.b16 %v408
    %v2327 = vunpack.c.l.b16 %v409
    %v2328 = vunpack.c.h.b16 %v409
    %v2329 = vunpack.c.l.b16 %v410
    %v2330 = vunpack.c.h.b16 %v410
    %v2331 = vunpack.c.l.b16 %v411
    %v2332 = vunpack.c.h.b16 %v411
    %v2333 = vunpack.c.l.b16 %v412
    %v2334 = vunpack.c.h.b16 %v412
    %v2335 = vunpack.c.l.b16 %v413
    %v2336 = vunpack.c.h.b16 %v413
    %v2337 = vunpack.c.l.b16 %v414
    %v2338 = vunpack.c.h.b16 %v414
    %v2339 = vunpack.c.l.b16 %v415
    %v2340 = vunpack.c.h.b16 %v415
    %v2341 = vunpack.c.l.b16 %v416
    %v2342 = vunpack.c.h.b16 %v416
    %v2343 = vunpack.c.l.b16 %v417
    %v2344 = vunpack.c.h.b16 %v417
    %v2345 = vunpack.c.l.b16 %v418
    %v2346 = vunpack.c.h.b16 %v418
    %v2347 = vunpack.c.l.b16 %v419
    %v2348 = vunpack.c.h.b16 %v419
    %v2349 = vunpack.c.l.b16 %v420
    %v2350 = vunpack.c.h.b16 %v420
    %v2351 = vunpack.c.l.b16 %v421
    %v2352 = vunpack.c.h.b16 %v421
    %v2353 = vunpack.c.l.b16 %v422
    %v2354 = vunpack.c.h.b16 %v422
    %v2355 = vunpack.c.l.b16 %v423
    %v2356 = vunpack.c.h.b16 %v423
    %v2357 = vunpack.c.l.b16 %v424
    %v2358 = vunpack.c.h.b16 %v424
    %v2359 = vunpack.c.l.b16 %v425
    %v2360 = vunpack.c.h.b16 %v425
    %v2361 = vunpack.c.l.b16 %v426
    %v2362 = vunpack.c.h.b16 %v426
    %v2363 = vunpack.c.l.b16 %v427
    %v2364 = vunpack.c.h.b16 %v427
    %v2365 = vunpack.c.l.b16 %v428
    %v2366 = vunpack.c.h.b16 %v428
    %v2367 = vunpack.c.l.b16 %v429
    %v2368 = vunpack.c.h.b16 %v429
    %v2369 = vunpack.c.l.b16 %v430
    %v2370 = vunpack.c.h.b16 %v430
    %v2371 = vunpack.c.l.b16 %v431
    %v2372 = vunpack.c.h.b16 %v431
    %v2373 = vunpack.c.l.b16 %v432
    %v2374 = vunpack.c.h.b16 %v432
    %v2375 = vunpack.c.l.b16 %v433
    %v2376 = vunpack.c.h.b16 %v433
    %v2377 = vunpack.c.l.b16 %v434
    %v2378 = vunpack.c.h.b16 %v434
    %v2379 = vunpack.c.l.b16 %v435
    %v2380 = vunpack.c.h.b16 %v435
    %v2381 = vunpack.c.l.b16 %v436
    %v2382 = vunpack.c.h.b16 %v436
    %v2383 = vunpack.c.l.b16 %v437
    %v2384 = vunpack.c.h.b16 %v437
    %v2385 = vunpack.c.l.b16 %v438
    %v2386 = vunpack.c.h.b16 %v438
    %v2387 = vunpack.c.l.b16 %v439
    %v2388 = vunpack.c.h.b16 %v439
    %v2389 = vunpack.c.l.b16 %v440
    %v2390 = vunpack.c.h.b16 %v440
    %v2391 = vunpack.c.l.b16 %v441
    %v2392 = vunpack.c.h.b16 %v441
    %v2393 = vunpack.c.l.b16 %v442
    %v2394 = vunpack.c.h.b16 %v442
    %v2395 = vunpack.c.l.b16 %v443
    %v2396 = vunpack.c.h.b16 %v443
    %v2397 = vunpack.c.l.b16 %v444
    %v2398 = vunpack.c.h.b16 %v444
    %v2399 = vunpack.c.l.b16 %v445
    %v2400 = vunpack.c.h.b16 %v445
    %v2401 = vunpack.c.l.b16 %v446
    %v2402 = vunpack.c.h.b16 %v446
    %v2403 = vunpack.c.l.b16 %v447
    %v2404 = vunpack.c.h.b16 %v447
    %v2405 = vunpack.c.l.b16 %v448
    %v2406 = vunpack.c.h.b16 %v448
    %v2407 = vunpack.c.l.b16 %v449
    %v2408 = vunpack.c.h.b16 %v449
    %v2409 = vunpack.c.l.b16 %v450
    %v2410 = vunpack.c.h.b16 %v450
    %v2411 = vunpack.c.l.b16 %v451
    %v2412 = vunpack.c.h.b16 %v451
    %v2413 = vunpack.c.l.b16 %v452
    %v2414 = vunpack.c.h.b16 %v452
    %v2415 = vunpack.c.l.b16 %v453
    %v2416 = vunpack.c.h.b16 %v453
    %v2417 = vunpack.c.l.b16 %v454
    %v2418 = vunpack.c.h.b16 %v454
    %v2419 = vunpack.c.l.b16 %v455
    %v2420 = vunpack.c.h.b16 %v455
    %v2421 = vunpack.c.l.b16 %v456
    %v2422 = vunpack.c.h.b16 %v456
    %v2423 = vunpack.c.l.b16 %v457
    %v2424 = vunpack.c.h.b16 %v457
    %v2425 = vunpack.c.l.b16 %v458
    %v2426 = vunpack.c.h.b16 %v458
    %v2427 = vunpack.c.l.b16 %v459
    %v2428 = vunpack.c.h.b16 %v459
    %v2429 = vunpack.c.l.b16 %v460
    %v2430 = vunpack.c.h.b16 %v460
    %v2431 = vunpack.c.l.b16 %v461
    %v2432 = vunpack.c.h.b16 %v461
    %v2433 = vunpack.c.l.b16 %v462
    %v2434 = vunpack.c.h.b16 %v462
    %v2435 = vunpack.c.l.b16 %v463
    %v2436 = vunpack.c.h.b16 %v463
    %v2437 = vunpack.c.l.b16 %v464
    %v2438 = vunpack.c.h.b16 %v464
    %v2439 = vunpack.c.l.b16 %v465
    %v2440 = vunpack.c.h.b16 %v465
    %v2441 = vunpack.c.l.b16 %v466
    %v2442 = vunpack.c.h.b16 %v466
    %v2443 = vunpack.c.l.b16 %v467
    %v2444 = vunpack.c.h.b16 %v467
    %v2445 = vunpack.c.l.b16 %v468
    %v2446 = vunpack.c.h.b16 %v468
    %v2447 = vunpack.c.l.b16 %v469
    %v2448 = vunpack.c.h.b16 %v469
    %v2449 = vunpack.c.l.b16 %v470
    %v2450 = vunpack.c.h.b16 %v470
    %v2451 = vunpack.c.l.b16 %v471
    %v2452 = vunpack.c.h.b16 %v471
    %v2453 = vunpack.c.l.b16 %v472
    %v2454 = vunpack.c.h.b16 %v472
    %v2455 = vunpack.c.l.b16 %v473
    %v2456 = vunpack.c.h.b16 %v473
    %v2457 = vunpack.c.l.b16 %v474
    %v2458 = vunpack.c.h.b16 %v474
    %v2459 = vunpack.c.l.b16 %v475
    %v2460 = vunpack.c.h.b16 %v475
    %v2461 = vunpack.c.l.b16 %v476
    %v2462 = vunpack.c.h.b16 %v476
    %v2463 = vunpack.c.l.b16 %v477
    %v2464 = vunpack.c.h.b16 %v477
    %v2465 = vunpack.c.l.b16 %v478
    %v2466 = vunpack.c.h.b16 %v478
    %v2467 = vunpack.c.l.b16 %v479
    %v2468 = vunpack.c.h.b16 %v479
    %v2469 = vunpack.c.l.b16 %v480
    %v2470 = vunpack.c.h.b16 %v480
    %v2471 = vunpack.c.l.b16 %v481
    %v2472 = vunpack.c.h.b16 %v481
    %v2473 = vunpack.c.l.b16 %v482
    %v2474 = vunpack.c.h.b16 %v482
    %v2475 = vunpack.c.l.b16 %v483
    %v2476 = vunpack.c.h.b16 %v483
    %v2477 = vunpack.c.l.b16 %v484
    %v2478 = vunpack.c.h.b16 %v484
    %v2479 = vunpack.c.l.b16 %v485
    %v2480 = vunpack.c.h.b16 %v485
    %v2481 = vunpack.c.l.b16 %v486
    %v2482 = vunpack.c.h.b16 %v486
    %v2483 = vunpack.c.l.b16 %v487
    %v2484 = vunpack.c.h.b16 %v487
    %v2485 = vunpack.c.l.b16 %v488
    %v2486 = vunpack.c.h.b16 %v488
    %v2487 = vunpack.c.l.b16 %v489
    %v2488 = vunpack.c.h.b16 %v489
    %v2489 = vunpack.c.l.b16 %v490
    %v2490 = vunpack.c.h.b16 %v490
    %v2491 = vunpack.c.l.b16 %v491
    %v2492 = vunpack.c.h.b16 %v491
    %v2493 = vunpack.c.l.b16 %v492
    %v2494 = vunpack.c.h.b16 %v492
    %v2495 = vunpack.c.l.b16 %v493
    %v2496 = vunpack.c.h.b16 %v493
    %v2497 = vunpack.c.l.b16 %v494
    %v2498 = vunpack.c.h.b16 %v494
    %v2499 = vunpack.c.l.b16 %v495
    %v2500 = vunpack.c.h.b16 %v495
    %v2501 = vunpack.c.l.b16 %v496
    %v2502 = vunpack.c.h.b16 %v496
    %v2503 = vunpack.c.l.b16 %v497
    %v2504 = vunpack.c.h.b16 %v497
    %v2505 = vunpack.c.l.b16 %v498
    %v2506 = vunpack.c.h.b16 %v498
    %v2507 = vunpack.c.l.b16 %v499
    %v2508 = vunpack.c.h.b16 %v499
    %v2509 = vunpack.c.l.b16 %v500
    %v2510 = vunpack.c.h.b16 %v500
    %v2511 = vunpack.c.l.b16 %v501
    %v2512 = vunpack.c.h.b16 %v501
    %v2513 = vunpack.c.l.b16 %v502
    %v2514 = vunpack.c.h.b16 %v502
    %v2515 = vunpack.c.l.b16 %v503
    %v2516 = vunpack.c.h.b16 %v503
    %v2517 = vunpack.c.l.b16 %v504
    %v2518 = vunpack.c.h.b16 %v504
    %v2519 = vunpack.c.l.b16 %v505
    %v2520 = vunpack.c.h.b16 %v505
    %v2521 = vunpack.c.l.b16 %v506
    %v2522 = vunpack.c.h.b16 %v506
    %v2523 = vunpack.c.l.b16 %v507
    %v2524 = vunpack.c.h.b16 %v507
    %v2525 = vunpack.c.l.b16 %v508
    %v2526 = vunpack.c.h.b16 %v508
    %v2527 = vunpack.c.l.b16 %v509
    %v2528 = vunpack.c.h.b16 %v509
    %v2529 = vunpack.c.l.b16 %v510
    %v2530 = vunpack.c.h.b16 %v510
    %v2531 = vunpack.c.l.b16 %v511
    %v2532 = vunpack.c.h.b16 %v511
    %v2533 = vunpack.c.l.b16 %v512
    %v2534 = vunpack.c.h.b16 %v512
    %v2535 = vunpack.c.l.b16 %v513
    %v2536 = vunpack.c.h.b16 %v513
    %v2537 = vunpack.c.l.b16 %v514
    %v2538 = vunpack.c.h.b16 %v514
    %v2539 = vunpack.c.l.b16 %v515
    %v2540 = vunpack.c.h.b16 %v515
    %v2541 = vunpack.c.l.b16 %v516
    %v2542 = vunpack.c.h.b16 %v516
    %v2543 = vunpack.c.l.b16 %v517
    %v2544 = vunpack.c.h.b16 %v517
    %v2545 = vunpack.c.l.b16 %v518
    %v2546 = vunpack.c.h.b16 %v518
    %v2547 = vunpack.c.l.b16 %v519
    %v2548 = vunpack.c.h.b16 %v519
    %v2549 = vunpack.c.l.b16 %v520
    %v2550 = vunpack.c.h.b16 %v520
    %v2551 = vunpack.c.l.b16 %v521
    %v2552 = vunpack.c.h.b16 %v521
    %v2553 = vunpack.c.l.b16 %v522
    %v2554 = vunpack.c.h.b16 %v522
    %v2555 = vunpack.c.l.b16 %v523
    %v2556 = vunpack.c.h.b16 %v523
    %v2557 = vunpack.c.l.b16 %v524
    %v2558 = vunpack.c.h.b16 %v524
    %v2559 = vunpack.c.l.b16 %v525
    %v2560 = vunpack.c.h.b16 %v525
    %v2561 = vunpack.c.l.b16 %v526
    %v2562 = vunpack.c.h.b16 %v526
    %v2563 = vunpack.c.l.b16 %v527
    %v2564 = vunpack.c.h.b16 %v527
    %v2565 = vunpack.c.l.b16 %v528
    %v2566 = vunpack.c.h.b16 %v528
    %v2567 = vunpack.c.l.b16 %v529
    %v2568 = vunpack.c.h.b16 %v529
    %v2569 = vunpack.c.l.b16 %v530
    %v2570 = vunpack.c.h.b16 %v530
    %v2571 = vunpack.c.l.b16 %v531
    %v2572 = vunpack.c.h.b16 %v531
    %v2573 = vunpack.c.l.b16 %v532
    %v2574 = vunpack.c.h.b16 %v532
    %v2575 = vunpack.c.l.b16 %v533
    %v2576 = vunpack.c.h.b16 %v533
    %v2577 = vunpack.c.l.b16 %v534
    %v2578 = vunpack.c.h.b16 %v534
    %v2579 = vunpack.c.l.b16 %v535
    %v2580 = vunpack.c.h.b16 %v535
    %v2581 = vunpack.c.l.b16 %v536
    %v2582 = vunpack.c.h.b16 %v536
    %v2583 = vunpack.c.l.b16 %v537
    %v2584 = vunpack.c.h.b16 %v537
    %v2585 = vunpack.c.l.b16 %v538
    %v2586 = vunpack.c.h.b16 %v538
    %v2587 = vunpack.c.l.b16 %v539
    %v2588 = vunpack.c.h.b16 %v539
    %v2589 = vunpack.c.l.b16 %v540
    %v2590 = vunpack.c.h.b16 %v540
    %v2591 = vunpack.c.l.b16 %v541
    %v2592 = vunpack.c.h.b16 %v541
    %v2593 = vunpack.c.l.b16 %v542
    %v2594 = vunpack.c.h.b16 %v542
    %v2595 = vunpack.c.l.b16 %v543
    %v2596 = vunpack.c.h.b16 %v543
    %v2597 = vunpack.c.l.b16 %v544
    %v2598 = vunpack.c.h.b16 %v544
    %v2599 = vunpack.c.l.b16 %v545
    %v2600 = vunpack.c.h.b16 %v545
    %v2601 = vunpack.c.l.b16 %v546
    %v2602 = vunpack.c.h.b16 %v546
    %v2603 = vunpack.c.l.b16 %v547
    %v2604 = vunpack.c.h.b16 %v547
    %v2605 = vunpack.c.l.b16 %v548
    %v2606 = vunpack.c.h.b16 %v548
    %v2607 = vunpack.c.l.b16 %v549
    %v2608 = vunpack.c.h.b16 %v549
    %v2609 = vunpack.c.l.b16 %v550
    %v2610 = vunpack.c.h.b16 %v550
    %v2611 = vunpack.c.l.b16 %v551
    %v2612 = vunpack.c.h.b16 %v551
    %v2613 = vunpack.c.l.b16 %v552
    %v2614 = vunpack.c.h.b16 %v552
    %v2615 = vunpack.c.l.b16 %v553
    %v2616 = vunpack.c.h.b16 %v553
    %v2617 = vunpack.c.l.b16 %v554
    %v2618 = vunpack.c.h.b16 %v554
    %v2619 = vunpack.c.l.b16 %v555
    %v2620 = vunpack.c.h.b16 %v555
    %v2621 = vunpack.c.l.b16 %v556
    %v2622 = vunpack.c.h.b16 %v556
    %v2623 = vunpack.c.l.b16 %v557
    %v2624 = vunpack.c.h.b16 %v557
    %v2625 = vunpack.c.l.b16 %v558
    %v2626 = vunpack.c.h.b16 %v558
    %v2627 = vunpack.c.l.b16 %v559
    %v2628 = vunpack.c.h.b16 %v559
    %v2629 = vunpack.c.l.b16 %v560
    %v2630 = vunpack.c.h.b16 %v560
    %v2631 = vunpack.c.l.b16 %v561
    %v2632 = vunpack.c.h.b16 %v561
    %v2633 = vunpack.c.l.b16 %v562
    %v2634 = vunpack.c.h.b16 %v562
    %v2635 = vunpack.c.l.b16 %v563
    %v2636 = vunpack.c.h.b16 %v563
    %v2637 = vunpack.c.l.b16 %v564
    %v2638 = vunpack.c.h.b16 %v564
    %v2639 = vunpack.c.l.b16 %v565
    %v2640 = vunpack.c.h.b16 %v565
    %v2641 = vunpack.c.l.b16 %v566
    %v2642 = vunpack.c.h.b16 %v566
    %v2643 = vunpack.c.l.b16 %v567
    %v2644 = vunpack.c.h.b16 %v567
    %v2645 = vunpack.c.l.b16 %v568
    %v2646 = vunpack.c.h.b16 %v568
    %v2647 = vunpack.c.l.b16 %v569
    %v2648 = vunpack.c.h.b16 %v569
    %v2649 = vunpack.c.l.b16 %v570
    %v2650 = vunpack.c.h.b16 %v570
    %v2651 = vunpack.c.l.b16 %v571
    %v2652 = vunpack.c.h.b16 %v571
    %v2653 = vunpack.c.l.b16 %v572
    %v2654 = vunpack.c.h.b16 %v572
    %v2655 = vunpack.c.l.b16 %v573
    %v2656 = vunpack.c.h.b16 %v573
    %v2657 = vunpack.c.l.b16 %v574
    %v2658 = vunpack.c.h.b16 %v574
    %v2659 = vunpack.c.l.b16 %v575
    %v2660 = vunpack.c.h.b16 %v575
    %v2661 = vunpack.c.l.b16 %v576
    %v2662 = vunpack.c.h.b16 %v576
    %v2663 = vunpack.c.l.b16 %v577
    %v2664 = vunpack.c.h.b16 %v577
    %v2665 = vunpack.c.l.b16 %v578
    %v2666 = vunpack.c.h.b16 %v578
    %v2667 = vunpack.c.l.b16 %v579
    %v2668 = vunpack.c.h.b16 %v579
    %v2669 = vunpack.c.l.b16 %v580
    %v2670 = vunpack.c.h.b16 %v580
    %v2671 = vunpack.c.l.b16 %v581
    %v2672 = vunpack.c.h.b16 %v581
    %v2673 = vunpack.c.l.b16 %v582
    %v2674 = vunpack.c.h.b16 %v582
    %v2675 = vunpack.c.l.b16 %v583
    %v2676 = vunpack.c.h.b16 %v583
    %v2677 = vunpack.c.l.b16 %v584
    %v2678 = vunpack.c.h.b16 %v584
    %v2679 = vunpack.c.l.b16 %v585
    %v2680 = vunpack.c.h.b16 %v585
    %v2681 = vunpack.c.l.b16 %v586
    %v2682 = vunpack.c.h.b16 %v586
    %v2683 = vunpack.c.l.b16 %v587
    %v2684 = vunpack.c.h.b16 %v587
    %v2685 = vunpack.c.l.b16 %v588
    %v2686 = vunpack.c.h.b16 %v588
    %v2687 = vunpack.c.l.b16 %v589
    %v2688 = vunpack.c.h.b16 %v589
    %v2689 = vunpack.c.l.b16 %v590
    %v2690 = vunpack.c.h.b16 %v590
    %v2691 = vunpack.c.l.b16 %v591
    %v2692 = vunpack.c.h.b16 %v591
    %v2693 = vunpack.c.l.b16 %v592
    %v2694 = vunpack.c.h.b16 %v592
    %v2695 = vunpack.c.l.b16 %v593
    %v2696 = vunpack.c.h.b16 %v593
    %v2697 = vunpack.c.l.b16 %v594
    %v2698 = vunpack.c.h.b16 %v594
    %v2699 = vunpack.c.l.b16 %v595
    %v2700 = vunpack.c.h.b16 %v595
    %v2701 = vunpack.c.l.b16 %v596
    %v2702 = vunpack.c.h.b16 %v596
    %v2703 = vunpack.c.l.b16 %v597
    %v2704 = vunpack.c.h.b16 %v597
    %v2705 = vunpack.c.l.b16 %v598
    %v2706 = vunpack.c.h.b16 %v598
    %v2707 = vunpack.c.l.b16 %v599
    %v2708 = vunpack.c.h.b16 %v599
    %v2709 = vunpack.c.l.b16 %v600
    %v2710 = vunpack.c.h.b16 %v600
    %v2711 = vunpack.c.l.b16 %v601
    %v2712 = vunpack.c.h.b16 %v601
    %v2713 = vunpack.c.l.b16 %v602
    %v2714 = vunpack.c.h.b16 %v602
    %v2715 = vunpack.c.l.b16 %v603
    %v2716 = vunpack.c.h.b16 %v603
    %v2717 = vunpack.c.l.b16 %v604
    %v2718 = vunpack.c.h.b16 %v604
    %v2719 = vunpack.c.l.b16 %v605
    %v2720 = vunpack.c.h.b16 %v605
    %v2721 = vunpack.c.l.b16 %v606
    %v2722 = vunpack.c.h.b16 %v606
    %v2723 = vunpack.c.l.b16 %v607
    %v2724 = vunpack.c.h.b16 %v607
    %v2725 = vunpack.c.l.b16 %v608
    %v2726 = vunpack.c.h.b16 %v608
    %v2727 = vunpack.c.l.b16 %v609
    %v2728 = vunpack.c.h.b16 %v609
    %v2729 = vunpack.c.l.b16 %v610
    %v2730 = vunpack.c.h.b16 %v610
    %v2731 = vunpack.c.l.b16 %v611
    %v2732 = vunpack.c.h.b16 %v611
    %v2733 = vunpack.c.l.b16 %v612
    %v2734 = vunpack.c.h.b16 %v612
    %v2735 = vunpack.c.l.b16 %v613
    %v2736 = vunpack.c.h.b16 %v613
    %v2737 = vunpack.c.l.b16 %v614
    %v2738 = vunpack.c.h.b16 %v614
    %v2739 = vunpack.c.l.b16 %v615
    %v2740 = vunpack.c.h.b16 %v615
    %v2741 = vunpack.c.l.b16 %v616
    %v2742 = vunpack.c.h.b16 %v616
    %v2743 = vunpack.c.l.b16 %v617
    %v2744 = vunpack.c.h.b16 %v617
    %v2745 = vunpack.c.l.b16 %v618
    %v2746 = vunpack.c.h.b16 %v618
    %v2747 = vunpack.c.l.b16 %v619
    %v2748 = vunpack.c.h.b16 %v619
    %v2749 = vunpack.c.l.b16 %v620
    %v2750 = vunpack.c.h.b16 %v620
    %v2751 = vunpack.c.l.b16 %v621
    %v2752 = vunpack.c.h.b16 %v621
    %v2753 = vunpack.c.l.b16 %v622
    %v2754 = vunpack.c.h.b16 %v622
    %v2755 = vunpack.c.l.b16 %v623
    %v2756 = vunpack.c.h.b16 %v623
    %v2757 = vunpack.c.l.b16 %v624
    %v2758 = vunpack.c.h.b16 %v624
    %v2759 = vunpack.c.l.b16 %v625
    %v2760 = vunpack.c.h.b16 %v625
    %v2761 = vunpack.c.l.b16 %v626
    %v2762 = vunpack.c.h.b16 %v626
    %v2763 = vunpack.c.l.b16 %v627
    %v2764 = vunpack.c.h.b16 %v627
    %v2765 = vunpack.c.l.b16 %v628
    %v2766 = vunpack.c.h.b16 %v628
    %v2767 = vunpack.c.l.b16 %v629
    %v2768 = vunpack.c.h.b16 %v629
    %v2769 = vunpack.c.l.b16 %v630
    %v2770 = vunpack.c.h.b16 %v630
    %v2771 = vunpack.c.l.b16 %v631
    %v2772 = vunpack.c.h.b16 %v631
    %v2773 = vunpack.c.l.b16 %v632
    %v2774 = vunpack.c.h.b16 %v632
    %v2775 = vunpack.c.l.b16 %v633
    %v2776 = vunpack.c.h.b16 %v633
    %v2777 = vunpack.c.l.b16 %v634
    %v2778 = vunpack.c.h.b16 %v634
    %v2779 = vunpack.c.l.b16 %v635
    %v2780 = vunpack.c.h.b16 %v635
    %v2781 = vunpack.c.l.b16 %v636
    %v2782 = vunpack.c.h.b16 %v636
    %v2783 = vunpack.c.l.b16 %v637
    %v2784 = vunpack.c.h.b16 %v637
    %v2785 = vunpack.c.l.b16 %v638
    %v2786 = vunpack.c.h.b16 %v638
    %v2787 = vunpack.c.l.b16 %v639
    %v2788 = vunpack.c.h.b16 %v639
    %v2789 = vunpack.c.l.b16 %v640
    %v2790 = vunpack.c.h.b16 %v640
    %v2791 = vunpack.c.l.b16 %v641
    %v2792 = vunpack.c.h.b16 %v641
    %v2793 = vunpack.c.l.b16 %v642
    %v2794 = vunpack.c.h.b16 %v642
    %v2795 = vunpack.c.l.b16 %v643
    %v2796 = vunpack.c.h.b16 %v643
    %v2797 = vunpack.c.l.b16 %v644
    %v2798 = vunpack.c.h.b16 %v644
    %v2799 = vunpack.c.l.b16 %v645
    %v2800 = vunpack.c.h.b16 %v645
    %v2801 = vunpack.c.l.b16 %v646
    %v2802 = vunpack.c.h.b16 %v646
    %v2803 = vunpack.c.l.b16 %v647
    %v2804 = vunpack.c.h.b16 %v647
    %v2805 = vunpack.c.l.b16 %v648
    %v2806 = vunpack.c.h.b16 %v648
    %v2807 = vunpack.c.l.b16 %v649
    %v2808 = vunpack.c.h.b16 %v649
    %v2809 = vunpack.c.l.b16 %v650
    %v2810 = vunpack.c.h.b16 %v650
    %v2811 = vunpack.c.l.b16 %v651
    %v2812 = vunpack.c.h.b16 %v651
    %v2813 = vunpack.c.l.b16 %v652
    %v2814 = vunpack.c.h.b16 %v652
    %v2815 = vunpack.c.l.b16 %v653
    %v2816 = vunpack.c.h.b16 %v653
    %v2817 = vunpack.c.l.b16 %v654
    %v2818 = vunpack.c.h.b16 %v654
    %v2819 = vunpack.c.l.b16 %v655
    %v2820 = vunpack.c.h.b16 %v655
    %v2821 = vunpack.c.l.b16 %v656
    %v2822 = vunpack.c.h.b16 %v656
    %v2823 = vunpack.c.l.b16 %v657
    %v2824 = vunpack.c.h.b16 %v657
    %v2825 = vunpack.c.l.b16 %v658
    %v2826 = vunpack.c.h.b16 %v658
    %v2827 = vunpack.c.l.b16 %v659
    %v2828 = vunpack.c.h.b16 %v659
    %v2829 = vunpack.c.l.b16 %v660
    %v2830 = vunpack.c.h.b16 %v660
    %v2831 = vunpack.c.l.b16 %v661
    %v2832 = vunpack.c.h.b16 %v661
    %v2833 = vunpack.c.l.b16 %v662
    %v2834 = vunpack.c.h.b16 %v662
    %v2835 = vunpack.c.l.b16 %v663
    %v2836 = vunpack.c.h.b16 %v663
    %v2837 = vunpack.c.l.b16 %v664
    %v2838 = vunpack.c.h.b16 %v664
    %v2839 = vunpack.c.l.b16 %v665
    %v2840 = vunpack.c.h.b16 %v665
    %v2841 = vunpack.c.l.b16 %v666
    %v2842 = vunpack.c.h.b16 %v666
    %v2843 = vunpack.c.l.b16 %v667
    %v2844 = vunpack.c.h.b16 %v667
    %v2845 = vunpack.c.l.b16 %v668
    %v2846 = vunpack.c.h.b16 %v668
    %v2847 = vunpack.c.l.b16 %v669
    %v2848 = vunpack.c.h.b16 %v669
    %v2849 = vunpack.c.l.b16 %v670
    %v2850 = vunpack.c.h.b16 %v670
    %v2851 = vunpack.c.l.b16 %v671
    %v2852 = vunpack.c.h.b16 %v671
    %v2853 = vunpack.c.l.b16 %v672
    %v2854 = vunpack.c.h.b16 %v672
    %v2855 = vunpack.c.l.b16 %v673
    %v2856 = vunpack.c.h.b16 %v673
    %v2857 = vunpack.c.l.b16 %v674
    %v2858 = vunpack.c.h.b16 %v674
    %v2859 = vunpack.c.l.b16 %v675
    %v2860 = vunpack.c.h.b16 %v675
    %v2861 = vunpack.c.l.b16 %v676
    %v2862 = vunpack.c.h.b16 %v676
    %v2863 = vunpack.c.l.b16 %v677
    %v2864 = vunpack.c.h.b16 %v677
    %v2865 = vunpack.c.l.b16 %v678
    %v2866 = vunpack.c.h.b16 %v678
    %v2867 = vunpack.c.l.b16 %v679
    %v2868 = vunpack.c.h.b16 %v679
    %v2869 = vunpack.c.l.b16 %v680
    %v2870 = vunpack.c.h.b16 %v680
    %v2871 = vunpack.c.l.b16 %v681
    %v2872 = vunpack.c.h.b16 %v681
    %v2873 = vunpack.c.l.b16 %v682
    %v2874 = vunpack.c.h.b16 %v682
    %v2875 = vunpack.c.l.b16 %v683
    %v2876 = vunpack.c.h.b16 %v683
    %v2877 = vunpack.c.l.b16 %v684
    %v2878 = vunpack.c.h.b16 %v684
    %v2879 = vunpack.c.l.b16 %v685
    %v2880 = vunpack.c.h.b16 %v685
    %v2881 = vunpack.c.l.b16 %v686
    %v2882 = vunpack.c.h.b16 %v686
    %v2883 = vunpack.c.l.b16 %v687
    %v2884 = vunpack.c.h.b16 %v687
    %v2885 = vunpack.c.l.b16 %v688
    %v2886 = vunpack.c.h.b16 %v688
    %v2887 = vunpack.c.l.b16 %v689
    %v2888 = vunpack.c.h.b16 %v689
    %v2889 = vunpack.c.l.b16 %v690
    %v2890 = vunpack.c.h.b16 %v690
    %v2891 = vunpack.c.l.b16 %v691
    %v2892 = vunpack.c.h.b16 %v691
    %v2893 = vunpack.c.l.b16 %v692
    %v2894 = vunpack.c.h.b16 %v692
    %v2895 = vunpack.c.l.b16 %v693
    %v2896 = vunpack.c.h.b16 %v693
    %v2897 = vunpack.c.l.b16 %v694
    %v2898 = vunpack.c.h.b16 %v694
    %v2899 = vunpack.c.l.b16 %v695
    %v2900 = vunpack.c.h.b16 %v695
    %v2901 = vunpack.c.l.b16 %v696
    %v2902 = vunpack.c.h.b16 %v696
    %v2903 = vunpack.c.l.b16 %v697
    %v2904 = vunpack.c.h.b16 %v697
    %v2905 = vunpack.c.l.b16 %v698
    %v2906 = vunpack.c.h.b16 %v698
    %v2907 = vunpack.c.l.b16 %v699
    %v2908 = vunpack.c.h.b16 %v699
    %v2909 = vunpack.c.l.b16 %v700
    %v2910 = vunpack.c.h.b16 %v700
    %v2911 = vunpack.c.l.b16 %v701
    %v2912 = vunpack.c.h.b16 %v701
    %v2913 = vunpack.c.l.b16 %v702
    %v2914 = vunpack.c.h.b16 %v702
    %v2915 = vunpack.c.l.b16 %v703
    %v2916 = vunpack.c.h.b16 %v703
    %v2917 = vunpack.c.l.b16 %v704
    %v2918 = vunpack.c.h.b16 %v704
    %v2919 = vunpack.c.l.b16 %v705
    %v2920 = vunpack.c.h.b16 %v705
    %v2921 = vunpack.c.l.b16 %v706
    %v2922 = vunpack.c.h.b16 %v706
    %v2923 = vunpack.c.l.b16 %v707
    %v2924 = vunpack.c.h.b16 %v707
    %v2925 = vunpack.c.l.b16 %v708
    %v2926 = vunpack.c.h.b16 %v708
    %v2927 = vunpack.c.l.b16 %v709
    %v2928 = vunpack.c.h.b16 %v709
    %v2929 = vunpack.c.l.b16 %v710
    %v2930 = vunpack.c.h.b16 %v710
    %v2931 = vunpack.c.l.b16 %v711
    %v2932 = vunpack.c.h.b16 %v711
    %v2933 = vunpack.c.l.b16 %v712
    %v2934 = vunpack.c.h.b16 %v712
    %v2935 = vunpack.c.l.b16 %v713
    %v2936 = vunpack.c.h.b16 %v713
    %v2937 = vunpack.c.l.b16 %v714
    %v2938 = vunpack.c.h.b16 %v714
    %v2939 = vunpack.c.l.b16 %v715
    %v2940 = vunpack.c.h.b16 %v715
    %v2941 = vunpack.c.l.b16 %v716
    %v2942 = vunpack.c.h.b16 %v716
    %v2943 = vunpack.c.l.b16 %v717
    %v2944 = vunpack.c.h.b16 %v717
    %v2945 = vunpack.c.l.b16 %v718
    %v2946 = vunpack.c.h.b16 %v718
    %v2947 = vunpack.c.l.b16 %v719
    %v2948 = vunpack.c.h.b16 %v719
    %v2949 = vunpack.c.l.b16 %v720
    %v2950 = vunpack.c.h.b16 %v720
    %v2951 = vunpack.c.l.b16 %v721
    %v2952 = vunpack.c.h.b16 %v721
    %v2953 = vunpack.c.l.b16 %v722
    %v2954 = vunpack.c.h.b16 %v722
    %v2955 = vunpack.c.l.b16 %v723
    %v2956 = vunpack.c.h.b16 %v723
    %v2957 = vunpack.c.l.b16 %v724
    %v2958 = vunpack.c.h.b16 %v724
    %v2959 = vunpack.c.l.b16 %v725
    %v2960 = vunpack.c.h.b16 %v725
    %v2961 = vunpack.c.l.b16 %v726
    %v2962 = vunpack.c.h.b16 %v726
    %v2963 = vunpack.c.l.b16 %v727
    %v2964 = vunpack.c.h.b16 %v727
    %v2965 = vunpack.c.l.b16 %v728
    %v2966 = vunpack.c.h.b16 %v728
    %v2967 = vunpack.c.l.b16 %v729
    %v2968 = vunpack.c.h.b16 %v729
    %v2969 = vunpack.c.l.b16 %v730
    %v2970 = vunpack.c.h.b16 %v730
    %v2971 = vunpack.c.l.b16 %v731
    %v2972 = vunpack.c.h.b16 %v731
    %v2973 = vunpack.c.l.b16 %v732
    %v2974 = vunpack.c.h.b16 %v732
    %v2975 = vunpack.c.l.b16 %v733
    %v2976 = vunpack.c.h.b16 %v733
    %v2977 = vunpack.c.l.b16 %v734
    %v2978 = vunpack.c.h.b16 %v734
    %v2979 = vunpack.c.l.b16 %v735
    %v2980 = vunpack.c.h.b16 %v735
    %v2981 = vunpack.c.l.b16 %v736
    %v2982 = vunpack.c.h.b16 %v736
    %v2983 = vunpack.c.l.b16 %v737
    %v2984 = vunpack.c.h.b16 %v737
    %v2985 = vunpack.c.l.b16 %v738
    %v2986 = vunpack.c.h.b16 %v738
    %v2987 = vunpack.c.l.b16 %v739
    %v2988 = vunpack.c.h.b16 %v739
    %v2989 = vunpack.c.l.b16 %v740
    %v2990 = vunpack.c.h.b16 %v740
    %v2991 = vunpack.c.l.b16 %v741
    %v2992 = vunpack.c.h.b16 %v741
    %v2993 = vunpack.c.l.b16 %v742
    %v2994 = vunpack.c.h.b16 %v742
    %v2995 = vunpack.c.l.b16 %v743
    %v2996 = vunpack.c.h.b16 %v743
    %v2997 = vunpack.c.l.b16 %v744
    %v2998 = vunpack.c.h.b16 %v744
    %v2999 = vunpack.c.l.b16 %v745
    %v3000 = vunpack.c.h.b16 %v745
    %v3001 = vunpack.c.l.b16 %v746
    %v3002 = vunpack.c.h.b16 %v746
    %v3003 = vunpack.c.l.b16 %v747
    %v3004 = vunpack.c.h.b16 %v747
    %v3005 = vunpack.c.l.b16 %v748
    %v3006 = vunpack.c.h.b16 %v748
    %v3007 = vunpack.c.l.b16 %v749
    %v3008 = vunpack.c.h.b16 %v749
    %v3009 = vunpack.c.l.b16 %v750
    %v3010 = vunpack.c.h.b16 %v750
    %v3011 = vunpack.c.l.b16 %v751
    %v3012 = vunpack.c.h.b16 %v751
    %v3013 = vunpack.c.l.b16 %v752
    %v3014 = vunpack.c.h.b16 %v752
    %v3015 = vunpack.c.l.b16 %v753
    %v3016 = vunpack.c.h.b16 %v753
    %v3017 = vunpack.c.l.b16 %v754
    %v3018 = vunpack.c.h.b16 %v754
    %v3019 = vunpack.c.l.b16 %v755
    %v3020 = vunpack.c.h.b16 %v755
    %v3021 = vunpack.c.l.b16 %v756
    %v3022 = vunpack.c.h.b16 %v756
    %v3023 = vunpack.c.l.b16 %v757
    %v3024 = vunpack.c.h.b16 %v757
    %v3025 = vunpack.c.l.b16 %v758
    %v3026 = vunpack.c.h.b16 %v758
    %v3027 = vunpack.c.l.b16 %v759
    %v3028 = vunpack.c.h.b16 %v759
    %v3029 = vunpack.c.l.b16 %v760
    %v3030 = vunpack.c.h.b16 %v760
    %v3031 = vunpack.c.l.b16 %v761
    %v3032 = vunpack.c.h.b16 %v761
    %v3033 = vunpack.c.l.b16 %v762
    %v3034 = vunpack.c.h.b16 %v762
    %v3035 = vunpack.c.l.b16 %v763
    %v3036 = vunpack.c.h.b16 %v763
    %v3037 = vunpack.c.l.b16 %v764
    %v3038 = vunpack.c.h.b16 %v764
    %v3039 = vunpack.c.l.b16 %v765
    %v3040 = vunpack.c.h.b16 %v765
    %v3041 = vunpack.c.l.b16 %v766
    %v3042 = vunpack.c.h.b16 %v766
    %v3043 = vunpack.c.l.b16 %v767
    %v3044 = vunpack.c.h.b16 %v767
    %v3045 = vunpack.c.l.b16 %v768
    %v3046 = vunpack.c.h.b16 %v768
    %v3047 = vunpack.c.l.b16 %v769
    %v3048 = vunpack.c.h.b16 %v769
    %v3049 = vunpack.c.l.b16 %v770
    %v3050 = vunpack.c.h.b16 %v770
    %v3051 = vunpack.c.l.b16 %v771
    %v3052 = vunpack.c.h.b16 %v771
    %v3053 = vunpack.c.l.b16 %v772
    %v3054 = vunpack.c.h.b16 %v772
    %v3055 = vunpack.c.l.b16 %v773
    %v3056 = vunpack.c.h.b16 %v773
    %v3057 = vunpack.c.l.b16 %v774
    %v3058 = vunpack.c.h.b16 %v774
    %v3059 = vunpack.c.l.b16 %v775
    %v3060 = vunpack.c.h.b16 %v775
    %v3061 = vunpack.c.l.b16 %v776
    %v3062 = vunpack.c.h.b16 %v776
    %v3063 = vunpack.c.l.b16 %v777
    %v3064 = vunpack.c.h.b16 %v777
    %v3065 = vunpack.c.l.b16 %v778
    %v3066 = vunpack.c.h.b16 %v778
    %v3067 = vunpack.c.l.b16 %v779
    %v3068 = vunpack.c.h.b16 %v779
    %v3069 = vunpack.c.l.b16 %v780
    %v3070 = vunpack.c.h.b16 %v780
    %v3071 = vunpack.c.l.b16 %v781
    %v3072 = vunpack.c.h.b16 %v781
    %v3073 = vunpack.c.l.b16 %v782
    %v3074 = vunpack.c.h.b16 %v782
    %v3075 = vunpack.c.l.b16 %v783
    %v3076 = vunpack.c.h.b16 %v783
    %v3077 = vunpack.c.l.b16 %v784
    %v3078 = vunpack.c.h.b16 %v784
    %v3079 = vunpack.c.l.b16 %v785
    %v3080 = vunpack.c.h.b16 %v785
    %v3081 = vunpack.c.l.b16 %v786
    %v3082 = vunpack.c.h.b16 %v786
    %v3083 = vunpack.c.l.b16 %v787
    %v3084 = vunpack.c.h.b16 %v787
    %v3085 = vunpack.c.l.b16 %v788
    %v3086 = vunpack.c.h.b16 %v788
    %v3087 = vunpack.c.l.b16 %v789
    %v3088 = vunpack.c.h.b16 %v789
    %v3089 = vunpack.c.l.b16 %v790
    %v3090 = vunpack.c.h.b16 %v790
    %v3091 = vunpack.c.l.b16 %v791
    %v3092 = vunpack.c.h.b16 %v791
    %v3093 = vunpack.c.l.b16 %v792
    %v3094 = vunpack.c.h.b16 %v792
    %v3095 = vunpack.c.l.b16 %v793
    %v3096 = vunpack.c.h.b16 %v793
    %v3097 = vunpack.c.l.b16 %v794
    %v3098 = vunpack.c.h.b16 %v794
    %v3099 = vunpack.c.l.b16 %v795
    %v3100 = vunpack.c.h.b16 %v795
    %v3101 = vunpack.c.l.b16 %v796
    %v3102 = vunpack.c.h.b16 %v796
    %v3103 = vunpack.c.l.b16 %v797
    %v3104 = vunpack.c.h.b16 %v797
    %v3105 = vunpack.c.l.b16 %v798
    %v3106 = vunpack.c.h.b16 %v798
    %v3107 = vunpack.c.l.b16 %v799
    %v3108 = vunpack.c.h.b16 %v799
    %v3109 = vunpack.c.l.b16 %v800
    %v3110 = vunpack.c.h.b16 %v800
    %v3111 = vunpack.c.l.b16 %v801
    %v3112 = vunpack.c.h.b16 %v801
    %v3113 = vunpack.c.l.b16 %v802
    %v3114 = vunpack.c.h.b16 %v802
    %v3115 = vunpack.c.l.b16 %v803
    %v3116 = vunpack.c.h.b16 %v803
    %v3117 = vunpack.c.l.b16 %v804
    %v3118 = vunpack.c.h.b16 %v804
    %v3119 = vunpack.c.l.b16 %v805
    %v3120 = vunpack.c.h.b16 %v805
    %v3121 = vunpack.c.l.b16 %v806
    %v3122 = vunpack.c.h.b16 %v806
    %v3123 = vunpack.c.l.b16 %v807
    %v3124 = vunpack.c.h.b16 %v807
    %v3125 = vunpack.c.l.b16 %v808
    %v3126 = vunpack.c.h.b16 %v808
    %v3127 = vunpack.c.l.b16 %v809
    %v3128 = vunpack.c.h.b16 %v809
    %v3129 = vunpack.c.l.b16 %v810
    %v3130 = vunpack.c.h.b16 %v810
    %v3131 = vunpack.c.l.b16 %v811
    %v3132 = vunpack.c.h.b16 %v811
    %v3133 = vunpack.c.l.b16 %v812
    %v3134 = vunpack.c.h.b16 %v812
    %v3135 = vunpack.c.l.b16 %v813
    %v3136 = vunpack.c.h.b16 %v813
    %v3137 = vunpack.c.l.b16 %v814
    %v3138 = vunpack.c.h.b16 %v814
    %v3139 = vunpack.c.l.b16 %v815
    %v3140 = vunpack.c.h.b16 %v815
    %v3141 = vunpack.c.l.b16 %v816
    %v3142 = vunpack.c.h.b16 %v816
    %v3143 = vunpack.c.l.b16 %v817
    %v3144 = vunpack.c.h.b16 %v817
    %v3145 = vunpack.c.l.b16 %v818
    %v3146 = vunpack.c.h.b16 %v818
    %v3147 = vunpack.c.l.b16 %v819
    %v3148 = vunpack.c.h.b16 %v819
    %v3149 = vunpack.c.l.b16 %v820
    %v3150 = vunpack.c.h.b16 %v820
    %v3151 = vunpack.c.l.b16 %v821
    %v3152 = vunpack.c.h.b16 %v821
    %v3153 = vpack.c.b16 %v1649, %v1617
    %v3154 = vpack.c.b16 %v1650, %v1618
    %v3155 = vpack.c.b16 %v1651, %v1619
    %v3156 = vpack.c.b16 %v1652, %v1620
    %v3157 = vpack.c.b16 %v1653, %v1621
    %v3158 = vpack.c.b16 %v1654, %v1622
    %v3159 = vpack.c.b16 %v1655, %v1623
    %v3160 = vpack.c.b16 %v1656, %v1624
    %v3161 = vpack.c.b16 %v1657, %v1625
    %v3162 = vpack.c.b16 %v1658, %v1626
    %v3163 = vpack.c.b16 %v1659, %v1627
    %v3164 = vpack.c.b16 %v1660, %v1628
    %v3165 = vpack.c.b16 %v1661, %v1629
    %v3166 = vpack.c.b16 %v1662, %v1630
    %v3167 = vpack.c.b16 %v1663, %v1631
    %v3168 = vpack.c.b16 %v1664, %v1632
    %v3169 = vpack.c.b16 %v1665, %v1633
    %v3170 = vpack.c.b16 %v1666, %v1634
    %v3171 = vpack.c.b16 %v1667, %v1635
    %v3172 = vpack.c.b16 %v1668, %v1636
    %v3173 = vpack.c.b16 %v1669, %v1637
    %v3174 = vpack.c.b16 %v1670, %v1638
    %v3175 = vpack.c.b16 %v1671, %v1639
    %v3176 = vpack.c.b16 %v1672, %v1640
    %v3177 = vpack.c.b16 %v1673, %v1641
    %v3178 = vpack.c.b16 %v1674, %v1642
    %v3179 = vpack.c.b16 %v1675, %v1643
    %v3180 = vpack.c.b16 %v1676, %v1644
    %v3181 = vpack.c.b16 %v1677, %v1645
    %v3182 = vpack.c.b16 %v1678, %v1646
    %v3183 = vpack.c.b16 %v1679, %v1647
    %v3184 = vpack.c.b16 %v1680, %v1648
    %v3185 = vpack.c.b16 %v1713, %v1681
    %v3186 = vpack.c.b16 %v1714, %v1682
    %v3187 = vpack.c.b16 %v1715, %v1683
    %v3188 = vpack.c.b16 %v1716, %v1684
    %v3189 = vpack.c.b16 %v1717, %v1685
    %v3190 = vpack.c.b16 %v1718, %v1686
    %v3191 = vpack.c.b16 %v1719, %v1687
    %v3192 = vpack.c.b16 %v1720, %v1688
    %v3193 = vpack.c.b16 %v1721, %v1689
    %v3194 = vpack.c.b16 %v1722, %v1690
    %v3195 = vpack.c.b16 %v1723, %v1691
    %v3196 = vpack.c.b16 %v1724, %v1692
    %v3197 = vpack.c.b16 %v1725, %v1693
    %v3198 = vpack.c.b16 %v1726, %v1694
    %v3199 = vpack.c.b16 %v1727, %v1695
    %v3200 = vpack.c.b16 %v1728, %v1696
    %v3201 = vpack.c.b16 %v1729, %v1697
    %v3202 = vpack.c.b16 %v1730, %v1698
    %v3203 = vpack.c.b16 %v1731, %v1699
    %v3204 = vpack.c.b16 %v1732, %v1700
    %v3205 = vpack.c.b16 %v1733, %v1701
    %v3206 = vpack.c.b16 %v1734, %v1702
    %v3207 = vpack.c.b16 %v1735, %v1703
    %v3208 = vpack.c.b16 %v1736, %v1704
    %v3209 = vpack.c.b16 %v1737, %v1705
    %v3210 = vpack.c.b16 %v1738, %v1706
    %v3211 = vpack.c.b16 %v1739, %v1707
    %v3212 = vpack.c.b16 %v1740, %v1708
    %v3213 = vpack.c.b16 %v1741, %v1709
    %v3214 = vpack.c.b16 %v1742, %v1710
    %v3215 = vpack.c.b16 %v1743, %v1711
    %v3216 = vpack.c.b16 %v1744, %v1712
    %v3217 = vpack.c.b16 %v1777, %v1745
    %v3218 = vpack.c.b16 %v1778, %v1746
    %v3219 = vpack.c.b16 %v1779, %v1747
    %v3220 = vpack.c.b16 %v1780, %v1748
    %v3221 = vpack.c.b16 %v1781, %v1749
    %v3222 = vpack.c.b16 %v1782, %v1750
    %v3223 = vpack.c.b16 %v1783, %v1751
    %v3224 = vpack.c.b16 %v1784, %v1752
    %v3225 = vpack.c.b16 %v1785, %v1753
    %v3226 = vpack.c.b16 %v1786, %v1754
    %v3227 = vpack.c.b16 %v1787, %v1755
    %v3228 = vpack.c.b16 %v1788, %v1756
    %v3229 = vpack.c.b16 %v1789, %v1757
    %v3230 = vpack.c.b16 %v1790, %v1758
    %v3231 = vpack.c.b16 %v1791, %v1759
    %v3232 = vpack.c.b16 %v1792, %v1760
    %v3233 = vpack.c.b16 %v1793, %v1761
    %v3234 = vpack.c.b16 %v1794, %v1762
    %v3235 = vpack.c.b16 %v1795, %v1763
    %v3236 = vpack.c.b16 %v1796, %v1764
    %v3237 = vpack.c.b16 %v1797, %v1765
    %v3238 = vpack.c.b16 %v1798, %v1766
    %v3239 = vpack.c.b16 %v1799, %v1767
    %v3240 = vpack.c.b16 %v1800, %v1768
    %v3241 = vpack.c.b16 %v1801, %v1769
    %v3242 = vpack.c.b16 %v1802, %v1770
    %v3243 = vpack.c.b16 %v1803, %v1771
    %v3244 = vpack.c.b16 %v1804, %v1772
    %v3245 = vpack.c.b16 %v1805, %v1773
    %v3246 = vpack.c.b16 %v1806, %v1774
    %v3247 = vpack.c.b16 %v1807, %v1775
    %v3248 = vpack.c.b16 %v1808, %v1776
    %v3249 = vpack.c.b16 %v1841, %v1809
    %v3250 = vpack.c.b16 %v1842, %v1810
    %v3251 = vpack.c.b16 %v1843, %v1811
    %v3252 = vpack.c.b16 %v1844, %v1812
    %v3253 = vpack.c.b16 %v1845, %v1813
    %v3254 = vpack.c.b16 %v1846, %v1814
    %v3255 = vpack.c.b16 %v1847, %v1815
    %v3256 = vpack.c.b16 %v1848, %v1816
    %v3257 = vpack.c.b16 %v1849, %v1817
    %v3258 = vpack.c.b16 %v1850, %v1818
    %v3259 = vpack.c.b16 %v1851, %v1819
    %v3260 = vpack.c.b16 %v1852, %v1820
    %v3261 = vpack.c.b16 %v1853, %v1821
    %v3262 = vpack.c.b16 %v1854, %v1822
    %v3263 = vpack.c.b16 %v1855, %v1823
    %v3264 = vpack.c.b16 %v1856, %v1824
    %v3265 = vpack.c.b16 %v1857, %v1825
    %v3266 = vpack.c.b16 %v1858, %v1826
    %v3267 = vpack.c.b16 %v1859, %v1827
    %v3268 = vpack.c.b16 %v1860, %v1828
    %v3269 = vpack.c.b16 %v1861, %v1829
    %v3270 = vpack.c.b16 %v1862, %v1830
    %v3271 = vpack.c.b16 %v1863, %v1831
    %v3272 = vpack.c.b16 %v1864, %v1832
    %v3273 = vpack.c.b16 %v1865, %v1833
    %v3274 = vpack.c.b16 %v1866, %v1834
    %v3275 = vpack.c.b16 %v1867, %v1835
    %v3276 = vpack.c.b16 %v1868, %v1836
    %v3277 = vpack.c.b16 %v1869, %v1837
    %v3278 = vpack.c.b16 %v1870, %v1838
    %v3279 = vpack.c.b16 %v1871, %v1839
    %v3280 = vpack.c.b16 %v1872, %v1840
    %v3281 = vpack.c.b16 %v1905, %v1873
    %v3282 = vpack.c.b16 %v1906, %v1874
    %v3283 = vpack.c.b16 %v1907, %v1875
    %v3284 = vpack.c.b16 %v1908, %v1876
    %v3285 = vpack.c.b16 %v1909, %v1877
    %v3286 = vpack.c.b16 %v1910, %v1878
    %v3287 = vpack.c.b16 %v1911, %v1879
    %v3288 = vpack.c.b16 %v1912, %v1880
    %v3289 = vpack.c.b16 %v1913, %v1881
    %v3290 = vpack.c.b16 %v1914, %v1882
    %v3291 = vpack.c.b16 %v1915, %v1883
    %v3292 = vpack.c.b16 %v1916, %v1884
    %v3293 = vpack.c.b16 %v1917, %v1885
    %v3294 = vpack.c.b16 %v1918, %v1886
    %v3295 = vpack.c.b16 %v1919, %v1887
    %v3296 = vpack.c.b16 %v1920, %v1888
    %v3297 = vpack.c.b16 %v1921, %v1889
    %v3298 = vpack.c.b16 %v1922, %v1890
    %v3299 = vpack.c.b16 %v1923, %v1891
    %v3300 = vpack.c.b16 %v1924, %v1892
    %v3301 = vpack.c.b16 %v1925, %v1893
    %v3302 = vpack.c.b16 %v1926, %v1894
    %v3303 = vpack.c.b16 %v1927, %v1895
    %v3304 = vpack.c.b16 %v1928, %v1896
    %v3305 = vpack.c.b16 %v1929, %v1897
    %v3306 = vpack.c.b16 %v1930, %v1898
    %v3307 = vpack.c.b16 %v1931, %v1899
    %v3308 = vpack.c.b16 %v1932, %v1900
    %v3309 = vpack.c.b16 %v1933, %v1901
    %v3310 = vpack.c.b16 %v1934, %v1902
    %v3311 = vpack.c.b16 %v1935, %v1903
    %v3312 = vpack.c.b16 %v1936, %v1904
    %v3313 = vpack.c.b16 %v1969, %v1937
    %v3314 = vpack.c.b16 %v1970, %v1938
    %v3315 = vpack.c.b16 %v1971, %v1939
    %v3316 = vpack.c.b16 %v1972, %v1940
    %v3317 = vpack.c.b16 %v1973, %v1941
    %v3318 = vpack.c.b16 %v1974, %v1942
    %v3319 = vpack.c.b16 %v1975, %v1943
    %v3320 = vpack.c.b16 %v1976, %v1944
    %v3321 = vpack.c.b16 %v1977, %v1945
    %v3322 = vpack.c.b16 %v1978, %v1946
    %v3323 = vpack.c.b16 %v1979, %v1947
    %v3324 = vpack.c.b16 %v1980, %v1948
    %v3325 = vpack.c.b16 %v1981, %v1949
    %v3326 = vpack.c.b16 %v1982, %v1950
    %v3327 = vpack.c.b16 %v1983, %v1951
    %v3328 = vpack.c.b16 %v1984, %v1952
    %v3329 = vpack.c.b16 %v1985, %v1953
    %v3330 = vpack.c.b16 %v1986, %v1954
    %v3331 = vpack.c.b16 %v1987, %v1955
    %v3332 = vpack.c.b16 %v1988, %v1956
    %v3333 = vpack.c.b16 %v1989, %v1957
    %v3334 = vpack.c.b16 %v1990, %v1958
    %v3335 = vpack.c.b16 %v1991, %v1959
    %v3336 = vpack.c.b16 %v1992, %v1960
    %v3337 = vpack.c.b16 %v1993, %v1961
    %v3338 = vpack.c.b16 %v1994, %v1962
    %v3339 = vpack.c.b16 %v1995, %v1963
    %v3340 = vpack.c.b16 %v1996, %v1964
    %v3341 = vpack.c.b16 %v1997, %v1965
    %v3342 = vpack.c.b16 %v1998, %v1966
    %v3343 = vpack.c.b16 %v1999, %v1967
    %v3344 = vpack.c.b16 %v2000, %v1968
    %v3345 = vpack.c.b16 %v2033, %v2001
    %v3346 = vpack.c.b16 %v2034, %v2002
    %v3347 = vpack.c.b16 %v2035, %v2003
    %v3348 = vpack.c.b16 %v2036, %v2004
    %v3349 = vpack.c.b16 %v2037, %v2005
    %v3350 = vpack.c.b16 %v2038, %v2006
    %v3351 = vpack.c.b16 %v2039, %v2007
    %v3352 = vpack.c.b16 %v2040, %v2008
    %v3353 = vpack.c.b16 %v2041, %v2009
    %v3354 = vpack.c.b16 %v2042, %v2010
    %v3355 = vpack.c.b16 %v2043, %v2011
    %v3356 = vpack.c.b16 %v2044, %v2012
    %v3357 = vpack.c.b16 %v2045, %v2013
    %v3358 = vpack.c.b16 %v2046, %v2014
    %v3359 = vpack.c.b16 %v2047, %v2015
    %v3360 = vpack.c.b16 %v2048, %v2016
    %v3361 = vpack.c.b16 %v2049, %v2017
    %v3362 = vpack.c.b16 %v2050, %v2018
    %v3363 = vpack.c.b16 %v2051, %v2019
    %v3364 = vpack.c.b16 %v2052, %v2020
    %v3365 = vpack.c.b16 %v2053, %v2021
    %v3366 = vpack.c.b16 %v2054, %v2022
    %v3367 = vpack.c.b16 %v2055, %v2023
    %v3368 = vpack.c.b16 %v2056, %v2024
    %v3369 = vpack.c.b16 %v2057, %v2025
    %v3370 = vpack.c.b16 %v2058, %v2026
    %v3371 = vpack.c.b16 %v2059, %v2027
    %v3372 = vpack.c.b16 %v2060, %v2028
    %v3373 = vpack.c.b16 %v2061, %v2029
    %v3374 = vpack.c.b16 %v2062, %v2030
    %v3375 = vpack.c.b16 %v2063, %v2031
    %v3376 = vpack.c.b16 %v2064, %v2032
    %v3377 = vpack.c.b16 %v2097, %v2065
    %v3378 = vpack.c.b16 %v2098, %v2066
    %v3379 = vpack.c.b16 %v2099, %v2067
    %v3380 = vpack.c.b16 %v2100, %v2068
    %v3381 = vpack.c.b16 %v2101, %v2069
    %v3382 = vpack.c.b16 %v2102, %v2070
    %v3383 = vpack.c.b16 %v2103, %v2071
    %v3384 = vpack.c.b16 %v2104, %v2072
    %v3385 = vpack.c.b16 %v2105, %v2073
    %v3386 = vpack.c.b16 %v2106, %v2074
    %v3387 = vpack.c.b16 %v2107, %v2075
    %v3388 = vpack.c.b16 %v2108, %v2076
    %v3389 = vpack.c.b16 %v2109, %v2077
    %v3390 = vpack.c.b16 %v2110, %v2078
    %v3391 = vpack.c.b16 %v2111, %v2079
    %v3392 = vpack.c.b16 %v2112, %v2080
    %v3393 = vpack.c.b16 %v2113, %v2081
    %v3394 = vpack.c.b16 %v2114, %v2082
    %v3395 = vpack.c.b16 %v2115, %v2083
    %v3396 = vpack.c.b16 %v2116, %v2084
    %v3397 = vpack.c.b16 %v2117, %v2085
    %v3398 = vpack.c.b16 %v2118, %v2086
    %v3399 = vpack.c.b16 %v2119, %v2087
    %v3400 = vpack.c.b16 %v2120, %v2088
    %v3401 = vpack.c.b16 %v2121, %v2089
    %v3402 = vpack.c.b16 %v2122, %v2090
    %v3403 = vpack.c.b16 %v2123, %v2091
    %v3404 = vpack.c.b16 %v2124, %v2092
    %v3405 = vpack.c.b16 %v2125, %v2093
    %v3406 = vpack.c.b16 %v2126, %v2094
    %v3407 = vpack.c.b16 %v2127, %v2095
    %v3408 = vpack.c.b16 %v2128, %v2096
    %v3409 = vpack.c.b16 %v2161, %v2129
    %v3410 = vpack.c.b16 %v2162, %v2130
    %v3411 = vpack.c.b16 %v2163, %v2131
    %v3412 = vpack.c.b16 %v2164, %v2132
    %v3413 = vpack.c.b16 %v2165, %v2133
    %v3414 = vpack.c.b16 %v2166, %v2134
    %v3415 = vpack.c.b16 %v2167, %v2135
    %v3416 = vpack.c.b16 %v2168, %v2136
    %v3417 = vpack.c.b16 %v2169, %v2137
    %v3418 = vpack.c.b16 %v2170, %v2138
    %v3419 = vpack.c.b16 %v2171, %v2139
    %v3420 = vpack.c.b16 %v2172, %v2140
    %v3421 = vpack.c.b16 %v2173, %v2141
    %v3422 = vpack.c.b16 %v2174, %v2142
    %v3423 = vpack.c.b16 %v2175, %v2143
    %v3424 = vpack.c.b16 %v2176, %v2144
    %v3425 = vpack.c.b16 %v2177, %v2145
    %v3426 = vpack.c.b16 %v2178, %v2146
    %v3427 = vpack.c.b16 %v2179, %v2147
    %v3428 = vpack.c.b16 %v2180, %v2148
    %v3429 = vpack.c.b16 %v2181, %v2149
    %v3430 = vpack.c.b16 %v2182, %v2150
    %v3431 = vpack.c.b16 %v2183, %v2151
    %v3432 = vpack.c.b16 %v2184, %v2152
    %v3433 = vpack.c.b16 %v2185, %v2153
    %v3434 = vpack.c.b16 %v2186, %v2154
    %v3435 = vpack.c.b16 %v2187, %v2155
    %v3436 = vpack.c.b16 %v2188, %v2156
    %v3437 = vpack.c.b16 %v2189, %v2157
    %v3438 = vpack.c.b16 %v2190, %v2158
    %v3439 = vpack.c.b16 %v2191, %v2159
    %v3440 = vpack.c.b16 %v2192, %v2160
    %v3441 = vpack.c.b16 %v2225, %v2193
    %v3442 = vpack.c.b16 %v2226, %v2194
    %v3443 = vpack.c.b16 %v2227, %v2195
    %v3444 = vpack.c.b16 %v2228, %v2196
    %v3445 = vpack.c.b16 %v2229, %v2197
    %v3446 = vpack.c.b16 %v2230, %v2198
    %v3447 = vpack.c.b16 %v2231, %v2199
    %v3448 = vpack.c.b16 %v2232, %v2200
    %v3449 = vpack.c.b16 %v2233, %v2201
    %v3450 = vpack.c.b16 %v2234, %v2202
    %v3451 = vpack.c.b16 %v2235, %v2203
    %v3452 = vpack.c.b16 %v2236, %v2204
    %v3453 = vpack.c.b16 %v2237, %v2205
    %v3454 = vpack.c.b16 %v2238, %v2206
    %v3455 = vpack.c.b16 %v2239, %v2207
    %v3456 = vpack.c.b16 %v2240, %v2208
    %v3457 = vpack.c.b16 %v2241, %v2209
    %v3458 = vpack.c.b16 %v2242, %v2210
    %v3459 = vpack.c.b16 %v2243, %v2211
    %v3460 = vpack.c.b16 %v2244, %v2212
    %v3461 = vpack.c.b16 %v2245, %v2213
    %v3462 = vpack.c.b16 %v2246, %v2214
    %v3463 = vpack.c.b16 %v2247, %v2215
    %v3464 = vpack.c.b16 %v2248, %v2216
    %v3465 = vpack.c.b16 %v2249, %v2217
    %v3466 = vpack.c.b16 %v2250, %v2218
    %v3467 = vpack.c.b16 %v2251, %v2219
    %v3468 = vpack.c.b16 %v2252, %v2220
    %v3469 = vpack.c.b16 %v2253, %v2221
    %v3470 = vpack.c.b16 %v2254, %v2222
    %v3471 = vpack.c.b16 %v2255, %v2223
    %v3472 = vpack.c.b16 %v2256, %v2224
    %v3473 = vpack.c.b16 %v2289, %v2257
    %v3474 = vpack.c.b16 %v2290, %v2258
    %v3475 = vpack.c.b16 %v2291, %v2259
    %v3476 = vpack.c.b16 %v2292, %v2260
    %v3477 = vpack.c.b16 %v2293, %v2261
    %v3478 = vpack.c.b16 %v2294, %v2262
    %v3479 = vpack.c.b16 %v2295, %v2263
    %v3480 = vpack.c.b16 %v2296, %v2264
    %v3481 = vpack.c.b16 %v2297, %v2265
    %v3482 = vpack.c.b16 %v2298, %v2266
    %v3483 = vpack.c.b16 %v2299, %v2267
    %v3484 = vpack.c.b16 %v2300, %v2268
    %v3485 = vpack.c.b16 %v2301, %v2269
    %v3486 = vpack.c.b16 %v2302, %v2270
    %v3487 = vpack.c.b16 %v2303, %v2271
    %v3488 = vpack.c.b16 %v2304, %v2272
    %v3489 = vpack.c.b16 %v2305, %v2273
    %v3490 = vpack.c.b16 %v2306, %v2274
    %v3491 = vpack.c.b16 %v2307, %v2275
    %v3492 = vpack.c.b16 %v2308, %v2276
    %v3493 = vpack.c.b16 %v2309, %v2277
    %v3494 = vpack.c.b16 %v2310, %v2278
    %v3495 = vpack.c.b16 %v2311, %v2279
    %v3496 = vpack.c.b16 %v2312, %v2280
    %v3497 = vpack.c.b16 %v2313, %v2281
    %v3498 = vpack.c.b16 %v2314, %v2282
    %v3499 = vpack.c.b16 %v2315, %v2283
    %v3500 = vpack.c.b16 %v2316, %v2284
    %v3501 = vpack.c.b16 %v2317, %v2285
    %v3502 = vpack.c.b16 %v2318, %v2286
    %v3503 = vpack.c.b16 %v2319, %v2287
    %v3504 = vpack.c.b16 %v2320, %v2288
    %v3505 = vpack.c.b16 %v2353, %v2321
    %v3506 = vpack.c.b16 %v2354, %v2322
    %v3507 = vpack.c.b16 %v2355, %v2323
    %v3508 = vpack.c.b16 %v2356, %v2324
    %v3509 = vpack.c.b16 %v2357, %v2325
    %v3510 = vpack.c.b16 %v2358, %v2326
    %v3511 = vpack.c.b16 %v2359, %v2327
    %v3512 = vpack.c.b16 %v2360, %v2328
    %v3513 = vpack.c.b16 %v2361, %v2329
    %v3514 = vpack.c.b16 %v2362, %v2330
    %v3515 = vpack.c.b16 %v2363, %v2331
    %v3516 = vpack.c.b16 %v2364, %v2332
    %v3517 = vpack.c.b16 %v2365, %v2333
    %v3518 = vpack.c.b16 %v2366, %v2334
    %v3519 = vpack.c.b16 %v2367, %v2335
    %v3520 = vpack.c.b16 %v2368, %v2336
    %v3521 = vpack.c.b16 %v2369, %v2337
    %v3522 = vpack.c.b16 %v2370, %v2338
    %v3523 = vpack.c.b16 %v2371, %v2339
    %v3524 = vpack.c.b16 %v2372, %v2340
    %v3525 = vpack.c.b16 %v2373, %v2341
    %v3526 = vpack.c.b16 %v2374, %v2342
    %v3527 = vpack.c.b16 %v2375, %v2343
    %v3528 = vpack.c.b16 %v2376, %v2344
    %v3529 = vpack.c.b16 %v2377, %v2345
    %v3530 = vpack.c.b16 %v2378, %v2346
    %v3531 = vpack.c.b16 %v2379, %v2347
    %v3532 = vpack.c.b16 %v2380, %v2348
    %v3533 = vpack.c.b16 %v2381, %v2349
    %v3534 = vpack.c.b16 %v2382, %v2350
    %v3535 = vpack.c.b16 %v2383, %v2351
    %v3536 = vpack.c.b16 %v2384, %v2352
    %v3537 = vpack.c.b16 %v2417, %v2385
    %v3538 = vpack.c.b16 %v2418, %v2386
    %v3539 = vpack.c.b16 %v2419, %v2387
    %v3540 = vpack.c.b16 %v2420, %v2388
    %v3541 = vpack.c.b16 %v2421, %v2389
    %v3542 = vpack.c.b16 %v2422, %v2390
    %v3543 = vpack.c.b16 %v2423, %v2391
    %v3544 = vpack.c.b16 %v2424, %v2392
    %v3545 = vpack.c.b16 %v2425, %v2393
    %v3546 = vpack.c.b16 %v2426, %v2394
    %v3547 = vpack.c.b16 %v2427, %v2395
    %v3548 = vpack.c.b16 %v2428, %v2396
    %v3549 = vpack.c.b16 %v2429, %v2397
    %v3550 = vpack.c.b16 %v2430, %v2398
    %v3551 = vpack.c.b16 %v2431, %v2399
    %v3552 = vpack.c.b16 %v2432, %v2400
    %v3553 = vpack.c.b16 %v2433, %v2401
    %v3554 = vpack.c.b16 %v2434, %v2402
    %v3555 = vpack.c.b16 %v2435, %v2403
    %v3556 = vpack.c.b16 %v2436, %v2404
    %v3557 = vpack.c.b16 %v2437, %v2405
    %v3558 = vpack.c.b16 %v2438, %v2406
    %v3559 = vpack.c.b16 %v2439, %v2407
    %v3560 = vpack.c.b16 %v2440, %v2408
    %v3561 = vpack.c.b16 %v2441, %v2409
    %v3562 = vpack.c.b16 %v2442, %v2410
    %v3563 = vpack.c.b16 %v2443, %v2411
    %v3564 = vpack.c.b16 %v2444, %v2412
    %v3565 = vpack.c.b16 %v2445, %v2413
    %v3566 = vpack.c.b16 %v2446, %v2414
    %v3567 = vpack.c.b16 %v2447, %v2415
    %v3568 = vpack.c.b16 %v2448, %v2416
    %v3569 = vpack.c.b16 %v2481, %v2449
    %v3570 = vpack.c.b16 %v2482, %v2450
    %v3571 = vpack.c.b16 %v2483, %v2451
    %v3572 = vpack.c.b16 %v2484, %v2452
    %v3573 = vpack.c.b16 %v2485, %v2453
    %v3574 = vpack.c.b16 %v2486, %v2454
    %v3575 = vpack.c.b16 %v2487, %v2455
    %v3576 = vpack.c.b16 %v2488, %v2456
    %v3577 = vpack.c.b16 %v2489, %v2457
    %v3578 = vpack.c.b16 %v2490, %v2458
    %v3579 = vpack.c.b16 %v2491, %v2459
    %v3580 = vpack.c.b16 %v2492, %v2460
    %v3581 = vpack.c.b16 %v2493, %v2461
    %v3582 = vpack.c.b16 %v2494, %v2462
    %v3583 = vpack.c.b16 %v2495, %v2463
    %v3584 = vpack.c.b16 %v2496, %v2464
    %v3585 = vpack.c.b16 %v2497, %v2465
    %v3586 = vpack.c.b16 %v2498, %v2466
    %v3587 = vpack.c.b16 %v2499, %v2467
    %v3588 = vpack.c.b16 %v2500, %v2468
    %v3589 = vpack.c.b16 %v2501, %v2469
    %v3590 = vpack.c.b16 %v2502, %v2470
    %v3591 = vpack.c.b16 %v2503, %v2471
    %v3592 = vpack.c.b16 %v2504, %v2472
    %v3593 = vpack.c.b16 %v2505, %v2473
    %v3594 = vpack.c.b16 %v2506, %v2474
    %v3595 = vpack.c.b16 %v2507, %v2475
    %v3596 = vpack.c.b16 %v2508, %v2476
    %v3597 = vpack.c.b16 %v2509, %v2477
    %v3598 = vpack.c.b16 %v2510, %v2478
    %v3599 = vpack.c.b16 %v2511, %v2479
    %v3600 = vpack.c.b16 %v2512, %v2480
    %v3601 = vpack.c.b16 %v2545, %v2513
    %v3602 = vpack.c.b16 %v2546, %v2514
    %v3603 = vpack.c.b16 %v2547, %v2515
    %v3604 = vpack.c.b16 %v2548, %v2516
    %v3605 = vpack.c.b16 %v2549, %v2517
    %v3606 = vpack.c.b16 %v2550, %v2518
    %v3607 = vpack.c.b16 %v2551, %v2519
    %v3608 = vpack.c.b16 %v2552, %v2520
    %v3609 = vpack.c.b16 %v2553, %v2521
    %v3610 = vpack.c.b16 %v2554, %v2522
    %v3611 = vpack.c.b16 %v2555, %v2523
    %v3612 = vpack.c.b16 %v2556, %v2524
    %v3613 = vpack.c.b16 %v2557, %v2525
    %v3614 = vpack.c.b16 %v2558, %v2526
    %v3615 = vpack.c.b16 %v2559, %v2527
    %v3616 = vpack.c.b16 %v2560, %v2528
    %v3617 = vpack.c.b16 %v2561, %v2529
    %v3618 = vpack.c.b16 %v2562, %v2530
    %v3619 = vpack.c.b16 %v2563, %v2531
    %v3620 = vpack.c.b16 %v2564, %v2532
    %v3621 = vpack.c.b16 %v2565, %v2533
    %v3622 = vpack.c.b16 %v2566, %v2534
    %v3623 = vpack.c.b16 %v2567, %v2535
    %v3624 = vpack.c.b16 %v2568, %v2536
    %v3625 = vpack.c.b16 %v2569, %v2537
    %v3626 = vpack.c.b16 %v2570, %v2538
    %v3627 = vpack.c.b16 %v2571, %v2539
    %v3628 = vpack.c.b16 %v2572, %v2540
    %v3629 = vpack.c.b16 %v2573, %v2541
    %v3630 = vpack.c.b16 %v2574, %v2542
    %v3631 = vpack.c.b16 %v2575, %v2543
    %v3632 = vpack.c.b16 %v2576, %v2544
    %v3633 = vpack.c.b16 %v2609, %v2577
    %v3634 = vpack.c.b16 %v2610, %v2578
    %v3635 = vpack.c.b16 %v2611, %v2579
    %v3636 = vpack.c.b16 %v2612, %v2580
    %v3637 = vpack.c.b16 %v2613, %v2581
    %v3638 = vpack.c.b16 %v2614, %v2582
    %v3639 = vpack.c.b16 %v2615, %v2583
    %v3640 = vpack.c.b16 %v2616, %v2584
    %v3641 = vpack.c.b16 %v2617, %v2585
    %v3642 = vpack.c.b16 %v2618, %v2586
    %v3643 = vpack.c.b16 %v2619, %v2587
    %v3644 = vpack.c.b16 %v2620, %v2588
    %v3645 = vpack.c.b16 %v2621, %v2589
    %v3646 = vpack.c.b16 %v2622, %v2590
    %v3647 = vpack.c.b16 %v2623, %v2591
    %v3648 = vpack.c.b16 %v2624, %v2592
    %v3649 = vpack.c.b16 %v2625, %v2593
    %v3650 = vpack.c.b16 %v2626, %v2594
    %v3651 = vpack.c.b16 %v2627, %v2595
    %v3652 = vpack.c.b16 %v2628, %v2596
    %v3653 = vpack.c.b16 %v2629, %v2597
    %v3654 = vpack.c.b16 %v2630, %v2598
    %v3655 = vpack.c.b16 %v2631, %v2599
    %v3656 = vpack.c.b16 %v2632, %v2600
    %v3657 = vpack.c.b16 %v2633, %v2601
    %v3658 = vpack.c.b16 %v2634, %v2602
    %v3659 = vpack.c.b16 %v2635, %v2603
    %v3660 = vpack.c.b16 %v2636, %v2604
    %v3661 = vpack.c.b16 %v2637, %v2605
    %v3662 = vpack.c.b16 %v2638, %v2606
    %v3663 = vpack.c.b16 %v2639, %v2607
    %v3664 = vpack.c.b16 %v2640, %v2608
    %v3665 = vpack.c.b16 %v2673, %v2641
    %v3666 = vpack.c.b16 %v2674, %v2642
    %v3667 = vpack.c.b16 %v2675, %v2643
    %v3668 = vpack.c.b16 %v2676, %v2644
    %v3669 = vpack.c.b16 %v2677, %v2645
    %v3670 = vpack.c.b16 %v2678, %v2646
    %v3671 = vpack.c.b16 %v2679, %v2647
    %v3672 = vpack.c.b16 %v2680, %v2648
    %v3673 = vpack.c.b16 %v2681, %v2649
    %v3674 = vpack.c.b16 %v2682, %v2650
    %v3675 = vpack.c.b16 %v2683, %v2651
    %v3676 = vpack.c.b16 %v2684, %v2652
    %v3677 = vpack.c.b16 %v2685, %v2653
    %v3678 = vpack.c.b16 %v2686, %v2654
    %v3679 = vpack.c.b16 %v2687, %v2655
    %v3680 = vpack.c.b16 %v2688, %v2656
    %v3681 = vpack.c.b16 %v2689, %v2657
    %v3682 = vpack.c.b16 %v2690, %v2658
    %v3683 = vpack.c.b16 %v2691, %v2659
    %v3684 = vpack.c.b16 %v2692, %v2660
    %v3685 = vpack.c.b16 %v2693, %v2661
    %v3686 = vpack.c.b16 %v2694, %v2662
    %v3687 = vpack.c.b16 %v2695, %v2663
    %v3688 = vpack.c.b16 %v2696, %v2664
    %v3689 = vpack.c.b16 %v2697, %v2665
    %v3690 = vpack.c.b16 %v2698, %v2666
    %v3691 = vpack.c.b16 %v2699, %v2667
    %v3692 = vpack.c.b16 %v2700, %v2668
    %v3693 = vpack.c.b16 %v2701, %v2669
    %v3694 = vpack.c.b16 %v2702, %v2670
    %v3695 = vpack.c.b16 %v2703, %v2671
    %v3696 = vpack.c.b16 %v2704, %v2672
    %v3697 = vpack.c.b16 %v2737, %v2705
    %v3698 = vpack.c.b16 %v2738, %v2706
    %v3699 = vpack.c.b16 %v2739, %v2707
    %v3700 = vpack.c.b16 %v2740, %v2708
    %v3701 = vpack.c.b16 %v2741, %v2709
    %v3702 = vpack.c.b16 %v2742, %v2710
    %v3703 = vpack.c.b16 %v2743, %v2711
    %v3704 = vpack.c.b16 %v2744, %v2712
    %v3705 = vpack.c.b16 %v2745, %v2713
    %v3706 = vpack.c.b16 %v2746, %v2714
    %v3707 = vpack.c.b16 %v2747, %v2715
    %v3708 = vpack.c.b16 %v2748, %v2716
    %v3709 = vpack.c.b16 %v2749, %v2717
    %v3710 = vpack.c.b16 %v2750, %v2718
    %v3711 = vpack.c.b16 %v2751, %v2719
    %v3712 = vpack.c.b16 %v2752, %v2720
    %v3713 = vpack.c.b16 %v2753, %v2721
    %v3714 = vpack.c.b16 %v2754, %v2722
    %v3715 = vpack.c.b16 %v2755, %v2723
    %v3716 = vpack.c.b16 %v2756, %v2724
    %v3717 = vpack.c.b16 %v2757, %v2725
    %v3718 = vpack.c.b16 %v2758, %v2726
    %v3719 = vpack.c.b16 %v2759, %v2727
    %v3720 = vpack.c.b16 %v2760, %v2728
    %v3721 = vpack.c.b16 %v2761, %v2729
    %v3722 = vpack.c.b16 %v2762, %v2730
    %v3723 = vpack.c.b16 %v2763, %v2731
    %v3724 = vpack.c.b16 %v2764, %v2732
    %v3725 = vpack.c.b16 %v2765, %v2733
    %v3726 = vpack.c.b16 %v2766, %v2734
    %v3727 = vpack.c.b16 %v2767, %v2735
    %v3728 = vpack.c.b16 %v2768, %v2736
    %v3729 = vpack.c.b16 %v2801, %v2769
    %v3730 = vpack.c.b16 %v2802, %v2770
    %v3731 = vpack.c.b16 %v2803, %v2771
    %v3732 = vpack.c.b16 %v2804, %v2772
    %v3733 = vpack.c.b16 %v2805, %v2773
    %v3734 = vpack.c.b16 %v2806, %v2774
    %v3735 = vpack.c.b16 %v2807, %v2775
    %v3736 = vpack.c.b16 %v2808, %v2776
    %v3737 = vpack.c.b16 %v2809, %v2777
    %v3738 = vpack.c.b16 %v2810, %v2778
    %v3739 = vpack.c.b16 %v2811, %v2779
    %v3740 = vpack.c.b16 %v2812, %v2780
    %v3741 = vpack.c.b16 %v2813, %v2781
    %v3742 = vpack.c.b16 %v2814, %v2782
    %v3743 = vpack.c.b16 %v2815, %v2783
    %v3744 = vpack.c.b16 %v2816, %v2784
    %v3745 = vpack.c.b16 %v2817, %v2785
    %v3746 = vpack.c.b16 %v2818, %v2786
    %v3747 = vpack.c.b16 %v2819, %v2787
    %v3748 = vpack.c.b16 %v2820, %v2788
    %v3749 = vpack.c.b16 %v2821, %v2789
    %v3750 = vpack.c.b16 %v2822, %v2790
    %v3751 = vpack.c.b16 %v2823, %v2791
    %v3752 = vpack.c.b16 %v2824, %v2792
    %v3753 = vpack.c.b16 %v2825, %v2793
    %v3754 = vpack.c.b16 %v2826, %v2794
    %v3755 = vpack.c.b16 %v2827, %v2795
    %v3756 = vpack.c.b16 %v2828, %v2796
    %v3757 = vpack.c.b16 %v2829, %v2797
    %v3758 = vpack.c.b16 %v2830, %v2798
    %v3759 = vpack.c.b16 %v2831, %v2799
    %v3760 = vpack.c.b16 %v2832, %v2800
    %v3761 = vpack.c.b16 %v2865, %v2833
    %v3762 = vpack.c.b16 %v2866, %v2834
    %v3763 = vpack.c.b16 %v2867, %v2835
    %v3764 = vpack.c.b16 %v2868, %v2836
    %v3765 = vpack.c.b16 %v2869, %v2837
    %v3766 = vpack.c.b16 %v2870, %v2838
    %v3767 = vpack.c.b16 %v2871, %v2839
    %v3768 = vpack.c.b16 %v2872, %v2840
    %v3769 = vpack.c.b16 %v2873, %v2841
    %v3770 = vpack.c.b16 %v2874, %v2842
    %v3771 = vpack.c.b16 %v2875, %v2843
    %v3772 = vpack.c.b16 %v2876, %v2844
    %v3773 = vpack.c.b16 %v2877, %v2845
    %v3774 = vpack.c.b16 %v2878, %v2846
    %v3775 = vpack.c.b16 %v2879, %v2847
    %v3776 = vpack.c.b16 %v2880, %v2848
    %v3777 = vpack.c.b16 %v2881, %v2849
    %v3778 = vpack.c.b16 %v2882, %v2850
    %v3779 = vpack.c.b16 %v2883, %v2851
    %v3780 = vpack.c.b16 %v2884, %v2852
    %v3781 = vpack.c.b16 %v2885, %v2853
    %v3782 = vpack.c.b16 %v2886, %v2854
    %v3783 = vpack.c.b16 %v2887, %v2855
    %v3784 = vpack.c.b16 %v2888, %v2856
    %v3785 = vpack.c.b16 %v2889, %v2857
    %v3786 = vpack.c.b16 %v2890, %v2858
    %v3787 = vpack.c.b16 %v2891, %v2859
    %v3788 = vpack.c.b16 %v2892, %v2860
    %v3789 = vpack.c.b16 %v2893, %v2861
    %v3790 = vpack.c.b16 %v2894, %v2862
    %v3791 = vpack.c.b16 %v2895, %v2863
    %v3792 = vpack.c.b16 %v2896, %v2864
    %v3793 = vpack.c.b16 %v2929, %v2897
    %v3794 = vpack.c.b16 %v2930, %v2898
    %v3795 = vpack.c.b16 %v2931, %v2899
    %v3796 = vpack.c.b16 %v2932, %v2900
    %v3797 = vpack.c.b16 %v2933, %v2901
    %v3798 = vpack.c.b16 %v2934, %v2902
    %v3799 = vpack.c.b16 %v2935, %v2903
    %v3800 = vpack.c.b16 %v2936, %v2904
    %v3801 = vpack.c.b16 %v2937, %v2905
    %v3802 = vpack.c.b16 %v2938, %v2906
    %v3803 = vpack.c.b16 %v2939, %v2907
    %v3804 = vpack.c.b16 %v2940, %v2908
    %v3805 = vpack.c.b16 %v2941, %v2909
    %v3806 = vpack.c.b16 %v2942, %v2910
    %v3807 = vpack.c.b16 %v2943, %v2911
    %v3808 = vpack.c.b16 %v2944, %v2912
    %v3809 = vpack.c.b16 %v2945, %v2913
    %v3810 = vpack.c.b16 %v2946, %v2914
    %v3811 = vpack.c.b16 %v2947, %v2915
    %v3812 = vpack.c.b16 %v2948, %v2916
    %v3813 = vpack.c.b16 %v2949, %v2917
    %v3814 = vpack.c.b16 %v2950, %v2918
    %v3815 = vpack.c.b16 %v2951, %v2919
    %v3816 = vpack.c.b16 %v2952, %v2920
    %v3817 = vpack.c.b16 %v2953, %v2921
    %v3818 = vpack.c.b16 %v2954, %v2922
    %v3819 = vpack.c.b16 %v2955, %v2923
    %v3820 = vpack.c.b16 %v2956, %v2924
    %v3821 = vpack.c.b16 %v2957, %v2925
    %v3822 = vpack.c.b16 %v2958, %v2926
    %v3823 = vpack.c.b16 %v2959, %v2927
    %v3824 = vpack.c.b16 %v2960, %v2928
    %v3825 = vpack.c.b16 %v2993, %v2961
    %v3826 = vpack.c.b16 %v2994, %v2962
    %v3827 = vpack.c.b16 %v2995, %v2963
    %v3828 = vpack.c.b16 %v2996, %v2964
    %v3829 = vpack.c.b16 %v2997, %v2965
    %v3830 = vpack.c.b16 %v2998, %v2966
    %v3831 = vpack.c.b16 %v2999, %v2967
    %v3832 = vpack.c.b16 %v3000, %v2968
    %v3833 = vpack.c.b16 %v3001, %v2969
    %v3834 = vpack.c.b16 %v3002, %v2970
    %v3835 = vpack.c.b16 %v3003, %v2971
    %v3836 = vpack.c.b16 %v3004, %v2972
    %v3837 = vpack.c.b16 %v3005, %v2973
    %v3838 = vpack.c.b16 %v3006, %v2974
    %v3839 = vpack.c.b16 %v3007, %v2975
    %v3840 = vpack.c.b16 %v3008, %v2976
    %v3841 = vpack.c.b16 %v3009, %v2977
    %v3842 = vpack.c.b16 %v3010, %v2978
    %v3843 = vpack.c.b16 %v3011, %v2979
    %v3844 = vpack.c.b16 %v3012, %v2980
    %v3845 = vpack.c.b16 %v3013, %v2981
    %v3846 = vpack.c.b16 %v3014, %v2982
    %v3847 = vpack.c.b16 %v3015, %v2983
    %v3848 = vpack.c.b16 %v3016, %v2984
    %v3849 = vpack.c.b16 %v3017, %v2985
    %v3850 = vpack.c.b16 %v3018, %v2986
    %v3851 = vpack.c.b16 %v3019, %v2987
    %v3852 = vpack.c.b16 %v3020, %v2988
    %v3853 = vpack.c.b16 %v3021, %v2989
    %v3854 = vpack.c.b16 %v3022, %v2990
    %v3855 = vpack.c.b16 %v3023, %v2991
    %v3856 = vpack.c.b16 %v3024, %v2992
    %v3857 = vpack.c.b16 %v3057, %v3025
    %v3858 = vpack.c.b16 %v3058, %v3026
    %v3859 = vpack.c.b16 %v3059, %v3027
    %v3860 = vpack.c.b16 %v3060, %v3028
    %v3861 = vpack.c.b16 %v3061, %v3029
    %v3862 = vpack.c.b16 %v3062, %v3030
    %v3863 = vpack.c.b16 %v3063, %v3031
    %v3864 = vpack.c.b16 %v3064, %v3032
    %v3865 = vpack.c.b16 %v3065, %v3033
    %v3866 = vpack.c.b16 %v3066, %v3034
    %v3867 = vpack.c.b16 %v3067, %v3035
    %v3868 = vpack.c.b16 %v3068, %v3036
    %v3869 = vpack.c.b16 %v3069, %v3037
    %v3870 = vpack.c.b16 %v3070, %v3038
    %v3871 = vpack.c.b16 %v3071, %v3039
    %v3872 = vpack.c.b16 %v3072, %v3040
    %v3873 = vpack.c.b16 %v3073, %v3041
    %v3874 = vpack.c.b16 %v3074, %v3042
    %v3875 = vpack.c.b16 %v3075, %v3043
    %v3876 = vpack.c.b16 %v3076, %v3044
    %v3877 = vpack.c.b16 %v3077, %v3045
    %v3878 = vpack.c.b16 %v3078, %v3046
    %v3879 = vpack.c.b16 %v3079, %v3047
    %v3880 = vpack.c.b16 %v3080, %v3048
    %v3881 = vpack.c.b16 %v3081, %v3049
    %v3882 = vpack.c.b16 %v3082, %v3050
    %v3883 = vpack.c.b16 %v3083, %v3051
    %v3884 = vpack.c.b16 %v3084, %v3052
    %v3885 = vpack.c.b16 %v3085, %v3053
    %v3886 = vpack.c.b16 %v3086, %v3054
    %v3887 = vpack.c.b16 %v3087, %v3055
    %v3888 = vpack.c.b16 %v3088, %v3056
    %v3889 = vpack.c.b16 %v3121, %v3089
    %v3890 = vpack.c.b16 %v3122, %v3090
    %v3891 = vpack.c.b16 %v3123, %v3091
    %v3892 = vpack.c.b16 %v3124, %v3092
    %v3893 = vpack.c.b16 %v3125, %v3093
    %v3894 = vpack.c.b16 %v3126, %v3094
    %v3895 = vpack.c.b16 %v3127, %v3095
    %v3896 = vpack.c.b16 %v3128, %v3096
    %v3897 = vpack.c.b16 %v3129, %v3097
    %v3898 = vpack.c.b16 %v3130, %v3098
    %v3899 = vpack.c.b16 %v3131, %v3099
    %v3900 = vpack.c.b16 %v3132, %v3100
    %v3901 = vpack.c.b16 %v3133, %v3101
    %v3902 = vpack.c.b16 %v3134, %v3102
    %v3903 = vpack.c.b16 %v3135, %v3103
    %v3904 = vpack.c.b16 %v3136, %v3104
    %v3905 = vpack.c.b16 %v3137, %v3105
    %v3906 = vpack.c.b16 %v3138, %v3106
    %v3907 = vpack.c.b16 %v3139, %v3107
    %v3908 = vpack.c.b16 %v3140, %v3108
    %v3909 = vpack.c.b16 %v3141, %v3109
    %v3910 = vpack.c.b16 %v3142, %v3110
    %v3911 = vpack.c.b16 %v3143, %v3111
    %v3912 = vpack.c.b16 %v3144, %v3112
    %v3913 = vpack.c.b16 %v3145, %v3113
    %v3914 = vpack.c.b16 %v3146, %v3114
    %v3915 = vpack.c.b16 %v3147, %v3115
    %v3916 = vpack.c.b16 %v3148, %v3116
    %v3917 = vpack.c.b16 %v3149, %v3117
    %v3918 = vpack.c.b16 %v3150, %v3118
    %v3919 = vpack.c.b16 %v3151, %v3119
    %v3920 = vpack.c.b16 %v3152, %v3120
    %4689 = vmatprep.subr.bf16.mxu0 %v3154
    %4690 = vmatpush1.bf16.msra.mxu0 %v3153
    %4691 = vmatprep.subr.bf16.mxu0 %v3186
    %4692 = vmatpush1.bf16.msra.mxu0 %v3185
    %4693 = vmatprep.subr.bf16.mxu0 %v3218
    %4694 = vmatpush1.bf16.msra.mxu0 %v3217
    %4695 = vmatprep.subr.bf16.mxu0 %v3250
    %4696 = vmatpush1.bf16.msra.mxu0 %v3249
    %4697 = vmatprep.subr.bf16.mxu0 %v3282
    %4698 = vmatpush1.bf16.msra.mxu0 %v3281
    %4699 = vmatprep.subr.bf16.mxu0 %v3314
    %4700 = vmatpush1.bf16.msra.mxu0 %v3313
    %4701 = vmatprep.subr.bf16.mxu0 %v3346
    %4702 = vmatpush1.bf16.msra.mxu0 %v3345
    %4703 = vmatprep.subr.bf16.mxu0 %v3378
    %4704 = vmatpush1.bf16.msra.mxu0 %v3377
    %4705 = vmatprep.subr.bf16.mxu0 %v3410
    %4706 = vmatpush1.bf16.msra.mxu0 %v3409
    %4707 = vmatprep.subr.bf16.mxu0 %v3442
    %4708 = vmatpush1.bf16.msra.mxu0 %v3441
    %4709 = vmatprep.subr.bf16.mxu0 %v3474
    %4710 = vmatpush1.bf16.msra.mxu0 %v3473
    %4711 = vmatprep.subr.bf16.mxu0 %v3506
    %4712 = vmatpush1.bf16.msra.mxu0 %v3505
    %4713 = vmatprep.subr.bf16.mxu0 %v3538
    %4714 = vmatpush1.bf16.msra.mxu0 %v3537
    %4715 = vmatprep.subr.bf16.mxu0 %v3570
    %4716 = vmatpush1.bf16.msra.mxu0 %v3569
    %4717 = vmatprep.subr.bf16.mxu0 %v3602
    %4718 = vmatpush1.bf16.msra.mxu0 %v3601
    %4719 = vmatprep.subr.bf16.mxu0 %v3634
    %4720 = vmatpush1.bf16.msra.mxu0 %v3633
    %4721 = vmatprep.mubr.bf16.mxu0 %v844
    %4722 = vmatmul.mubr.bf16.gmra.mrb[0].mxu0 %v837
    %v4723 = vpop.f32.mrb[0].mxu0
    %v4724 = vadd.f32 0.0, %v4723
    %v4725 = vpop.f32.mrb[0].mxu0
    %v4726 = vadd.f32 0.0, %v4725
    %v4727 = vpop.f32.mrb[0].mxu0
    %v4728 = vpop.f32.mrb[0].mxu0
    %4729 = vdwg.mxu0
    %4730 = vmatprep.subr.bf16.mxu0 %v3666
    %4731 = vmatpush1.bf16.msra.mxu0 %v3665
    %4732 = vmatprep.subr.bf16.mxu0 %v3698
    %4733 = vmatpush1.bf16.msra.mxu0 %v3697
    %4734 = vmatprep.subr.bf16.mxu0 %v3730
    %4735 = vmatpush1.bf16.msra.mxu0 %v3729
    %4736 = vmatprep.subr.bf16.mxu0 %v3762
    %4737 = vmatpush1.bf16.msra.mxu0 %v3761
    %4738 = vmatprep.subr.bf16.mxu0 %v3794
    %4739 = vmatpush1.bf16.msra.mxu0 %v3793
    %4740 = vmatprep.subr.bf16.mxu0 %v3826
    %4741 = vmatpush1.bf16.msra.mxu0 %v3825
    %4742 = vmatprep.subr.bf16.mxu0 %v3858
    %4743 = vmatpush1.bf16.msra.mxu0 %v3857
    %4744 = vmatprep.subr.bf16.mxu0 %v3890
    %4745 = vmatpush1.bf16.msra.mxu0 %v3889
    %4746 = vmatprep.subr.bf16.mxu0 0
    %4747 = vmatpush1.bf16.msra.mxu0 0
    %4748 = vmatprep.subr.bf16.mxu0 0
    %4749 = vmatpush1.bf16.msra.mxu0 0
    %4750 = vmatprep.subr.bf16.mxu0 0
    %4751 = vmatpush1.bf16.msra.mxu0 0
    %4752 = vmatprep.subr.bf16.mxu0 0
    %4753 = vmatpush1.bf16.msra.mxu0 0
    %4754 = vmatprep.subr.bf16.mxu0 0
    %4755 = vmatpush1.bf16.msra.mxu0 0
    %4756 = vmatprep.subr.bf16.mxu0 0
    %4757 = vmatpush1.bf16.msra.mxu0 0
    %4758 = vmatprep.subr.bf16.mxu0 0
    %4759 = vmatpush1.bf16.msra.mxu0 0
    %4760 = vmatprep.subr.bf16.mxu0 0
    %4761 = vmatpush1.bf16.msra.mxu0 0
    %4762 = vmatprep.mubr.bf16.mxu0 0
    %4763 = vmatmul.mubr.bf16.gmra.mrb[0].mxu0 %v845
    %v4764 = vpop.f32.mrb[0].mxu0
    %v4765 = vadd.f32 %v4724, %v4764
    %v4766 = vpop.f32.mrb[0].mxu0
    %v4767 = vadd.f32 %v4726, %v4766
    %v4768 = vpop.f32.mrb[0].mxu0
    %v4769 = vpop.f32.mrb[0].mxu0
    %4770 = vdwg.mxu0
    %4771 = vmatprep.subr.bf16.mxu0 %v3156
    %4772 = vmatpush1.bf16.msra.mxu0 %v3155
    %4773 = vmatprep.subr.bf16.mxu0 %v3188
    %4774 = vmatpush1.bf16.msra.mxu0 %v3187
    %4775 = vmatprep.subr.bf16.mxu0 %v3220
    %4776 = vmatpush1.bf16.msra.mxu0 %v3219
    %4777 = vmatprep.subr.bf16.mxu0 %v3252
    %4778 = vmatpush1.bf16.msra.mxu0 %v3251
    %4779 = vmatprep.subr.bf16.mxu0 %v3284
    %4780 = vmatpush1.bf16.msra.mxu0 %v3283
    %4781 = vmatprep.subr.bf16.mxu0 %v3316
    %4782 = vmatpush1.bf16.msra.mxu0 %v3315
    %4783 = vmatprep.subr.bf16.mxu0 %v3348
    %4784 = vmatpush1.bf16.msra.mxu0 %v3347
    %4785 = vmatprep.subr.bf16.mxu0 %v3380
    %4786 = vmatpush1.bf16.msra.mxu0 %v3379
    %4787 = vmatprep.subr.bf16.mxu0 %v3412
    %4788 = vmatpush1.bf16.msra.mxu0 %v3411
    %4789 = vmatprep.subr.bf16.mxu0 %v3444
    %4790 = vmatpush1.bf16.msra.mxu0 %v3443
    %4791 = vmatprep.subr.bf16.mxu0 %v3476
    %4792 = vmatpush1.bf16.msra.mxu0 %v3475
    %4793 = vmatprep.subr.bf16.mxu0 %v3508
    %4794 = vmatpush1.bf16.msra.mxu0 %v3507
    %4795 = vmatprep.subr.bf16.mxu0 %v3540
    %4796 = vmatpush1.bf16.msra.mxu0 %v3539
    %4797 = vmatprep.subr.bf16.mxu0 %v3572
    %4798 = vmatpush1.bf16.msra.mxu0 %v3571
    %4799 = vmatprep.subr.bf16.mxu0 %v3604
    %4800 = vmatpush1.bf16.msra.mxu0 %v3603
    %4801 = vmatprep.subr.bf16.mxu0 %v3636
    %4802 = vmatpush1.bf16.msra.mxu0 %v3635
    %4803 = vmatprep.mubr.bf16.mxu0 %v844
    %4804 = vmatmul.mubr.bf16.gmra.mrb[0].mxu0 %v837
    %v4805 = vpop.f32.mrb[0].mxu0
    %v4806 = vadd.f32 0.0, %v4805
    %v4807 = vpop.f32.mrb[0].mxu0
    %v4808 = vadd.f32 0.0, %v4807
    %v4809 = vpop.f32.mrb[0].mxu0
    %v4810 = vpop.f32.mrb[0].mxu0
    %4811 = vdwg.mxu0
    %4812 = vmatprep.subr.bf16.mxu0 %v3668
    %4813 = vmatpush1.bf16.msra.mxu0 %v3667
    %4814 = vmatprep.subr.bf16.mxu0 %v3700
    %4815 = vmatpush1.bf16.msra.mxu0 %v3699
    %4816 = vmatprep.subr.bf16.mxu0 %v3732
    %4817 = vmatpush1.bf16.msra.mxu0 %v3731
    %4818 = vmatprep.subr.bf16.mxu0 %v3764
    %4819 = vmatpush1.bf16.msra.mxu0 %v3763
    %4820 = vmatprep.subr.bf16.mxu0 %v3796
    %4821 = vmatpush1.bf16.msra.mxu0 %v3795
    %4822 = vmatprep.subr.bf16.mxu0 %v3828
    %4823 = vmatpush1.bf16.msra.mxu0 %v3827
    %4824 = vmatprep.subr.bf16.mxu0 %v3860
    %4825 = vmatpush1.bf16.msra.mxu0 %v3859
    %4826 = vmatprep.subr.bf16.mxu0 %v3892
    %4827 = vmatpush1.bf16.msra.mxu0 %v3891
    %4828 = vmatprep.subr.bf16.mxu0 0
    %4829 = vmatpush1.bf16.msra.mxu0 0
    %4830 = vmatprep.subr.bf16.mxu0 0
    %4831 = vmatpush1.bf16.msra.mxu0 0
    %4832 = vmatprep.subr.bf16.mxu0 0
    %4833 = vmatpush1.bf16.msra.mxu0 0
    %4834 = vmatprep.subr.bf16.mxu0 0
    %4835 = vmatpush1.bf16.msra.mxu0 0
    %4836 = vmatprep.subr.bf16.mxu0 0
    %4837 = vmatpush1.bf16.msra.mxu0 0
    %4838 = vmatprep.subr.bf16.mxu0 0
    %4839 = vmatpush1.bf16.msra.mxu0 0
    %4840 = vmatprep.subr.bf16.mxu0 0
    %4841 = vmatpush1.bf16.msra.mxu0 0
    %4842 = vmatprep.subr.bf16.mxu0 0
    %4843 = vmatpush1.bf16.msra.mxu0 0
    %4844 = vmatprep.mubr.bf16.mxu0 0
    %4845 = vmatmul.mubr.bf16.gmra.mrb[0].mxu0 %v845
    %v4846 = vpop.f32.mrb[0].mxu0
    %v4847 = vadd.f32 %v4806, %v4846
    %v4848 = vpop.f32.mrb[0].mxu0
    %v4849 = vadd.f32 %v4808, %v4848
    %v4850 = vpop.f32.mrb[0].mxu0
    %v4851 = vpop.f32.mrb[0].mxu0
    %4852 = vdwg.mxu0
    %4853 = vmatprep.subr.bf16.mxu0 %v3158
    %4854 = vmatpush1.bf16.msra.mxu0 %v3157
    %4855 = vmatprep.subr.bf16.mxu0 %v3190
    %4856 = vmatpush1.bf16.msra.mxu0 %v3189
    %4857 = vmatprep.subr.bf16.mxu0 %v3222
    %4858 = vmatpush1.bf16.msra.mxu0 %v3221
    %4859 = vmatprep.subr.bf16.mxu0 %v3254
    %4860 = vmatpush1.bf16.msra.mxu0 %v3253
    %4861 = vmatprep.subr.bf16.mxu0 %v3286
    %4862 = vmatpush1.bf16.msra.mxu0 %v3285
    %4863 = vmatprep.subr.bf16.mxu0 %v3318
    %4864 = vmatpush1.bf16.msra.mxu0 %v3317
    %4865 = vmatprep.subr.bf16.mxu0 %v3350
    %4866 = vmatpush1.bf16.msra.mxu0 %v3349
    %4867 = vmatprep.subr.bf16.mxu0 %v3382
    %4868 = vmatpush1.bf16.msra.mxu0 %v3381
    %4869 = vmatprep.subr.bf16.mxu0 %v3414
    %4870 = vmatpush1.bf16.msra.mxu0 %v3413
    %4871 = vmatprep.subr.bf16.mxu0 %v3446
    %4872 = vmatpush1.bf16.msra.mxu0 %v3445
    %4873 = vmatprep.subr.bf16.mxu0 %v3478
    %4874 = vmatpush1.bf16.msra.mxu0 %v3477
    %4875 = vmatprep.subr.bf16.mxu0 %v3510
    %4876 = vmatpush1.bf16.msra.mxu0 %v3509
    %4877 = vmatprep.subr.bf16.mxu0 %v3542
    %4878 = vmatpush1.bf16.msra.mxu0 %v3541
    %4879 = vmatprep.subr.bf16.mxu0 %v3574
    %4880 = vmatpush1.bf16.msra.mxu0 %v3573
    %4881 = vmatprep.subr.bf16.mxu0 %v3606
    %4882 = vmatpush1.bf16.msra.mxu0 %v3605
    %4883 = vmatprep.subr.bf16.mxu0 %v3638
    %4884 = vmatpush1.bf16.msra.mxu0 %v3637
    %4885 = vmatprep.mubr.bf16.mxu0 %v844
    %4886 = vmatmul.mubr.bf16.gmra.mrb[0].mxu0 %v837
    %v4887 = vpop.f32.mrb[0].mxu0
    %v4888 = vadd.f32 0.0, %v4887
    %v4889 = vpop.f32.mrb[0].mxu0
    %v4890 = vadd.f32 0.0, %v4889
    %v4891 = vpop.f32.mrb[0].mxu0
    %v4892 = vpop.f32.mrb[0].mxu0
    %4893 = vdwg.mxu0
    %4894 = vmatprep.subr.bf16.mxu0 %v3670
    %4895 = vmatpush1.bf16.msra.mxu0 %v3669
    %4896 = vmatprep.subr.bf16.mxu0 %v3702
    %4897 = vmatpush1.bf16.msra.mxu0 %v3701
    %4898 = vmatprep.subr.bf16.mxu0 %v3734
    %4899 = vmatpush1.bf16.msra.mxu0 %v3733
    %4900 = vmatprep.subr.bf16.mxu0 %v3766
    %4901 = vmatpush1.bf16.msra.mxu0 %v3765
    %4902 = vmatprep.subr.bf16.mxu0 %v3798
    %4903 = vmatpush1.bf16.msra.mxu0 %v3797
    %4904 = vmatprep.subr.bf16.mxu0 %v3830
    %4905 = vmatpush1.bf16.msra.mxu0 %v3829
    %4906 = vmatprep.subr.bf16.mxu0 %v3862
    %4907 = vmatpush1.bf16.msra.mxu0 %v3861
    %4908 = vmatprep.subr.bf16.mxu0 %v3894
    %4909 = vmatpush1.bf16.msra.mxu0 %v3893
    %4910 = vmatprep.subr.bf16.mxu0 0
    %4911 = vmatpush1.bf16.msra.mxu0 0
    %4912 = vmatprep.subr.bf16.mxu0 0
    %4913 = vmatpush1.bf16.msra.mxu0 0
    %4914 = vmatprep.subr.bf16.mxu0 0
    %4915 = vmatpush1.bf16.msra.mxu0 0
    %4916 = vmatprep.subr.bf16.mxu0 0
    %4917 = vmatpush1.bf16.msra.mxu0 0
    %4918 = vmatprep.subr.bf16.mxu0 0
    %4919 = vmatpush1.bf16.msra.mxu0 0
    %4920 = vmatprep.subr.bf16.mxu0 0
    %4921 = vmatpush1.bf16.msra.mxu0 0
    %4922 = vmatprep.subr.bf16.mxu0 0
    %4923 = vmatpush1.bf16.msra.mxu0 0
    %4924 = vmatprep.subr.bf16.mxu0 0
    %4925 = vmatpush1.bf16.msra.mxu0 0
    %4926 = vmatprep.mubr.bf16.mxu0 0
    %4927 = vmatmul.mubr.bf16.gmra.mrb[0].mxu0 %v845
    %v4928 = vpop.f32.mrb[0].mxu0
    %v4929 = vadd.f32 %v4888, %v4928
    %v4930 = vpop.f32.mrb[0].mxu0
    %v4931 = vadd.f32 %v4890, %v4930
    %v4932 = vpop.f32.mrb[0].mxu0
    %v4933 = vpop.f32.mrb[0].mxu0
    %4934 = vdwg.mxu0
    %4935 = vmatprep.subr.bf16.mxu0 %v3160
    %4936 = vmatpush1.bf16.msra.mxu0 %v3159
    %4937 = vmatprep.subr.bf16.mxu0 %v3192
    %4938 = vmatpush1.bf16.msra.mxu0 %v3191
    %4939 = vmatprep.subr.bf16.mxu0 %v3224
    %4940 = vmatpush1.bf16.msra.mxu0 %v3223
    %4941 = vmatprep.subr.bf16.mxu0 %v3256
    %4942 = vmatpush1.bf16.msra.mxu0 %v3255
    %4943 = vmatprep.subr.bf16.mxu0 %v3288
    %4944 = vmatpush1.bf16.msra.mxu0 %v3287
    %4945 = vmatprep.subr.bf16.mxu0 %v3320
    %4946 = vmatpush1.bf16.msra.mxu0 %v3319
    %4947 = vmatprep.subr.bf16.mxu0 %v3352
    %4948 = vmatpush1.bf16.msra.mxu0 %v3351
    %4949 = vmatprep.subr.bf16.mxu0 %v3384
    %4950 = vmatpush1.bf16.msra.mxu0 %v3383
    %4951 = vmatprep.subr.bf16.mxu0 %v3416
    %4952 = vmatpush1.bf16.msra.mxu0 %v3415
    %4953 = vmatprep.subr.bf16.mxu0 %v3448
    %4954 = vmatpush1.bf16.msra.mxu0 %v3447
    %4955 = vmatprep.subr.bf16.mxu0 %v3480
    %4956 = vmatpush1.bf16.msra.mxu0 %v3479
    %4957 = vmatprep.subr.bf16.mxu0 %v3512
    %4958 = vmatpush1.bf16.msra.mxu0 %v3511
    %4959 = vmatprep.subr.bf16.mxu0 %v3544
    %4960 = vmatpush1.bf16.msra.mxu0 %v3543
    %4961 = vmatprep.subr.bf16.mxu0 %v3576
    %4962 = vmatpush1.bf16.msra.mxu0 %v3575
    %4963 = vmatprep.subr.bf16.mxu0 %v3608
    %4964 = vmatpush1.bf16.msra.mxu0 %v3607
    %4965 = vmatprep.subr.bf16.mxu0 %v3640
    %4966 = vmatpush1.bf16.msra.mxu0 %v3639
    %4967 = vmatprep.mubr.bf16.mxu0 %v844
    %4968 = vmatmul.mubr.bf16.gmra.mrb[0].mxu0 %v837
    %v4969 = vpop.f32.mrb[0].mxu0
    %v4970 = vadd.f32 0.0, %v4969
    %v4971 = vpop.f32.mrb[0].mxu0
    %v4972 = vadd.f32 0.0, %v4971
    %v4973 = vpop.f32.mrb[0].mxu0
    %v4974 = vpop.f32.mrb[0].mxu0
    %4975 = vdwg.mxu0
    %4976 = vmatprep.subr.bf16.mxu0 %v3672
    %4977 = vmatpush1.bf16.msra.mxu0 %v3671
    %4978 = vmatprep.subr.bf16.mxu0 %v3704
    %4979 = vmatpush1.bf16.msra.mxu0 %v3703
    %4980 = vmatprep.subr.bf16.mxu0 %v3736
    %4981 = vmatpush1.bf16.msra.mxu0 %v3735
    %4982 = vmatprep.subr.bf16.mxu0 %v3768
    %4983 = vmatpush1.bf16.msra.mxu0 %v3767
    %4984 = vmatprep.subr.bf16.mxu0 %v3800
    %4985 = vmatpush1.bf16.msra.mxu0 %v3799
    %4986 = vmatprep.subr.bf16.mxu0 %v3832
    %4987 = vmatpush1.bf16.msra.mxu0 %v3831
    %4988 = vmatprep.subr.bf16.mxu0 %v3864
    %4989 = vmatpush1.bf16.msra.mxu0 %v3863
    %4990 = vmatprep.subr.bf16.mxu0 %v3896
    %4991 = vmatpush1.bf16.msra.mxu0 %v3895
    %4992 = vmatprep.subr.bf16.mxu0 0
    %4993 = vmatpush1.bf16.msra.mxu0 0
    %4994 = vmatprep.subr.bf16.mxu0 0
    %4995 = vmatpush1.bf16.msra.mxu0 0
    %4996 = vmatprep.subr.bf16.mxu0 0
    %4997 = vmatpush1.bf16.msra.mxu0 0
    %4998 = vmatprep.subr.bf16.mxu0 0
    %4999 = vmatpush1.bf16.msra.mxu0 0
    %5000 = vmatprep.subr.bf16.mxu0 0
    %5001 = vmatpush1.bf16.msra.mxu0 0
    %5002 = vmatprep.subr.bf16.mxu0 0
    %5003 = vmatpush1.bf16.msra.mxu0 0
    %5004 = vmatprep.subr.bf16.mxu0 0
    %5005 = vmatpush1.bf16.msra.mxu0 0
    %5006 = vmatprep.subr.bf16.mxu0 0
    %5007 = vmatpush1.bf16.msra.mxu0 0
    %5008 = vmatprep.mubr.bf16.mxu0 0
    %5009 = vmatmul.mubr.bf16.gmra.mrb[0].mxu0 %v845
    %v5010 = vpop.f32.mrb[0].mxu0
    %v5011 = vadd.f32 %v4970, %v5010
    %v5012 = vpop.f32.mrb[0].mxu0
    %v5013 = vadd.f32 %v4972, %v5012
    %v5014 = vpop.f32.mrb[0].mxu0
    %v5015 = vpop.f32.mrb[0].mxu0
    %5016 = vdwg.mxu0
    %5017 = vmatprep.subr.bf16.mxu0 %v3162
    %5018 = vmatpush1.bf16.msra.mxu0 %v3161
    %5019 = vmatprep.subr.bf16.mxu0 %v3194
    %5020 = vmatpush1.bf16.msra.mxu0 %v3193
    %5021 = vmatprep.subr.bf16.mxu0 %v3226
    %5022 = vmatpush1.bf16.msra.mxu0 %v3225
    %5023 = vmatprep.subr.bf16.mxu0 %v3258
    %5024 = vmatpush1.bf16.msra.mxu0 %v3257
    %5025 = vmatprep.subr.bf16.mxu0 %v3290
    %5026 = vmatpush1.bf16.msra.mxu0 %v3289
    %5027 = vmatprep.subr.bf16.mxu0 %v3322
    %5028 = vmatpush1.bf16.msra.mxu0 %v3321
    %5029 = vmatprep.subr.bf16.mxu0 %v3354
    %5030 = vmatpush1.bf16.msra.mxu0 %v3353
    %5031 = vmatprep.subr.bf16.mxu0 %v3386
    %5032 = vmatpush1.bf16.msra.mxu0 %v3385
    %5033 = vmatprep.subr.bf16.mxu0 %v3418
    %5034 = vmatpush1.bf16.msra.mxu0 %v3417
    %5035 = vmatprep.subr.bf16.mxu0 %v3450
    %5036 = vmatpush1.bf16.msra.mxu0 %v3449
    %5037 = vmatprep.subr.bf16.mxu0 %v3482
    %5038 = vmatpush1.bf16.msra.mxu0 %v3481
    %5039 = vmatprep.subr.bf16.mxu0 %v3514
    %5040 = vmatpush1.bf16.msra.mxu0 %v3513
    %5041 = vmatprep.subr.bf16.mxu0 %v3546
    %5042 = vmatpush1.bf16.msra.mxu0 %v3545
    %5043 = vmatprep.subr.bf16.mxu0 %v3578
    %5044 = vmatpush1.bf16.msra.mxu0 %v3577
    %5045 = vmatprep.subr.bf16.mxu0 %v3610
    %5046 = vmatpush1.bf16.msra.mxu0 %v3609
    %5047 = vmatprep.subr.bf16.mxu0 %v3642
    %5048 = vmatpush1.bf16.msra.mxu0 %v3641
    %5049 = vmatprep.mubr.bf16.mxu0 %v844
    %5050 = vmatmul.mubr.bf16.gmra.mrb[0].mxu0 %v837
    %v5051 = vpop.f32.mrb[0].mxu0
    %v5052 = vadd.f32 0.0, %v5051
    %v5053 = vpop.f32.mrb[0].mxu0
    %v5054 = vadd.f32 0.0, %v5053
    %v5055 = vpop.f32.mrb[0].mxu0
    %v5056 = vpop.f32.mrb[0].mxu0
    %5057 = vdwg.mxu0
    %5058 = vmatprep.subr.bf16.mxu0 %v3674
    %5059 = vmatpush1.bf16.msra.mxu0 %v3673
    %5060 = vmatprep.subr.bf16.mxu0 %v3706
    %5061 = vmatpush1.bf16.msra.mxu0 %v3705
    %5062 = vmatprep.subr.bf16.mxu0 %v3738
    %5063 = vmatpush1.bf16.msra.mxu0 %v3737
    %5064 = vmatprep.subr.bf16.mxu0 %v3770
    %5065 = vmatpush1.bf16.msra.mxu0 %v3769
    %5066 = vmatprep.subr.bf16.mxu0 %v3802
    %5067 = vmatpush1.bf16.msra.mxu0 %v3801
    %5068 = vmatprep.subr.bf16.mxu0 %v3834
    %5069 = vmatpush1.bf16.msra.mxu0 %v3833
    %5070 = vmatprep.subr.bf16.mxu0 %v3866
    %5071 = vmatpush1.bf16.msra.mxu0 %v3865
    %5072 = vmatprep.subr.bf16.mxu0 %v3898
    %5073 = vmatpush1.bf16.msra.mxu0 %v3897
    %5074 = vmatprep.subr.bf16.mxu0 0
    %5075 = vmatpush1.bf16.msra.mxu0 0
    %5076 = vmatprep.subr.bf16.mxu0 0
    %5077 = vmatpush1.bf16.msra.mxu0 0
    %5078 = vmatprep.subr.bf16.mxu0 0
    %5079 = vmatpush1.bf16.msra.mxu0 0
    %5080 = vmatprep.subr.bf16.mxu0 0
    %5081 = vmatpush1.bf16.msra.mxu0 0
    %5082 = vmatprep.subr.bf16.mxu0 0
    %5083 = vmatpush1.bf16.msra.mxu0 0
    %5084 = vmatprep.subr.bf16.mxu0 0
    %5085 = vmatpush1.bf16.msra.mxu0 0
    %5086 = vmatprep.subr.bf16.mxu0 0
    %5087 = vmatpush1.bf16.msra.mxu0 0
    %5088 = vmatprep.subr.bf16.mxu0 0
    %5089 = vmatpush1.bf16.msra.mxu0 0
    %5090 = vmatprep.mubr.bf16.mxu0 0
    %5091 = vmatmul.mubr.bf16.gmra.mrb[0].mxu0 %v845
    %v5092 = vpop.f32.mrb[0].mxu0
    %v5093 = vadd.f32 %v5052, %v5092
    %v5094 = vpop.f32.mrb[0].mxu0
    %v5095 = vadd.f32 %v5054, %v5094
    %v5096 = vpop.f32.mrb[0].mxu0
    %v5097 = vpop.f32.mrb[0].mxu0
    %5098 = vdwg.mxu0
    %5099 = vmatprep.subr.bf16.mxu0 %v3164
    %5100 = vmatpush1.bf16.msra.mxu0 %v3163
    %5101 = vmatprep.subr.bf16.mxu0 %v3196
    %5102 = vmatpush1.bf16.msra.mxu0 %v3195
    %5103 = vmatprep.subr.bf16.mxu0 %v3228
    %5104 = vmatpush1.bf16.msra.mxu0 %v3227
    %5105 = vmatprep.subr.bf16.mxu0 %v3260
    %5106 = vmatpush1.bf16.msra.mxu0 %v3259
    %5107 = vmatprep.subr.bf16.mxu0 %v3292
    %5108 = vmatpush1.bf16.msra.mxu0 %v3291
    %5109 = vmatprep.subr.bf16.mxu0 %v3324
    %5110 = vmatpush1.bf16.msra.mxu0 %v3323
    %5111 = vmatprep.subr.bf16.mxu0 %v3356
    %5112 = vmatpush1.bf16.msra.mxu0 %v3355
    %5113 = vmatprep.subr.bf16.mxu0 %v3388
    %5114 = vmatpush1.bf16.msra.mxu0 %v3387
    %5115 = vmatprep.subr.bf16.mxu0 %v3420
    %5116 = vmatpush1.bf16.msra.mxu0 %v3419
    %5117 = vmatprep.subr.bf16.mxu0 %v3452
    %5118 = vmatpush1.bf16.msra.mxu0 %v3451
    %5119 = vmatprep.subr.bf16.mxu0 %v3484
    %5120 = vmatpush1.bf16.msra.mxu0 %v3483
    %5121 = vmatprep.subr.bf16.mxu0 %v3516
    %5122 = vmatpush1.bf16.msra.mxu0 %v3515
    %5123 = vmatprep.subr.bf16.mxu0 %v3548
    %5124 = vmatpush1.bf16.msra.mxu0 %v3547
    %5125 = vmatprep.subr.bf16.mxu0 %v3580
    %5126 = vmatpush1.bf16.msra.mxu0 %v3579
    %5127 = vmatprep.subr.bf16.mxu0 %v3612
    %5128 = vmatpush1.bf16.msra.mxu0 %v3611
    %5129 = vmatprep.subr.bf16.mxu0 %v3644
    %5130 = vmatpush1.bf16.msra.mxu0 %v3643
    %5131 = vmatprep.mubr.bf16.mxu0 %v844
    %5132 = vmatmul.mubr.bf16.gmra.mrb[0].mxu0 %v837
    %v5133 = vpop.f32.mrb[0].mxu0
    %v5134 = vadd.f32 0.0, %v5133
    %v5135 = vpop.f32.mrb[0].mxu0
    %v5136 = vadd.f32 0.0, %v5135
    %v5137 = vpop.f32.mrb[0].mxu0
    %v5138 = vpop.f32.mrb[0].mxu0
    %5139 = vdwg.mxu0
    %5140 = vmatprep.subr.bf16.mxu0 %v3676
    %5141 = vmatpush1.bf16.msra.mxu0 %v3675
    %5142 = vmatprep.subr.bf16.mxu0 %v3708
    %5143 = vmatpush1.bf16.msra.mxu0 %v3707
    %5144 = vmatprep.subr.bf16.mxu0 %v3740
    %5145 = vmatpush1.bf16.msra.mxu0 %v3739
    %5146 = vmatprep.subr.bf16.mxu0 %v3772
    %5147 = vmatpush1.bf16.msra.mxu0 %v3771
    %5148 = vmatprep.subr.bf16.mxu0 %v3804
    %5149 = vmatpush1.bf16.msra.mxu0 %v3803
    %5150 = vmatprep.subr.bf16.mxu0 %v3836
    %5151 = vmatpush1.bf16.msra.mxu0 %v3835
    %5152 = vmatprep.subr.bf16.mxu0 %v3868
    %5153 = vmatpush1.bf16.msra.mxu0 %v3867
    %5154 = vmatprep.subr.bf16.mxu0 %v3900
    %5155 = vmatpush1.bf16.msra.mxu0 %v3899
    %5156 = vmatprep.subr.bf16.mxu0 0
    %5157 = vmatpush1.bf16.msra.mxu0 0
    %5158 = vmatprep.subr.bf16.mxu0 0
    %5159 = vmatpush1.bf16.msra.mxu0 0
    %5160 = vmatprep.subr.bf16.mxu0 0
    %5161 = vmatpush1.bf16.msra.mxu0 0
    %5162 = vmatprep.subr.bf16.mxu0 0
    %5163 = vmatpush1.bf16.msra.mxu0 0
    %5164 = vmatprep.subr.bf16.mxu0 0
    %5165 = vmatpush1.bf16.msra.mxu0 0
    %5166 = vmatprep.subr.bf16.mxu0 0
    %5167 = vmatpush1.bf16.msra.mxu0 0
    %5168 = vmatprep.subr.bf16.mxu0 0
    %5169 = vmatpush1.bf16.msra.mxu0 0
    %5170 = vmatprep.subr.bf16.mxu0 0
    %5171 = vmatpush1.bf16.msra.mxu0 0
    %5172 = vmatprep.mubr.bf16.mxu0 0
    %5173 = vmatmul.mubr.bf16.gmra.mrb[0].mxu0 %v845
    %v5174 = vpop.f32.mrb[0].mxu0
    %v5175 = vadd.f32 %v5134, %v5174
    %v5176 = vpop.f32.mrb[0].mxu0
    %v5177 = vadd.f32 %v5136, %v5176
    %v5178 = vpop.f32.mrb[0].mxu0
    %v5179 = vpop.f32.mrb[0].mxu0
    %5180 = vdwg.mxu0
    %5181 = vmatprep.subr.bf16.mxu0 %v3166
    %5182 = vmatpush1.bf16.msra.mxu0 %v3165
    %5183 = vmatprep.subr.bf16.mxu0 %v3198
    %5184 = vmatpush1.bf16.msra.mxu0 %v3197
    %5185 = vmatprep.subr.bf16.mxu0 %v3230
    %5186 = vmatpush1.bf16.msra.mxu0 %v3229
    %5187 = vmatprep.subr.bf16.mxu0 %v3262
    %5188 = vmatpush1.bf16.msra.mxu0 %v3261
    %5189 = vmatprep.subr.bf16.mxu0 %v3294
    %5190 = vmatpush1.bf16.msra.mxu0 %v3293
    %5191 = vmatprep.subr.bf16.mxu0 %v3326
    %5192 = vmatpush1.bf16.msra.mxu0 %v3325
    %5193 = vmatprep.subr.bf16.mxu0 %v3358
    %5194 = vmatpush1.bf16.msra.mxu0 %v3357
    %5195 = vmatprep.subr.bf16.mxu0 %v3390
    %5196 = vmatpush1.bf16.msra.mxu0 %v3389
    %5197 = vmatprep.subr.bf16.mxu0 %v3422
    %5198 = vmatpush1.bf16.msra.mxu0 %v3421
    %5199 = vmatprep.subr.bf16.mxu0 %v3454
    %5200 = vmatpush1.bf16.msra.mxu0 %v3453
    %5201 = vmatprep.subr.bf16.mxu0 %v3486
    %5202 = vmatpush1.bf16.msra.mxu0 %v3485
    %5203 = vmatprep.subr.bf16.mxu0 %v3518
    %5204 = vmatpush1.bf16.msra.mxu0 %v3517
    %5205 = vmatprep.subr.bf16.mxu0 %v3550
    %5206 = vmatpush1.bf16.msra.mxu0 %v3549
    %5207 = vmatprep.subr.bf16.mxu0 %v3582
    %5208 = vmatpush1.bf16.msra.mxu0 %v3581
    %5209 = vmatprep.subr.bf16.mxu0 %v3614
    %5210 = vmatpush1.bf16.msra.mxu0 %v3613
    %5211 = vmatprep.subr.bf16.mxu0 %v3646
    %5212 = vmatpush1.bf16.msra.mxu0 %v3645
    %5213 = vmatprep.mubr.bf16.mxu0 %v844
    %5214 = vmatmul.mubr.bf16.gmra.mrb[0].mxu0 %v837
    %v5215 = vpop.f32.mrb[0].mxu0
    %v5216 = vadd.f32 0.0, %v5215
    %v5217 = vpop.f32.mrb[0].mxu0
    %v5218 = vadd.f32 0.0, %v5217
    %v5219 = vpop.f32.mrb[0].mxu0
    %v5220 = vpop.f32.mrb[0].mxu0
    %5221 = vdwg.mxu0
    %5222 = vmatprep.subr.bf16.mxu0 %v3678
    %5223 = vmatpush1.bf16.msra.mxu0 %v3677
    %5224 = vmatprep.subr.bf16.mxu0 %v3710
    %5225 = vmatpush1.bf16.msra.mxu0 %v3709
    %5226 = vmatprep.subr.bf16.mxu0 %v3742
    %5227 = vmatpush1.bf16.msra.mxu0 %v3741
    %5228 = vmatprep.subr.bf16.mxu0 %v3774
    %5229 = vmatpush1.bf16.msra.mxu0 %v3773
    %5230 = vmatprep.subr.bf16.mxu0 %v3806
    %5231 = vmatpush1.bf16.msra.mxu0 %v3805
    %5232 = vmatprep.subr.bf16.mxu0 %v3838
    %5233 = vmatpush1.bf16.msra.mxu0 %v3837
    %5234 = vmatprep.subr.bf16.mxu0 %v3870
    %5235 = vmatpush1.bf16.msra.mxu0 %v3869
    %5236 = vmatprep.subr.bf16.mxu0 %v3902
    %5237 = vmatpush1.bf16.msra.mxu0 %v3901
    %5238 = vmatprep.subr.bf16.mxu0 0
    %5239 = vmatpush1.bf16.msra.mxu0 0
    %5240 = vmatprep.subr.bf16.mxu0 0
    %5241 = vmatpush1.bf16.msra.mxu0 0
    %5242 = vmatprep.subr.bf16.mxu0 0
    %5243 = vmatpush1.bf16.msra.mxu0 0
    %5244 = vmatprep.subr.bf16.mxu0 0
    %5245 = vmatpush1.bf16.msra.mxu0 0
    %5246 = vmatprep.subr.bf16.mxu0 0
    %5247 = vmatpush1.bf16.msra.mxu0 0
    %5248 = vmatprep.subr.bf16.mxu0 0
    %5249 = vmatpush1.bf16.msra.mxu0 0
    %5250 = vmatprep.subr.bf16.mxu0 0
    %5251 = vmatpush1.bf16.msra.mxu0 0
    %5252 = vmatprep.subr.bf16.mxu0 0
    %5253 = vmatpush1.bf16.msra.mxu0 0
    %5254 = vmatprep.mubr.bf16.mxu0 0
    %5255 = vmatmul.mubr.bf16.gmra.mrb[0].mxu0 %v845
    %v5256 = vpop.f32.mrb[0].mxu0
    %v5257 = vadd.f32 %v5216, %v5256
    %v5258 = vpop.f32.mrb[0].mxu0
    %v5259 = vadd.f32 %v5218, %v5258
    %v5260 = vpop.f32.mrb[0].mxu0
    %v5261 = vpop.f32.mrb[0].mxu0
    %5262 = vdwg.mxu0
    %5263 = vmatprep.subr.bf16.mxu0 %v3168
    %5264 = vmatpush1.bf16.msra.mxu0 %v3167
    %5265 = vmatprep.subr.bf16.mxu0 %v3200
    %5266 = vmatpush1.bf16.msra.mxu0 %v3199
    %5267 = vmatprep.subr.bf16.mxu0 %v3232
    %5268 = vmatpush1.bf16.msra.mxu0 %v3231
    %5269 = vmatprep.subr.bf16.mxu0 %v3264
    %5270 = vmatpush1.bf16.msra.mxu0 %v3263
    %5271 = vmatprep.subr.bf16.mxu0 %v3296
    %5272 = vmatpush1.bf16.msra.mxu0 %v3295
    %5273 = vmatprep.subr.bf16.mxu0 %v3328
    %5274 = vmatpush1.bf16.msra.mxu0 %v3327
    %5275 = vmatprep.subr.bf16.mxu0 %v3360
    %5276 = vmatpush1.bf16.msra.mxu0 %v3359
    %5277 = vmatprep.subr.bf16.mxu0 %v3392
    %5278 = vmatpush1.bf16.msra.mxu0 %v3391
    %5279 = vmatprep.subr.bf16.mxu0 %v3424
    %5280 = vmatpush1.bf16.msra.mxu0 %v3423
    %5281 = vmatprep.subr.bf16.mxu0 %v3456
    %5282 = vmatpush1.bf16.msra.mxu0 %v3455
    %5283 = vmatprep.subr.bf16.mxu0 %v3488
    %5284 = vmatpush1.bf16.msra.mxu0 %v3487
    %5285 = vmatprep.subr.bf16.mxu0 %v3520
    %5286 = vmatpush1.bf16.msra.mxu0 %v3519
    %5287 = vmatprep.subr.bf16.mxu0 %v3552
    %5288 = vmatpush1.bf16.msra.mxu0 %v3551
    %5289 = vmatprep.subr.bf16.mxu0 %v3584
    %5290 = vmatpush1.bf16.msra.mxu0 %v3583
    %5291 = vmatprep.subr.bf16.mxu0 %v3616
    %5292 = vmatpush1.bf16.msra.mxu0 %v3615
    %5293 = vmatprep.subr.bf16.mxu0 %v3648
    %5294 = vmatpush1.bf16.msra.mxu0 %v3647
    %5295 = vmatprep.mubr.bf16.mxu0 %v844
    %5296 = vmatmul.mubr.bf16.gmra.mrb[0].mxu0 %v837
    %v5297 = vpop.f32.mrb[0].mxu0
    %v5298 = vadd.f32 0.0, %v5297
    %v5299 = vpop.f32.mrb[0].mxu0
    %v5300 = vadd.f32 0.0, %v5299
    %v5301 = vpop.f32.mrb[0].mxu0
    %v5302 = vpop.f32.mrb[0].mxu0
    %5303 = vdwg.mxu0
    %5304 = vmatprep.subr.bf16.mxu0 %v3680
    %5305 = vmatpush1.bf16.msra.mxu0 %v3679
    %5306 = vmatprep.subr.bf16.mxu0 %v3712
    %5307 = vmatpush1.bf16.msra.mxu0 %v3711
    %5308 = vmatprep.subr.bf16.mxu0 %v3744
    %5309 = vmatpush1.bf16.msra.mxu0 %v3743
    %5310 = vmatprep.subr.bf16.mxu0 %v3776
    %5311 = vmatpush1.bf16.msra.mxu0 %v3775
    %5312 = vmatprep.subr.bf16.mxu0 %v3808
    %5313 = vmatpush1.bf16.msra.mxu0 %v3807
    %5314 = vmatprep.subr.bf16.mxu0 %v3840
    %5315 = vmatpush1.bf16.msra.mxu0 %v3839
    %5316 = vmatprep.subr.bf16.mxu0 %v3872
    %5317 = vmatpush1.bf16.msra.mxu0 %v3871
    %5318 = vmatprep.subr.bf16.mxu0 %v3904
    %5319 = vmatpush1.bf16.msra.mxu0 %v3903
    %5320 = vmatprep.subr.bf16.mxu0 0
    %5321 = vmatpush1.bf16.msra.mxu0 0
    %5322 = vmatprep.subr.bf16.mxu0 0
    %5323 = vmatpush1.bf16.msra.mxu0 0
    %5324 = vmatprep.subr.bf16.mxu0 0
    %5325 = vmatpush1.bf16.msra.mxu0 0
    %5326 = vmatprep.subr.bf16.mxu0 0
    %5327 = vmatpush1.bf16.msra.mxu0 0
    %5328 = vmatprep.subr.bf16.mxu0 0
    %5329 = vmatpush1.bf16.msra.mxu0 0
    %5330 = vmatprep.subr.bf16.mxu0 0
    %5331 = vmatpush1.bf16.msra.mxu0 0
    %5332 = vmatprep.subr.bf16.mxu0 0
    %5333 = vmatpush1.bf16.msra.mxu0 0
    %5334 = vmatprep.subr.bf16.mxu0 0
    %5335 = vmatpush1.bf16.msra.mxu0 0
    %5336 = vmatprep.mubr.bf16.mxu0 0
    %5337 = vmatmul.mubr.bf16.gmra.mrb[0].mxu0 %v845
    %v5338 = vpop.f32.mrb[0].mxu0
    %v5339 = vadd.f32 %v5298, %v5338
    %v5340 = vpop.f32.mrb[0].mxu0
    %v5341 = vadd.f32 %v5300, %v5340
    %v5342 = vpop.f32.mrb[0].mxu0
    %v5343 = vpop.f32.mrb[0].mxu0
    %5344 = vdwg.mxu0
    %5345 = vmatprep.subr.bf16.mxu0 %v3170
    %5346 = vmatpush1.bf16.msra.mxu0 %v3169
    %5347 = vmatprep.subr.bf16.mxu0 %v3202
    %5348 = vmatpush1.bf16.msra.mxu0 %v3201
    %5349 = vmatprep.subr.bf16.mxu0 %v3234
    %5350 = vmatpush1.bf16.msra.mxu0 %v3233
    %5351 = vmatprep.subr.bf16.mxu0 %v3266
    %5352 = vmatpush1.bf16.msra.mxu0 %v3265
    %5353 = vmatprep.subr.bf16.mxu0 %v3298
    %5354 = vmatpush1.bf16.msra.mxu0 %v3297
    %5355 = vmatprep.subr.bf16.mxu0 %v3330
    %5356 = vmatpush1.bf16.msra.mxu0 %v3329
    %5357 = vmatprep.subr.bf16.mxu0 %v3362
    %5358 = vmatpush1.bf16.msra.mxu0 %v3361
    %5359 = vmatprep.subr.bf16.mxu0 %v3394
    %5360 = vmatpush1.bf16.msra.mxu0 %v3393
    %5361 = vmatprep.subr.bf16.mxu0 %v3426
    %5362 = vmatpush1.bf16.msra.mxu0 %v3425
    %5363 = vmatprep.subr.bf16.mxu0 %v3458
    %5364 = vmatpush1.bf16.msra.mxu0 %v3457
    %5365 = vmatprep.subr.bf16.mxu0 %v3490
    %5366 = vmatpush1.bf16.msra.mxu0 %v3489
    %5367 = vmatprep.subr.bf16.mxu0 %v3522
    %5368 = vmatpush1.bf16.msra.mxu0 %v3521
    %5369 = vmatprep.subr.bf16.mxu0 %v3554
    %5370 = vmatpush1.bf16.msra.mxu0 %v3553
    %5371 = vmatprep.subr.bf16.mxu0 %v3586
    %5372 = vmatpush1.bf16.msra.mxu0 %v3585
    %5373 = vmatprep.subr.bf16.mxu0 %v3618
    %5374 = vmatpush1.bf16.msra.mxu0 %v3617
    %5375 = vmatprep.subr.bf16.mxu0 %v3650
    %5376 = vmatpush1.bf16.msra.mxu0 %v3649
    %5377 = vmatprep.mubr.bf16.mxu0 %v844
    %5378 = vmatmul.mubr.bf16.gmra.mrb[0].mxu0 %v837
    %v5379 = vpop.f32.mrb[0].mxu0
    %v5380 = vadd.f32 0.0, %v5379
    %v5381 = vpop.f32.mrb[0].mxu0
    %v5382 = vadd.f32 0.0, %v5381
    %v5383 = vpop.f32.mrb[0].mxu0
    %v5384 = vpop.f32.mrb[0].mxu0
    %5385 = vdwg.mxu0
    %5386 = vmatprep.subr.bf16.mxu0 %v3682
    %5387 = vmatpush1.bf16.msra.mxu0 %v3681
    %5388 = vmatprep.subr.bf16.mxu0 %v3714
    %5389 = vmatpush1.bf16.msra.mxu0 %v3713
    %5390 = vmatprep.subr.bf16.mxu0 %v3746
    %5391 = vmatpush1.bf16.msra.mxu0 %v3745
    %5392 = vmatprep.subr.bf16.mxu0 %v3778
    %5393 = vmatpush1.bf16.msra.mxu0 %v3777
    %5394 = vmatprep.subr.bf16.mxu0 %v3810
    %5395 = vmatpush1.bf16.msra.mxu0 %v3809
    %5396 = vmatprep.subr.bf16.mxu0 %v3842
    %5397 = vmatpush1.bf16.msra.mxu0 %v3841
    %5398 = vmatprep.subr.bf16.mxu0 %v3874
    %5399 = vmatpush1.bf16.msra.mxu0 %v3873
    %5400 = vmatprep.subr.bf16.mxu0 %v3906
    %5401 = vmatpush1.bf16.msra.mxu0 %v3905
    %5402 = vmatprep.subr.bf16.mxu0 0
    %5403 = vmatpush1.bf16.msra.mxu0 0
    %5404 = vmatprep.subr.bf16.mxu0 0
    %5405 = vmatpush1.bf16.msra.mxu0 0
    %5406 = vmatprep.subr.bf16.mxu0 0
    %5407 = vmatpush1.bf16.msra.mxu0 0
    %5408 = vmatprep.subr.bf16.mxu0 0
    %5409 = vmatpush1.bf16.msra.mxu0 0
    %5410 = vmatprep.subr.bf16.mxu0 0
    %5411 = vmatpush1.bf16.msra.mxu0 0
    %5412 = vmatprep.subr.bf16.mxu0 0
    %5413 = vmatpush1.bf16.msra.mxu0 0
    %5414 = vmatprep.subr.bf16.mxu0 0
    %5415 = vmatpush1.bf16.msra.mxu0 0
    %5416 = vmatprep.subr.bf16.mxu0 0
    %5417 = vmatpush1.bf16.msra.mxu0 0
    %5418 = vmatprep.mubr.bf16.mxu0 0
    %5419 = vmatmul.mubr.bf16.gmra.mrb[0].mxu0 %v845
    %v5420 = vpop.f32.mrb[0].mxu0
    %v5421 = vadd.f32 %v5380, %v5420
    %v5422 = vpop.f32.mrb[0].mxu0
    %v5423 = vadd.f32 %v5382, %v5422
    %v5424 = vpop.f32.mrb[0].mxu0
    %v5425 = vpop.f32.mrb[0].mxu0
    %5426 = vdwg.mxu0
    %5427 = vmatprep.subr.bf16.mxu0 %v3172
    %5428 = vmatpush1.bf16.msra.mxu0 %v3171
    %5429 = vmatprep.subr.bf16.mxu0 %v3204
    %5430 = vmatpush1.bf16.msra.mxu0 %v3203
    %5431 = vmatprep.subr.bf16.mxu0 %v3236
    %5432 = vmatpush1.bf16.msra.mxu0 %v3235
    %5433 = vmatprep.subr.bf16.mxu0 %v3268
    %5434 = vmatpush1.bf16.msra.mxu0 %v3267
    %5435 = vmatprep.subr.bf16.mxu0 %v3300
    %5436 = vmatpush1.bf16.msra.mxu0 %v3299
    %5437 = vmatprep.subr.bf16.mxu0 %v3332
    %5438 = vmatpush1.bf16.msra.mxu0 %v3331
    %5439 = vmatprep.subr.bf16.mxu0 %v3364
    %5440 = vmatpush1.bf16.msra.mxu0 %v3363
    %5441 = vmatprep.subr.bf16.mxu0 %v3396
    %5442 = vmatpush1.bf16.msra.mxu0 %v3395
    %5443 = vmatprep.subr.bf16.mxu0 %v3428
    %5444 = vmatpush1.bf16.msra.mxu0 %v3427
    %5445 = vmatprep.subr.bf16.mxu0 %v3460
    %5446 = vmatpush1.bf16.msra.mxu0 %v3459
    %5447 = vmatprep.subr.bf16.mxu0 %v3492
    %5448 = vmatpush1.bf16.msra.mxu0 %v3491
    %5449 = vmatprep.subr.bf16.mxu0 %v3524
    %5450 = vmatpush1.bf16.msra.mxu0 %v3523
    %5451 = vmatprep.subr.bf16.mxu0 %v3556
    %5452 = vmatpush1.bf16.msra.mxu0 %v3555
    %5453 = vmatprep.subr.bf16.mxu0 %v3588
    %5454 = vmatpush1.bf16.msra.mxu0 %v3587
    %5455 = vmatprep.subr.bf16.mxu0 %v3620
    %5456 = vmatpush1.bf16.msra.mxu0 %v3619
    %5457 = vmatprep.subr.bf16.mxu0 %v3652
    %5458 = vmatpush1.bf16.msra.mxu0 %v3651
    %5459 = vmatprep.mubr.bf16.mxu0 %v844
    %5460 = vmatmul.mubr.bf16.gmra.mrb[0].mxu0 %v837
    %v5461 = vpop.f32.mrb[0].mxu0
    %v5462 = vadd.f32 0.0, %v5461
    %v5463 = vpop.f32.mrb[0].mxu0
    %v5464 = vadd.f32 0.0, %v5463
    %v5465 = vpop.f32.mrb[0].mxu0
    %v5466 = vpop.f32.mrb[0].mxu0
    %5467 = vdwg.mxu0
    %5468 = vmatprep.subr.bf16.mxu0 %v3684
    %5469 = vmatpush1.bf16.msra.mxu0 %v3683
    %5470 = vmatprep.subr.bf16.mxu0 %v3716
    %5471 = vmatpush1.bf16.msra.mxu0 %v3715
    %5472 = vmatprep.subr.bf16.mxu0 %v3748
    %5473 = vmatpush1.bf16.msra.mxu0 %v3747
    %5474 = vmatprep.subr.bf16.mxu0 %v3780
    %5475 = vmatpush1.bf16.msra.mxu0 %v3779
    %5476 = vmatprep.subr.bf16.mxu0 %v3812
    %5477 = vmatpush1.bf16.msra.mxu0 %v3811
    %5478 = vmatprep.subr.bf16.mxu0 %v3844
    %5479 = vmatpush1.bf16.msra.mxu0 %v3843
    %5480 = vmatprep.subr.bf16.mxu0 %v3876
    %5481 = vmatpush1.bf16.msra.mxu0 %v3875
    %5482 = vmatprep.subr.bf16.mxu0 %v3908
    %5483 = vmatpush1.bf16.msra.mxu0 %v3907
    %5484 = vmatprep.subr.bf16.mxu0 0
    %5485 = vmatpush1.bf16.msra.mxu0 0
    %5486 = vmatprep.subr.bf16.mxu0 0
    %5487 = vmatpush1.bf16.msra.mxu0 0
    %5488 = vmatprep.subr.bf16.mxu0 0
    %5489 = vmatpush1.bf16.msra.mxu0 0
    %5490 = vmatprep.subr.bf16.mxu0 0
    %5491 = vmatpush1.bf16.msra.mxu0 0
    %5492 = vmatprep.subr.bf16.mxu0 0
    %5493 = vmatpush1.bf16.msra.mxu0 0
    %5494 = vmatprep.subr.bf16.mxu0 0
    %5495 = vmatpush1.bf16.msra.mxu0 0
    %5496 = vmatprep.subr.bf16.mxu0 0
    %5497 = vmatpush1.bf16.msra.mxu0 0
    %5498 = vmatprep.subr.bf16.mxu0 0
    %5499 = vmatpush1.bf16.msra.mxu0 0
    %5500 = vmatprep.mubr.bf16.mxu0 0
    %5501 = vmatmul.mubr.bf16.gmra.mrb[0].mxu0 %v845
    %v5502 = vpop.f32.mrb[0].mxu0
    %v5503 = vadd.f32 %v5462, %v5502
    %v5504 = vpop.f32.mrb[0].mxu0
    %v5505 = vadd.f32 %v5464, %v5504
    %v5506 = vpop.f32.mrb[0].mxu0
    %v5507 = vpop.f32.mrb[0].mxu0
    %5508 = vdwg.mxu0
    %5509 = vmatprep.subr.bf16.mxu0 %v3174
    %5510 = vmatpush1.bf16.msra.mxu0 %v3173
    %5511 = vmatprep.subr.bf16.mxu0 %v3206
    %5512 = vmatpush1.bf16.msra.mxu0 %v3205
    %5513 = vmatprep.subr.bf16.mxu0 %v3238
    %5514 = vmatpush1.bf16.msra.mxu0 %v3237
    %5515 = vmatprep.subr.bf16.mxu0 %v3270
    %5516 = vmatpush1.bf16.msra.mxu0 %v3269
    %5517 = vmatprep.subr.bf16.mxu0 %v3302
    %5518 = vmatpush1.bf16.msra.mxu0 %v3301
    %5519 = vmatprep.subr.bf16.mxu0 %v3334
    %5520 = vmatpush1.bf16.msra.mxu0 %v3333
    %5521 = vmatprep.subr.bf16.mxu0 %v3366
    %5522 = vmatpush1.bf16.msra.mxu0 %v3365
    %5523 = vmatprep.subr.bf16.mxu0 %v3398
    %5524 = vmatpush1.bf16.msra.mxu0 %v3397
    %5525 = vmatprep.subr.bf16.mxu0 %v3430
    %5526 = vmatpush1.bf16.msra.mxu0 %v3429
    %5527 = vmatprep.subr.bf16.mxu0 %v3462
    %5528 = vmatpush1.bf16.msra.mxu0 %v3461
    %5529 = vmatprep.subr.bf16.mxu0 %v3494
    %5530 = vmatpush1.bf16.msra.mxu0 %v3493
    %5531 = vmatprep.subr.bf16.mxu0 %v3526
    %5532 = vmatpush1.bf16.msra.mxu0 %v3525
    %5533 = vmatprep.subr.bf16.mxu0 %v3558
    %5534 = vmatpush1.bf16.msra.mxu0 %v3557
    %5535 = vmatprep.subr.bf16.mxu0 %v3590
    %5536 = vmatpush1.bf16.msra.mxu0 %v3589
    %5537 = vmatprep.subr.bf16.mxu0 %v3622
    %5538 = vmatpush1.bf16.msra.mxu0 %v3621
    %5539 = vmatprep.subr.bf16.mxu0 %v3654
    %5540 = vmatpush1.bf16.msra.mxu0 %v3653
    %5541 = vmatprep.mubr.bf16.mxu0 %v844
    %5542 = vmatmul.mubr.bf16.gmra.mrb[0].mxu0 %v837
    %v5543 = vpop.f32.mrb[0].mxu0
    %v5544 = vadd.f32 0.0, %v5543
    %v5545 = vpop.f32.mrb[0].mxu0
    %v5546 = vadd.f32 0.0, %v5545
    %v5547 = vpop.f32.mrb[0].mxu0
    %v5548 = vpop.f32.mrb[0].mxu0
    %5549 = vdwg.mxu0
    %5550 = vmatprep.subr.bf16.mxu0 %v3686
    %5551 = vmatpush1.bf16.msra.mxu0 %v3685
    %5552 = vmatprep.subr.bf16.mxu0 %v3718
    %5553 = vmatpush1.bf16.msra.mxu0 %v3717
    %5554 = vmatprep.subr.bf16.mxu0 %v3750
    %5555 = vmatpush1.bf16.msra.mxu0 %v3749
    %5556 = vmatprep.subr.bf16.mxu0 %v3782
    %5557 = vmatpush1.bf16.msra.mxu0 %v3781
    %5558 = vmatprep.subr.bf16.mxu0 %v3814
    %5559 = vmatpush1.bf16.msra.mxu0 %v3813
    %5560 = vmatprep.subr.bf16.mxu0 %v3846
    %5561 = vmatpush1.bf16.msra.mxu0 %v3845
    %5562 = vmatprep.subr.bf16.mxu0 %v3878
    %5563 = vmatpush1.bf16.msra.mxu0 %v3877
    %5564 = vmatprep.subr.bf16.mxu0 %v3910
    %5565 = vmatpush1.bf16.msra.mxu0 %v3909
    %5566 = vmatprep.subr.bf16.mxu0 0
    %5567 = vmatpush1.bf16.msra.mxu0 0
    %5568 = vmatprep.subr.bf16.mxu0 0
    %5569 = vmatpush1.bf16.msra.mxu0 0
    %5570 = vmatprep.subr.bf16.mxu0 0
    %5571 = vmatpush1.bf16.msra.mxu0 0
    %5572 = vmatprep.subr.bf16.mxu0 0
    %5573 = vmatpush1.bf16.msra.mxu0 0
    %5574 = vmatprep.subr.bf16.mxu0 0
    %5575 = vmatpush1.bf16.msra.mxu0 0
    %5576 = vmatprep.subr.bf16.mxu0 0
    %5577 = vmatpush1.bf16.msra.mxu0 0
    %5578 = vmatprep.subr.bf16.mxu0 0
    %5579 = vmatpush1.bf16.msra.mxu0 0
    %5580 = vmatprep.subr.bf16.mxu0 0
    %5581 = vmatpush1.bf16.msra.mxu0 0
    %5582 = vmatprep.mubr.bf16.mxu0 0
    %5583 = vmatmul.mubr.bf16.gmra.mrb[0].mxu0 %v845
    %v5584 = vpop.f32.mrb[0].mxu0
    %v5585 = vadd.f32 %v5544, %v5584
    %v5586 = vpop.f32.mrb[0].mxu0
    %v5587 = vadd.f32 %v5546, %v5586
    %v5588 = vpop.f32.mrb[0].mxu0
    %v5589 = vpop.f32.mrb[0].mxu0
    %5590 = vdwg.mxu0
    %5591 = vmatprep.subr.bf16.mxu0 %v3176
    %5592 = vmatpush1.bf16.msra.mxu0 %v3175
    %5593 = vmatprep.subr.bf16.mxu0 %v3208
    %5594 = vmatpush1.bf16.msra.mxu0 %v3207
    %5595 = vmatprep.subr.bf16.mxu0 %v3240
    %5596 = vmatpush1.bf16.msra.mxu0 %v3239
    %5597 = vmatprep.subr.bf16.mxu0 %v3272
    %5598 = vmatpush1.bf16.msra.mxu0 %v3271
    %5599 = vmatprep.subr.bf16.mxu0 %v3304
    %5600 = vmatpush1.bf16.msra.mxu0 %v3303
    %5601 = vmatprep.subr.bf16.mxu0 %v3336
    %5602 = vmatpush1.bf16.msra.mxu0 %v3335
    %5603 = vmatprep.subr.bf16.mxu0 %v3368
    %5604 = vmatpush1.bf16.msra.mxu0 %v3367
    %5605 = vmatprep.subr.bf16.mxu0 %v3400
    %5606 = vmatpush1.bf16.msra.mxu0 %v3399
    %5607 = vmatprep.subr.bf16.mxu0 %v3432
    %5608 = vmatpush1.bf16.msra.mxu0 %v3431
    %5609 = vmatprep.subr.bf16.mxu0 %v3464
    %5610 = vmatpush1.bf16.msra.mxu0 %v3463
    %5611 = vmatprep.subr.bf16.mxu0 %v3496
    %5612 = vmatpush1.bf16.msra.mxu0 %v3495
    %5613 = vmatprep.subr.bf16.mxu0 %v3528
    %5614 = vmatpush1.bf16.msra.mxu0 %v3527
    %5615 = vmatprep.subr.bf16.mxu0 %v3560
    %5616 = vmatpush1.bf16.msra.mxu0 %v3559
    %5617 = vmatprep.subr.bf16.mxu0 %v3592
    %5618 = vmatpush1.bf16.msra.mxu0 %v3591
    %5619 = vmatprep.subr.bf16.mxu0 %v3624
    %5620 = vmatpush1.bf16.msra.mxu0 %v3623
    %5621 = vmatprep.subr.bf16.mxu0 %v3656
    %5622 = vmatpush1.bf16.msra.mxu0 %v3655
    %5623 = vmatprep.mubr.bf16.mxu0 %v844
    %5624 = vmatmul.mubr.bf16.gmra.mrb[0].mxu0 %v837
    %v5625 = vpop.f32.mrb[0].mxu0
    %v5626 = vadd.f32 0.0, %v5625
    %v5627 = vpop.f32.mrb[0].mxu0
    %v5628 = vadd.f32 0.0, %v5627
    %v5629 = vpop.f32.mrb[0].mxu0
    %v5630 = vpop.f32.mrb[0].mxu0
    %5631 = vdwg.mxu0
    %5632 = vmatprep.subr.bf16.mxu0 %v3688
    %5633 = vmatpush1.bf16.msra.mxu0 %v3687
    %5634 = vmatprep.subr.bf16.mxu0 %v3720
    %5635 = vmatpush1.bf16.msra.mxu0 %v3719
    %5636 = vmatprep.subr.bf16.mxu0 %v3752
    %5637 = vmatpush1.bf16.msra.mxu0 %v3751
    %5638 = vmatprep.subr.bf16.mxu0 %v3784
    %5639 = vmatpush1.bf16.msra.mxu0 %v3783
    %5640 = vmatprep.subr.bf16.mxu0 %v3816
    %5641 = vmatpush1.bf16.msra.mxu0 %v3815
    %5642 = vmatprep.subr.bf16.mxu0 %v3848
    %5643 = vmatpush1.bf16.msra.mxu0 %v3847
    %5644 = vmatprep.subr.bf16.mxu0 %v3880
    %5645 = vmatpush1.bf16.msra.mxu0 %v3879
    %5646 = vmatprep.subr.bf16.mxu0 %v3912
    %5647 = vmatpush1.bf16.msra.mxu0 %v3911
    %5648 = vmatprep.subr.bf16.mxu0 0
    %5649 = vmatpush1.bf16.msra.mxu0 0
    %5650 = vmatprep.subr.bf16.mxu0 0
    %5651 = vmatpush1.bf16.msra.mxu0 0
    %5652 = vmatprep.subr.bf16.mxu0 0
    %5653 = vmatpush1.bf16.msra.mxu0 0
    %5654 = vmatprep.subr.bf16.mxu0 0
    %5655 = vmatpush1.bf16.msra.mxu0 0
    %5656 = vmatprep.subr.bf16.mxu0 0
    %5657 = vmatpush1.bf16.msra.mxu0 0
    %5658 = vmatprep.subr.bf16.mxu0 0
    %5659 = vmatpush1.bf16.msra.mxu0 0
    %5660 = vmatprep.subr.bf16.mxu0 0
    %5661 = vmatpush1.bf16.msra.mxu0 0
    %5662 = vmatprep.subr.bf16.mxu0 0
    %5663 = vmatpush1.bf16.msra.mxu0 0
    %5664 = vmatprep.mubr.bf16.mxu0 0
    %5665 = vmatmul.mubr.bf16.gmra.mrb[0].mxu0 %v845
    %v5666 = vpop.f32.mrb[0].mxu0
    %v5667 = vadd.f32 %v5626, %v5666
    %v5668 = vpop.f32.mrb[0].mxu0
    %v5669 = vadd.f32 %v5628, %v5668
    %v5670 = vpop.f32.mrb[0].mxu0
    %v5671 = vpop.f32.mrb[0].mxu0
    %5672 = vdwg.mxu0
    %5673 = vmatprep.subr.bf16.mxu0 %v3178
    %5674 = vmatpush1.bf16.msra.mxu0 %v3177
    %5675 = vmatprep.subr.bf16.mxu0 %v3210
    %5676 = vmatpush1.bf16.msra.mxu0 %v3209
    %5677 = vmatprep.subr.bf16.mxu0 %v3242
    %5678 = vmatpush1.bf16.msra.mxu0 %v3241
    %5679 = vmatprep.subr.bf16.mxu0 %v3274
    %5680 = vmatpush1.bf16.msra.mxu0 %v3273
    %5681 = vmatprep.subr.bf16.mxu0 %v3306
    %5682 = vmatpush1.bf16.msra.mxu0 %v3305
    %5683 = vmatprep.subr.bf16.mxu0 %v3338
    %5684 = vmatpush1.bf16.msra.mxu0 %v3337
    %5685 = vmatprep.subr.bf16.mxu0 %v3370
    %5686 = vmatpush1.bf16.msra.mxu0 %v3369
    %5687 = vmatprep.subr.bf16.mxu0 %v3402
    %5688 = vmatpush1.bf16.msra.mxu0 %v3401
    %5689 = vmatprep.subr.bf16.mxu0 %v3434
    %5690 = vmatpush1.bf16.msra.mxu0 %v3433
    %5691 = vmatprep.subr.bf16.mxu0 %v3466
    %5692 = vmatpush1.bf16.msra.mxu0 %v3465
    %5693 = vmatprep.subr.bf16.mxu0 %v3498
    %5694 = vmatpush1.bf16.msra.mxu0 %v3497
    %5695 = vmatprep.subr.bf16.mxu0 %v3530
    %5696 = vmatpush1.bf16.msra.mxu0 %v3529
    %5697 = vmatprep.subr.bf16.mxu0 %v3562
    %5698 = vmatpush1.bf16.msra.mxu0 %v3561
    %5699 = vmatprep.subr.bf16.mxu0 %v3594
    %5700 = vmatpush1.bf16.msra.mxu0 %v3593
    %5701 = vmatprep.subr.bf16.mxu0 %v3626
    %5702 = vmatpush1.bf16.msra.mxu0 %v3625
    %5703 = vmatprep.subr.bf16.mxu0 %v3658
    %5704 = vmatpush1.bf16.msra.mxu0 %v3657
    %5705 = vmatprep.mubr.bf16.mxu0 %v844
    %5706 = vmatmul.mubr.bf16.gmra.mrb[0].mxu0 %v837
    %v5707 = vpop.f32.mrb[0].mxu0
    %v5708 = vadd.f32 0.0, %v5707
    %v5709 = vpop.f32.mrb[0].mxu0
    %v5710 = vadd.f32 0.0, %v5709
    %v5711 = vpop.f32.mrb[0].mxu0
    %v5712 = vpop.f32.mrb[0].mxu0
    %5713 = vdwg.mxu0
    %5714 = vmatprep.subr.bf16.mxu0 %v3690
    %5715 = vmatpush1.bf16.msra.mxu0 %v3689
    %5716 = vmatprep.subr.bf16.mxu0 %v3722
    %5717 = vmatpush1.bf16.msra.mxu0 %v3721
    %5718 = vmatprep.subr.bf16.mxu0 %v3754
    %5719 = vmatpush1.bf16.msra.mxu0 %v3753
    %5720 = vmatprep.subr.bf16.mxu0 %v3786
    %5721 = vmatpush1.bf16.msra.mxu0 %v3785
    %5722 = vmatprep.subr.bf16.mxu0 %v3818
    %5723 = vmatpush1.bf16.msra.mxu0 %v3817
    %5724 = vmatprep.subr.bf16.mxu0 %v3850
    %5725 = vmatpush1.bf16.msra.mxu0 %v3849
    %5726 = vmatprep.subr.bf16.mxu0 %v3882
    %5727 = vmatpush1.bf16.msra.mxu0 %v3881
    %5728 = vmatprep.subr.bf16.mxu0 %v3914
    %5729 = vmatpush1.bf16.msra.mxu0 %v3913
    %5730 = vmatprep.subr.bf16.mxu0 0
    %5731 = vmatpush1.bf16.msra.mxu0 0
    %5732 = vmatprep.subr.bf16.mxu0 0
    %5733 = vmatpush1.bf16.msra.mxu0 0
    %5734 = vmatprep.subr.bf16.mxu0 0
    %5735 = vmatpush1.bf16.msra.mxu0 0
    %5736 = vmatprep.subr.bf16.mxu0 0
    %5737 = vmatpush1.bf16.msra.mxu0 0
    %5738 = vmatprep.subr.bf16.mxu0 0
    %5739 = vmatpush1.bf16.msra.mxu0 0
    %5740 = vmatprep.subr.bf16.mxu0 0
    %5741 = vmatpush1.bf16.msra.mxu0 0
    %5742 = vmatprep.subr.bf16.mxu0 0
    %5743 = vmatpush1.bf16.msra.mxu0 0
    %5744 = vmatprep.subr.bf16.mxu0 0
    %5745 = vmatpush1.bf16.msra.mxu0 0
    %5746 = vmatprep.mubr.bf16.mxu0 0
    %5747 = vmatmul.mubr.bf16.gmra.mrb[0].mxu0 %v845
    %v5748 = vpop.f32.mrb[0].mxu0
    %v5749 = vadd.f32 %v5708, %v5748
    %v5750 = vpop.f32.mrb[0].mxu0
    %v5751 = vadd.f32 %v5710, %v5750
    %v5752 = vpop.f32.mrb[0].mxu0
    %v5753 = vpop.f32.mrb[0].mxu0
    %5754 = vdwg.mxu0
    %5755 = vmatprep.subr.bf16.mxu0 %v3180
    %5756 = vmatpush1.bf16.msra.mxu0 %v3179
    %5757 = vmatprep.subr.bf16.mxu0 %v3212
    %5758 = vmatpush1.bf16.msra.mxu0 %v3211
    %5759 = vmatprep.subr.bf16.mxu0 %v3244
    %5760 = vmatpush1.bf16.msra.mxu0 %v3243
    %5761 = vmatprep.subr.bf16.mxu0 %v3276
    %5762 = vmatpush1.bf16.msra.mxu0 %v3275
    %5763 = vmatprep.subr.bf16.mxu0 %v3308
    %5764 = vmatpush1.bf16.msra.mxu0 %v3307
    %5765 = vmatprep.subr.bf16.mxu0 %v3340
    %5766 = vmatpush1.bf16.msra.mxu0 %v3339
    %5767 = vmatprep.subr.bf16.mxu0 %v3372
    %5768 = vmatpush1.bf16.msra.mxu0 %v3371
    %5769 = vmatprep.subr.bf16.mxu0 %v3404
    %5770 = vmatpush1.bf16.msra.mxu0 %v3403
    %5771 = vmatprep.subr.bf16.mxu0 %v3436
    %5772 = vmatpush1.bf16.msra.mxu0 %v3435
    %5773 = vmatprep.subr.bf16.mxu0 %v3468
    %5774 = vmatpush1.bf16.msra.mxu0 %v3467
    %5775 = vmatprep.subr.bf16.mxu0 %v3500
    %5776 = vmatpush1.bf16.msra.mxu0 %v3499
    %5777 = vmatprep.subr.bf16.mxu0 %v3532
    %5778 = vmatpush1.bf16.msra.mxu0 %v3531
    %5779 = vmatprep.subr.bf16.mxu0 %v3564
    %5780 = vmatpush1.bf16.msra.mxu0 %v3563
    %5781 = vmatprep.subr.bf16.mxu0 %v3596
    %5782 = vmatpush1.bf16.msra.mxu0 %v3595
    %5783 = vmatprep.subr.bf16.mxu0 %v3628
    %5784 = vmatpush1.bf16.msra.mxu0 %v3627
    %5785 = vmatprep.subr.bf16.mxu0 %v3660
    %5786 = vmatpush1.bf16.msra.mxu0 %v3659
    %5787 = vmatprep.mubr.bf16.mxu0 %v844
    %5788 = vmatmul.mubr.bf16.gmra.mrb[0].mxu0 %v837
    %v5789 = vpop.f32.mrb[0].mxu0
    %v5790 = vadd.f32 0.0, %v5789
    %v5791 = vpop.f32.mrb[0].mxu0
    %v5792 = vadd.f32 0.0, %v5791
    %v5793 = vpop.f32.mrb[0].mxu0
    %v5794 = vpop.f32.mrb[0].mxu0
    %5795 = vdwg.mxu0
    %5796 = vmatprep.subr.bf16.mxu0 %v3692
    %5797 = vmatpush1.bf16.msra.mxu0 %v3691
    %5798 = vmatprep.subr.bf16.mxu0 %v3724
    %5799 = vmatpush1.bf16.msra.mxu0 %v3723
    %5800 = vmatprep.subr.bf16.mxu0 %v3756
    %5801 = vmatpush1.bf16.msra.mxu0 %v3755
    %5802 = vmatprep.subr.bf16.mxu0 %v3788
    %5803 = vmatpush1.bf16.msra.mxu0 %v3787
    %5804 = vmatprep.subr.bf16.mxu0 %v3820
    %5805 = vmatpush1.bf16.msra.mxu0 %v3819
    %5806 = vmatprep.subr.bf16.mxu0 %v3852
    %5807 = vmatpush1.bf16.msra.mxu0 %v3851
    %5808 = vmatprep.subr.bf16.mxu0 %v3884
    %5809 = vmatpush1.bf16.msra.mxu0 %v3883
    %5810 = vmatprep.subr.bf16.mxu0 %v3916
    %5811 = vmatpush1.bf16.msra.mxu0 %v3915
    %5812 = vmatprep.subr.bf16.mxu0 0
    %5813 = vmatpush1.bf16.msra.mxu0 0
    %5814 = vmatprep.subr.bf16.mxu0 0
    %5815 = vmatpush1.bf16.msra.mxu0 0
    %5816 = vmatprep.subr.bf16.mxu0 0
    %5817 = vmatpush1.bf16.msra.mxu0 0
    %5818 = vmatprep.subr.bf16.mxu0 0
    %5819 = vmatpush1.bf16.msra.mxu0 0
    %5820 = vmatprep.subr.bf16.mxu0 0
    %5821 = vmatpush1.bf16.msra.mxu0 0
    %5822 = vmatprep.subr.bf16.mxu0 0
    %5823 = vmatpush1.bf16.msra.mxu0 0
    %5824 = vmatprep.subr.bf16.mxu0 0
    %5825 = vmatpush1.bf16.msra.mxu0 0
    %5826 = vmatprep.subr.bf16.mxu0 0
    %5827 = vmatpush1.bf16.msra.mxu0 0
    %5828 = vmatprep.mubr.bf16.mxu0 0
    %5829 = vmatmul.mubr.bf16.gmra.mrb[0].mxu0 %v845
    %v5830 = vpop.f32.mrb[0].mxu0
    %v5831 = vadd.f32 %v5790, %v5830
    %v5832 = vpop.f32.mrb[0].mxu0
    %v5833 = vadd.f32 %v5792, %v5832
    %v5834 = vpop.f32.mrb[0].mxu0
    %v5835 = vpop.f32.mrb[0].mxu0
    %5836 = vdwg.mxu0
    %5837 = vmatprep.subr.bf16.mxu0 %v3182
    %5838 = vmatpush1.bf16.msra.mxu0 %v3181
    %5839 = vmatprep.subr.bf16.mxu0 %v3214
    %5840 = vmatpush1.bf16.msra.mxu0 %v3213
    %5841 = vmatprep.subr.bf16.mxu0 %v3246
    %5842 = vmatpush1.bf16.msra.mxu0 %v3245
    %5843 = vmatprep.subr.bf16.mxu0 %v3278
    %5844 = vmatpush1.bf16.msra.mxu0 %v3277
    %5845 = vmatprep.subr.bf16.mxu0 %v3310
    %5846 = vmatpush1.bf16.msra.mxu0 %v3309
    %5847 = vmatprep.subr.bf16.mxu0 %v3342
    %5848 = vmatpush1.bf16.msra.mxu0 %v3341
    %5849 = vmatprep.subr.bf16.mxu0 %v3374
    %5850 = vmatpush1.bf16.msra.mxu0 %v3373
    %5851 = vmatprep.subr.bf16.mxu0 %v3406
    %5852 = vmatpush1.bf16.msra.mxu0 %v3405
    %5853 = vmatprep.subr.bf16.mxu0 %v3438
    %5854 = vmatpush1.bf16.msra.mxu0 %v3437
    %5855 = vmatprep.subr.bf16.mxu0 %v3470
    %5856 = vmatpush1.bf16.msra.mxu0 %v3469
    %5857 = vmatprep.subr.bf16.mxu0 %v3502
    %5858 = vmatpush1.bf16.msra.mxu0 %v3501
    %5859 = vmatprep.subr.bf16.mxu0 %v3534
    %5860 = vmatpush1.bf16.msra.mxu0 %v3533
    %5861 = vmatprep.subr.bf16.mxu0 %v3566
    %5862 = vmatpush1.bf16.msra.mxu0 %v3565
    %5863 = vmatprep.subr.bf16.mxu0 %v3598
    %5864 = vmatpush1.bf16.msra.mxu0 %v3597
    %5865 = vmatprep.subr.bf16.mxu0 %v3630
    %5866 = vmatpush1.bf16.msra.mxu0 %v3629
    %5867 = vmatprep.subr.bf16.mxu0 %v3662
    %5868 = vmatpush1.bf16.msra.mxu0 %v3661
    %5869 = vmatprep.mubr.bf16.mxu0 %v844
    %5870 = vmatmul.mubr.bf16.gmra.mrb[0].mxu0 %v837
    %v5871 = vpop.f32.mrb[0].mxu0
    %v5872 = vadd.f32 0.0, %v5871
    %v5873 = vpop.f32.mrb[0].mxu0
    %v5874 = vadd.f32 0.0, %v5873
    %v5875 = vpop.f32.mrb[0].mxu0
    %v5876 = vpop.f32.mrb[0].mxu0
    %5877 = vdwg.mxu0
    %5878 = vmatprep.subr.bf16.mxu0 %v3694
    %5879 = vmatpush1.bf16.msra.mxu0 %v3693
    %5880 = vmatprep.subr.bf16.mxu0 %v3726
    %5881 = vmatpush1.bf16.msra.mxu0 %v3725
    %5882 = vmatprep.subr.bf16.mxu0 %v3758
    %5883 = vmatpush1.bf16.msra.mxu0 %v3757
    %5884 = vmatprep.subr.bf16.mxu0 %v3790
    %5885 = vmatpush1.bf16.msra.mxu0 %v3789
    %5886 = vmatprep.subr.bf16.mxu0 %v3822
    %5887 = vmatpush1.bf16.msra.mxu0 %v3821
    %5888 = vmatprep.subr.bf16.mxu0 %v3854
    %5889 = vmatpush1.bf16.msra.mxu0 %v3853
    %5890 = vmatprep.subr.bf16.mxu0 %v3886
    %5891 = vmatpush1.bf16.msra.mxu0 %v3885
    %5892 = vmatprep.subr.bf16.mxu0 %v3918
    %5893 = vmatpush1.bf16.msra.mxu0 %v3917
    %5894 = vmatprep.subr.bf16.mxu0 0
    %5895 = vmatpush1.bf16.msra.mxu0 0
    %5896 = vmatprep.subr.bf16.mxu0 0
    %5897 = vmatpush1.bf16.msra.mxu0 0
    %5898 = vmatprep.subr.bf16.mxu0 0
    %5899 = vmatpush1.bf16.msra.mxu0 0
    %5900 = vmatprep.subr.bf16.mxu0 0
    %5901 = vmatpush1.bf16.msra.mxu0 0
    %5902 = vmatprep.subr.bf16.mxu0 0
    %5903 = vmatpush1.bf16.msra.mxu0 0
    %5904 = vmatprep.subr.bf16.mxu0 0
    %5905 = vmatpush1.bf16.msra.mxu0 0
    %5906 = vmatprep.subr.bf16.mxu0 0
    %5907 = vmatpush1.bf16.msra.mxu0 0
    %5908 = vmatprep.subr.bf16.mxu0 0
    %5909 = vmatpush1.bf16.msra.mxu0 0
    %5910 = vmatprep.mubr.bf16.mxu0 0
    %5911 = vmatmul.mubr.bf16.gmra.mrb[0].mxu0 %v845
    %v5912 = vpop.f32.mrb[0].mxu0
    %v5913 = vadd.f32 %v5872, %v5912
    %v5914 = vpop.f32.mrb[0].mxu0
    %v5915 = vadd.f32 %v5874, %v5914
    %v5916 = vpop.f32.mrb[0].mxu0
    %v5917 = vpop.f32.mrb[0].mxu0
    %5918 = vdwg.mxu0
    %5919 = vmatprep.subr.bf16.mxu0 %v3184
    %5920 = vmatpush1.bf16.msra.mxu0 %v3183
    %5921 = vmatprep.subr.bf16.mxu0 %v3216
    %5922 = vmatpush1.bf16.msra.mxu0 %v3215
    %5923 = vmatprep.subr.bf16.mxu0 %v3248
    %5924 = vmatpush1.bf16.msra.mxu0 %v3247
    %5925 = vmatprep.subr.bf16.mxu0 %v3280
    %5926 = vmatpush1.bf16.msra.mxu0 %v3279
    %5927 = vmatprep.subr.bf16.mxu0 %v3312
    %5928 = vmatpush1.bf16.msra.mxu0 %v3311
    %5929 = vmatprep.subr.bf16.mxu0 %v3344
    %5930 = vmatpush1.bf16.msra.mxu0 %v3343
    %5931 = vmatprep.subr.bf16.mxu0 %v3376
    %5932 = vmatpush1.bf16.msra.mxu0 %v3375
    %5933 = vmatprep.subr.bf16.mxu0 %v3408
    %5934 = vmatpush1.bf16.msra.mxu0 %v3407
    %5935 = vmatprep.subr.bf16.mxu0 %v3440
    %5936 = vmatpush1.bf16.msra.mxu0 %v3439
    %5937 = vmatprep.subr.bf16.mxu0 %v3472
    %5938 = vmatpush1.bf16.msra.mxu0 %v3471
    %5939 = vmatprep.subr.bf16.mxu0 %v3504
    %5940 = vmatpush1.bf16.msra.mxu0 %v3503
    %5941 = vmatprep.subr.bf16.mxu0 %v3536
    %5942 = vmatpush1.bf16.msra.mxu0 %v3535
    %5943 = vmatprep.subr.bf16.mxu0 %v3568
    %5944 = vmatpush1.bf16.msra.mxu0 %v3567
    %5945 = vmatprep.subr.bf16.mxu0 %v3600
    %5946 = vmatpush1.bf16.msra.mxu0 %v3599
    %5947 = vmatprep.subr.bf16.mxu0 %v3632
    %5948 = vmatpush1.bf16.msra.mxu0 %v3631
    %5949 = vmatprep.subr.bf16.mxu0 %v3664
    %5950 = vmatpush1.bf16.msra.mxu0 %v3663
    %5951 = vmatprep.mubr.bf16.mxu0 %v844
    %5952 = vmatmul.mubr.bf16.gmra.mrb[0].mxu0 %v837
    %v5953 = vpop.f32.mrb[0].mxu0
    %v5954 = vadd.f32 0.0, %v5953
    %v5955 = vpop.f32.mrb[0].mxu0
    %v5956 = vadd.f32 0.0, %v5955
    %v5957 = vpop.f32.mrb[0].mxu0
    %v5958 = vpop.f32.mrb[0].mxu0
    %5959 = vdwg.mxu0
    %5960 = vmatprep.subr.bf16.mxu0 %v3696
    %5961 = vmatpush1.bf16.msra.mxu0 %v3695
    %5962 = vmatprep.subr.bf16.mxu0 %v3728
    %5963 = vmatpush1.bf16.msra.mxu0 %v3727
    %5964 = vmatprep.subr.bf16.mxu0 %v3760
    %5965 = vmatpush1.bf16.msra.mxu0 %v3759
    %5966 = vmatprep.subr.bf16.mxu0 %v3792
    %5967 = vmatpush1.bf16.msra.mxu0 %v3791
    %5968 = vmatprep.subr.bf16.mxu0 %v3824
    %5969 = vmatpush1.bf16.msra.mxu0 %v3823
    %5970 = vmatprep.subr.bf16.mxu0 %v3856
    %5971 = vmatpush1.bf16.msra.mxu0 %v3855
    %5972 = vmatprep.subr.bf16.mxu0 %v3888
    %5973 = vmatpush1.bf16.msra.mxu0 %v3887
    %5974 = vmatprep.subr.bf16.mxu0 %v3920
    %5975 = vmatpush1.bf16.msra.mxu0 %v3919
    %5976 = vmatprep.subr.bf16.mxu0 0
    %5977 = vmatpush1.bf16.msra.mxu0 0
    %5978 = vmatprep.subr.bf16.mxu0 0
    %5979 = vmatpush1.bf16.msra.mxu0 0
    %5980 = vmatprep.subr.bf16.mxu0 0
    %5981 = vmatpush1.bf16.msra.mxu0 0
    %5982 = vmatprep.subr.bf16.mxu0 0
    %5983 = vmatpush1.bf16.msra.mxu0 0
    %5984 = vmatprep.subr.bf16.mxu0 0
    %5985 = vmatpush1.bf16.msra.mxu0 0
    %5986 = vmatprep.subr.bf16.mxu0 0
    %5987 = vmatpush1.bf16.msra.mxu0 0
    %5988 = vmatprep.subr.bf16.mxu0 0
    %5989 = vmatpush1.bf16.msra.mxu0 0
    %5990 = vmatprep.subr.bf16.mxu0 0
    %5991 = vmatpush1.bf16.msra.mxu0 0
    %5992 = vmatprep.mubr.bf16.mxu0 0
    %5993 = vmatmul.mubr.bf16.gmra.mrb[0].mxu0 %v845
    %v5994 = vpop.f32.mrb[0].mxu0
    %v5995 = vadd.f32 %v5954, %v5994
    %v5996 = vpop.f32.mrb[0].mxu0
    %v5997 = vadd.f32 %v5956, %v5996
    %v5998 = vpop.f32.mrb[0].mxu0
    %v5999 = vpop.f32.mrb[0].mxu0
    %6000 = vdwg.mxu0
    %v6001 = vld [vmem:[#allocation7] sm:$0xff]
    %v6002 = vld [vmem:[#allocation7 + $0x8] sm:$0xff]
    %v6003 = vld [vmem:[#allocation7 + $0x10] sm:$0xff]
    %v6004 = vld [vmem:[#allocation7 + $0x18] sm:$0xff]
    %v6009 = vlaneseq
    %v6010 = vshrl.u32 %v6009, 7
    %v6011 = vsub.s32 0, %v6010
    %v6012 = vrot.slane %v6001, %v6011
    %v6013 = vlaneseq
    %v6014 = vshrl.u32 %v6013, 7
    %v6015 = vsub.s32 1, %v6014
    %v6016 = vrot.slane %v6001, %v6015
    %v6017 = vlaneseq
    %v6018 = vshrl.u32 %v6017, 7
    %v6019 = vsub.s32 2, %v6018
    %v6020 = vrot.slane %v6001, %v6019
    %v6021 = vlaneseq
    %v6022 = vshrl.u32 %v6021, 7
    %v6023 = vsub.s32 3, %v6022
    %v6024 = vrot.slane %v6001, %v6023
    %v6025 = vlaneseq
    %v6026 = vshrl.u32 %v6025, 7
    %v6027 = vsub.s32 4, %v6026
    %v6028 = vrot.slane %v6001, %v6027
    %v6029 = vlaneseq
    %v6030 = vshrl.u32 %v6029, 7
    %v6031 = vsub.s32 5, %v6030
    %v6032 = vrot.slane %v6001, %v6031
    %v6033 = vlaneseq
    %v6034 = vshrl.u32 %v6033, 7
    %v6035 = vsub.s32 6, %v6034
    %v6036 = vrot.slane %v6001, %v6035
    %v6037 = vlaneseq
    %v6038 = vshrl.u32 %v6037, 7
    %v6039 = vsub.s32 7, %v6038
    %v6040 = vrot.slane %v6001, %v6039
    %v6041 = vlaneseq
    %v6042 = vshrl.u32 %v6041, 7
    %v6043 = vsub.s32 0, %v6042
    %v6044 = vrot.slane %v6002, %v6043
    %v6045 = vlaneseq
    %v6046 = vshrl.u32 %v6045, 7
    %v6047 = vsub.s32 1, %v6046
    %v6048 = vrot.slane %v6002, %v6047
    %v6049 = vlaneseq
    %v6050 = vshrl.u32 %v6049, 7
    %v6051 = vsub.s32 2, %v6050
    %v6052 = vrot.slane %v6002, %v6051
    %v6053 = vlaneseq
    %v6054 = vshrl.u32 %v6053, 7
    %v6055 = vsub.s32 3, %v6054
    %v6056 = vrot.slane %v6002, %v6055
    %v6057 = vlaneseq
    %v6058 = vshrl.u32 %v6057, 7
    %v6059 = vsub.s32 4, %v6058
    %v6060 = vrot.slane %v6002, %v6059
    %v6061 = vlaneseq
    %v6062 = vshrl.u32 %v6061, 7
    %v6063 = vsub.s32 5, %v6062
    %v6064 = vrot.slane %v6002, %v6063
    %v6065 = vlaneseq
    %v6066 = vshrl.u32 %v6065, 7
    %v6067 = vsub.s32 6, %v6066
    %v6068 = vrot.slane %v6002, %v6067
    %v6069 = vlaneseq
    %v6070 = vshrl.u32 %v6069, 7
    %v6071 = vsub.s32 7, %v6070
    %v6072 = vrot.slane %v6002, %v6071
    %v6073 = vlaneseq
    %v6074 = vshrl.u32 %v6073, 7
    %v6075 = vsub.s32 0, %v6074
    %v6076 = vrot.slane %v6003, %v6075
    %v6077 = vlaneseq
    %v6078 = vshrl.u32 %v6077, 7
    %v6079 = vsub.s32 1, %v6078
    %v6080 = vrot.slane %v6003, %v6079
    %v6081 = vlaneseq
    %v6082 = vshrl.u32 %v6081, 7
    %v6083 = vsub.s32 2, %v6082
    %v6084 = vrot.slane %v6003, %v6083
    %v6085 = vlaneseq
    %v6086 = vshrl.u32 %v6085, 7
    %v6087 = vsub.s32 3, %v6086
    %v6088 = vrot.slane %v6003, %v6087
    %v6089 = vlaneseq
    %v6090 = vshrl.u32 %v6089, 7
    %v6091 = vsub.s32 4, %v6090
    %v6092 = vrot.slane %v6003, %v6091
    %v6093 = vlaneseq
    %v6094 = vshrl.u32 %v6093, 7
    %v6095 = vsub.s32 5, %v6094
    %v6096 = vrot.slane %v6003, %v6095
    %v6097 = vlaneseq
    %v6098 = vshrl.u32 %v6097, 7
    %v6099 = vsub.s32 6, %v6098
    %v6100 = vrot.slane %v6003, %v6099
    %v6101 = vlaneseq
    %v6102 = vshrl.u32 %v6101, 7
    %v6103 = vsub.s32 7, %v6102
    %v6104 = vrot.slane %v6003, %v6103
    %v6105 = vlaneseq
    %v6106 = vshrl.u32 %v6105, 7
    %v6107 = vsub.s32 0, %v6106
    %v6108 = vrot.slane %v6004, %v6107
    %v6109 = vlaneseq
    %v6110 = vshrl.u32 %v6109, 7
    %v6111 = vsub.s32 1, %v6110
    %v6112 = vrot.slane %v6004, %v6111
    %v6113 = vlaneseq
    %v6114 = vshrl.u32 %v6113, 7
    %v6115 = vsub.s32 2, %v6114
    %v6116 = vrot.slane %v6004, %v6115
    %v6117 = vlaneseq
    %v6118 = vshrl.u32 %v6117, 7
    %v6119 = vsub.s32 3, %v6118
    %v6120 = vrot.slane %v6004, %v6119
    %v6121 = vlaneseq
    %v6122 = vshrl.u32 %v6121, 7
    %v6123 = vsub.s32 4, %v6122
    %v6124 = vrot.slane %v6004, %v6123
    %v6125 = vlaneseq
    %v6126 = vshrl.u32 %v6125, 7
    %v6127 = vsub.s32 5, %v6126
    %v6128 = vrot.slane %v6004, %v6127
    %v6129 = vlaneseq
    %v6130 = vshrl.u32 %v6129, 7
    %v6131 = vsub.s32 6, %v6130
    %v6132 = vrot.slane %v6004, %v6131
    %v6133 = vlaneseq
    %v6134 = vshrl.u32 %v6133, 7
    %v6135 = vsub.s32 7, %v6134
    %v6136 = vrot.slane %v6004, %v6135
    %v6169 = vsub.f32 %v4765, %v6012
    %v6170 = vsub.f32 %v4767, %v6016
    %v6171 = vsub.f32 %v4847, %v6020
    %v6172 = vsub.f32 %v4849, %v6024
    %v6173 = vsub.f32 %v4929, %v6028
    %v6174 = vsub.f32 %v4931, %v6032
    %v6175 = vsub.f32 %v5011, %v6036
    %v6176 = vsub.f32 %v5013, %v6040
    %v6177 = vsub.f32 %v5093, %v6044
    %v6178 = vsub.f32 %v5095, %v6048
    %v6179 = vsub.f32 %v5175, %v6052
    %v6180 = vsub.f32 %v5177, %v6056
    %v6181 = vsub.f32 %v5257, %v6060
    %v6182 = vsub.f32 %v5259, %v6064
    %v6183 = vsub.f32 %v5339, %v6068
    %v6184 = vsub.f32 %v5341, %v6072
    %v6185 = vsub.f32 %v5421, %v6076
    %v6186 = vsub.f32 %v5423, %v6080
    %v6187 = vsub.f32 %v5503, %v6084
    %v6188 = vsub.f32 %v5505, %v6088
    %v6189 = vsub.f32 %v5585, %v6092
    %v6190 = vsub.f32 %v5587, %v6096
    %v6191 = vsub.f32 %v5667, %v6100
    %v6192 = vsub.f32 %v5669, %v6104
    %v6193 = vsub.f32 %v5749, %v6108
    %v6194 = vsub.f32 %v5751, %v6112
    %v6195 = vsub.f32 %v5831, %v6116
    %v6196 = vsub.f32 %v5833, %v6120
    %v6197 = vsub.f32 %v5913, %v6124
    %v6198 = vsub.f32 %v5915, %v6128
    %v6199 = vsub.f32 %v5995, %v6132
    %v6200 = vsub.f32 %v5997, %v6136
    %v6201 = vmul.f32 %v6169, %v6169
    %v6202 = vmul.f32 %v6170, %v6170
    %v6203 = vmul.f32 %v6171, %v6171
    %v6204 = vmul.f32 %v6172, %v6172
    %v6205 = vmul.f32 %v6173, %v6173
    %v6206 = vmul.f32 %v6174, %v6174
    %v6207 = vmul.f32 %v6175, %v6175
    %v6208 = vmul.f32 %v6176, %v6176
    %v6209 = vmul.f32 %v6177, %v6177
    %v6210 = vmul.f32 %v6178, %v6178
    %v6211 = vmul.f32 %v6179, %v6179
    %v6212 = vmul.f32 %v6180, %v6180
    %v6213 = vmul.f32 %v6181, %v6181
    %v6214 = vmul.f32 %v6182, %v6182
    %v6215 = vmul.f32 %v6183, %v6183
    %v6216 = vmul.f32 %v6184, %v6184
    %v6217 = vmul.f32 %v6185, %v6185
    %v6218 = vmul.f32 %v6186, %v6186
    %v6219 = vmul.f32 %v6187, %v6187
    %v6220 = vmul.f32 %v6188, %v6188
    %v6221 = vmul.f32 %v6189, %v6189
    %v6222 = vmul.f32 %v6190, %v6190
    %v6223 = vmul.f32 %v6191, %v6191
    %v6224 = vmul.f32 %v6192, %v6192
    %v6225 = vmul.f32 %v6193, %v6193
    %v6226 = vmul.f32 %v6194, %v6194
    %v6227 = vmul.f32 %v6195, %v6195
    %v6228 = vmul.f32 %v6196, %v6196
    %v6229 = vmul.f32 %v6197, %v6197
    %v6230 = vmul.f32 %v6198, %v6198
    %v6231 = vmul.f32 %v6199, %v6199
    %v6232 = vmul.f32 %v6200, %v6200
    %v6233 = vmul.f32 %v6201, -1.6
    %v6234 = vmul.f32 %v6202, -1.6
    %v6235 = vmul.f32 %v6203, -1.6
    %v6236 = vmul.f32 %v6204, -1.6
    %v6237 = vmul.f32 %v6205, -1.6
    %v6238 = vmul.f32 %v6206, -1.6
    %v6239 = vmul.f32 %v6207, -1.6
    %v6240 = vmul.f32 %v6208, -1.6
    %v6241 = vmul.f32 %v6209, -1.6
    %v6242 = vmul.f32 %v6210, -1.6
    %v6243 = vmul.f32 %v6211, -1.6
    %v6244 = vmul.f32 %v6212, -1.6
    %v6245 = vmul.f32 %v6213, -1.6
    %v6246 = vmul.f32 %v6214, -1.6
    %v6247 = vmul.f32 %v6215, -1.6
    %v6248 = vmul.f32 %v6216, -1.6
    %v6249 = vmul.f32 %v6217, -1.6
    %v6250 = vmul.f32 %v6218, -1.6
    %v6251 = vmul.f32 %v6219, -1.6
    %v6252 = vmul.f32 %v6220, -1.6
    %v6253 = vmul.f32 %v6221, -1.6
    %v6254 = vmul.f32 %v6222, -1.6
    %v6255 = vmul.f32 %v6223, -1.6
    %v6256 = vmul.f32 %v6224, -1.6
    %v6257 = vmul.f32 %v6225, -1.6
    %v6258 = vmul.f32 %v6226, -1.6
    %v6259 = vmul.f32 %v6227, -1.6
    %v6260 = vmul.f32 %v6228, -1.6
    %v6261 = vmul.f32 %v6229, -1.6
    %v6262 = vmul.f32 %v6230, -1.6
    %v6263 = vmul.f32 %v6231, -1.6
    %v6264 = vmul.f32 %v6232, -1.6
    %v6265 = vmul.f32 %v6233, 1.442695
    %v6266 = vpow.pop %v6265
    %v6267 = vmul.f32 %v6234, 1.442695
    %v6268 = vpow.pop %v6267
    %v6269 = vmul.f32 %v6235, 1.442695
    %v6270 = vpow.pop %v6269
    %v6271 = vmul.f32 %v6236, 1.442695
    %v6272 = vpow.pop %v6271
    %v6273 = vmul.f32 %v6237, 1.442695
    %v6274 = vpow.pop %v6273
    %v6275 = vmul.f32 %v6238, 1.442695
    %v6276 = vpow.pop %v6275
    %v6277 = vmul.f32 %v6239, 1.442695
    %v6278 = vpow.pop %v6277
    %v6279 = vmul.f32 %v6240, 1.442695
    %v6280 = vpow.pop %v6279
    %v6281 = vmul.f32 %v6241, 1.442695
    %v6282 = vpow.pop %v6281
    %v6283 = vmul.f32 %v6242, 1.442695
    %v6284 = vpow.pop %v6283
    %v6285 = vmul.f32 %v6243, 1.442695
    %v6286 = vpow.pop %v6285
    %v6287 = vmul.f32 %v6244, 1.442695
    %v6288 = vpow.pop %v6287
    %v6289 = vmul.f32 %v6245, 1.442695
    %v6290 = vpow.pop %v6289
    %v6291 = vmul.f32 %v6246, 1.442695
    %v6292 = vpow.pop %v6291
    %v6293 = vmul.f32 %v6247, 1.442695
    %v6294 = vpow.pop %v6293
    %v6295 = vmul.f32 %v6248, 1.442695
    %v6296 = vpow.pop %v6295
    %v6297 = vmul.f32 %v6249, 1.442695
    %v6298 = vpow.pop %v6297
    %v6299 = vmul.f32 %v6250, 1.442695
    %v6300 = vpow.pop %v6299
    %v6301 = vmul.f32 %v6251, 1.442695
    %v6302 = vpow.pop %v6301
    %v6303 = vmul.f32 %v6252, 1.442695
    %v6304 = vpow.pop %v6303
    %v6305 = vmul.f32 %v6253, 1.442695
    %v6306 = vpow.pop %v6305
    %v6307 = vmul.f32 %v6254, 1.442695
    %v6308 = vpow.pop %v6307
    %v6309 = vmul.f32 %v6255, 1.442695
    %v6310 = vpow.pop %v6309
    %v6311 = vmul.f32 %v6256, 1.442695
    %v6312 = vpow.pop %v6311
    %v6313 = vmul.f32 %v6257, 1.442695
    %v6314 = vpow.pop %v6313
    %v6315 = vmul.f32 %v6258, 1.442695
    %v6316 = vpow.pop %v6315
    %v6317 = vmul.f32 %v6259, 1.442695
    %v6318 = vpow.pop %v6317
    %v6319 = vmul.f32 %v6260, 1.442695
    %v6320 = vpow.pop %v6319
    %v6321 = vmul.f32 %v6261, 1.442695
    %v6322 = vpow.pop %v6321
    %v6323 = vmul.f32 %v6262, 1.442695
    %v6324 = vpow.pop %v6323
    %v6325 = vmul.f32 %v6263, 1.442695
    %v6326 = vpow.pop %v6325
    %v6327 = vmul.f32 %v6264, 1.442695
    %v6328 = vpow.pop %v6327
    %v6361 = vcombine.low %v6266, %v6268
    %v6362 = vcombine.low %v6270, %v6272
    %v6363 = vcombine.low %v6274, %v6276
    %v6364 = vcombine.low %v6278, %v6280
    %v6366 = vunpack.c.l.s4 1966171168
    %v6367 = vunpack.c.0.s8 %v6366
    %v6368 = vlaneseq
    %v6369 = vshrl.u32 %v6368, 7
    %v6370 = vsub.s32 %v6367, %v6369
    %v6371 = vrot.slane %v6361, %v6370
    %v6373 = vunpack.c.l.s4 1966171168
    %v6374 = vunpack.c.0.s8 %v6373
    %v6375 = vlaneseq
    %v6376 = vshrl.u32 %v6375, 7
    %v6377 = vsub.s32 %v6374, %v6376
    %v6378 = vrot.slane %v6362, %v6377
    %v6380 = vunpack.c.l.s4 1966171168
    %v6381 = vunpack.c.0.s8 %v6380
    %v6382 = vlaneseq
    %v6383 = vshrl.u32 %v6382, 7
    %v6384 = vsub.s32 %v6381, %v6383
    %v6385 = vrot.slane %v6363, %v6384
    %v6387 = vunpack.c.l.s4 1966171168
    %v6388 = vunpack.c.0.s8 %v6387
    %v6389 = vlaneseq
    %v6390 = vshrl.u32 %v6389, 7
    %v6391 = vsub.s32 %v6388, %v6390
    %v6392 = vrot.slane %v6364, %v6391
    %v6393 = vcombine.low %v6371, %v6378
    %v6394 = vcombine.low %v6385, %v6392
    %v6396 = vunpack.c.l.s4 1966171168
    %v6397 = vunpack.c.0.s8 %v6396
    %v6398 = vlaneseq
    %v6399 = vshrl.u32 %v6398, 7
    %v6400 = vsub.s32 %v6397, %v6399
    %v6401 = vrot.slane %v6393, %v6400
    %v6403 = vunpack.c.l.s4 1966171168
    %v6404 = vunpack.c.0.s8 %v6403
    %v6405 = vlaneseq
    %v6406 = vshrl.u32 %v6405, 7
    %v6407 = vsub.s32 %v6404, %v6406
    %v6408 = vrot.slane %v6394, %v6407
    %v6409 = vcombine.low %v6401, %v6408
    %v6410 = vcombine.low %v6282, %v6284
    %v6411 = vcombine.low %v6286, %v6288
    %v6412 = vcombine.low %v6290, %v6292
    %v6413 = vcombine.low %v6294, %v6296
    %v6415 = vunpack.c.l.s4 1966171168
    %v6416 = vunpack.c.0.s8 %v6415
    %v6417 = vlaneseq
    %v6418 = vshrl.u32 %v6417, 7
    %v6419 = vsub.s32 %v6416, %v6418
    %v6420 = vrot.slane %v6410, %v6419
    %v6422 = vunpack.c.l.s4 1966171168
    %v6423 = vunpack.c.0.s8 %v6422
    %v6424 = vlaneseq
    %v6425 = vshrl.u32 %v6424, 7
    %v6426 = vsub.s32 %v6423, %v6425
    %v6427 = vrot.slane %v6411, %v6426
    %v6429 = vunpack.c.l.s4 1966171168
    %v6430 = vunpack.c.0.s8 %v6429
    %v6431 = vlaneseq
    %v6432 = vshrl.u32 %v6431, 7
    %v6433 = vsub.s32 %v6430, %v6432
    %v6434 = vrot.slane %v6412, %v6433
    %v6436 = vunpack.c.l.s4 1966171168
    %v6437 = vunpack.c.0.s8 %v6436
    %v6438 = vlaneseq
    %v6439 = vshrl.u32 %v6438, 7
    %v6440 = vsub.s32 %v6437, %v6439
    %v6441 = vrot.slane %v6413, %v6440
    %v6442 = vcombine.low %v6420, %v6427
    %v6443 = vcombine.low %v6434, %v6441
    %v6445 = vunpack.c.l.s4 1966171168
    %v6446 = vunpack.c.0.s8 %v6445
    %v6447 = vlaneseq
    %v6448 = vshrl.u32 %v6447, 7
    %v6449 = vsub.s32 %v6446, %v6448
    %v6450 = vrot.slane %v6442, %v6449
    %v6452 = vunpack.c.l.s4 1966171168
    %v6453 = vunpack.c.0.s8 %v6452
    %v6454 = vlaneseq
    %v6455 = vshrl.u32 %v6454, 7
    %v6456 = vsub.s32 %v6453, %v6455
    %v6457 = vrot.slane %v6443, %v6456
    %v6458 = vcombine.low %v6450, %v6457
    %v6459 = vcombine.low %v6298, %v6300
    %v6460 = vcombine.low %v6302, %v6304
    %v6461 = vcombine.low %v6306, %v6308
    %v6462 = vcombine.low %v6310, %v6312
    %v6464 = vunpack.c.l.s4 1966171168
    %v6465 = vunpack.c.0.s8 %v6464
    %v6466 = vlaneseq
    %v6467 = vshrl.u32 %v6466, 7
    %v6468 = vsub.s32 %v6465, %v6467
    %v6469 = vrot.slane %v6459, %v6468
    %v6471 = vunpack.c.l.s4 1966171168
    %v6472 = vunpack.c.0.s8 %v6471
    %v6473 = vlaneseq
    %v6474 = vshrl.u32 %v6473, 7
    %v6475 = vsub.s32 %v6472, %v6474
    %v6476 = vrot.slane %v6460, %v6475
    %v6478 = vunpack.c.l.s4 1966171168
    %v6479 = vunpack.c.0.s8 %v6478
    %v6480 = vlaneseq
    %v6481 = vshrl.u32 %v6480, 7
    %v6482 = vsub.s32 %v6479, %v6481
    %v6483 = vrot.slane %v6461, %v6482
    %v6485 = vunpack.c.l.s4 1966171168
    %v6486 = vunpack.c.0.s8 %v6485
    %v6487 = vlaneseq
    %v6488 = vshrl.u32 %v6487, 7
    %v6489 = vsub.s32 %v6486, %v6488
    %v6490 = vrot.slane %v6462, %v6489
    %v6491 = vcombine.low %v6469, %v6476
    %v6492 = vcombine.low %v6483, %v6490
    %v6494 = vunpack.c.l.s4 1966171168
    %v6495 = vunpack.c.0.s8 %v6494
    %v6496 = vlaneseq
    %v6497 = vshrl.u32 %v6496, 7
    %v6498 = vsub.s32 %v6495, %v6497
    %v6499 = vrot.slane %v6491, %v6498
    %v6501 = vunpack.c.l.s4 1966171168
    %v6502 = vunpack.c.0.s8 %v6501
    %v6503 = vlaneseq
    %v6504 = vshrl.u32 %v6503, 7
    %v6505 = vsub.s32 %v6502, %v6504
    %v6506 = vrot.slane %v6492, %v6505
    %v6507 = vcombine.low %v6499, %v6506
    %v6508 = vcombine.low %v6314, %v6316
    %v6509 = vcombine.low %v6318, %v6320
    %v6510 = vcombine.low %v6322, %v6324
    %v6511 = vcombine.low %v6326, %v6328
    %v6513 = vunpack.c.l.s4 1966171168
    %v6514 = vunpack.c.0.s8 %v6513
    %v6515 = vlaneseq
    %v6516 = vshrl.u32 %v6515, 7
    %v6517 = vsub.s32 %v6514, %v6516
    %v6518 = vrot.slane %v6508, %v6517
    %v6520 = vunpack.c.l.s4 1966171168
    %v6521 = vunpack.c.0.s8 %v6520
    %v6522 = vlaneseq
    %v6523 = vshrl.u32 %v6522, 7
    %v6524 = vsub.s32 %v6521, %v6523
    %v6525 = vrot.slane %v6509, %v6524
    %v6527 = vunpack.c.l.s4 1966171168
    %v6528 = vunpack.c.0.s8 %v6527
    %v6529 = vlaneseq
    %v6530 = vshrl.u32 %v6529, 7
    %v6531 = vsub.s32 %v6528, %v6530
    %v6532 = vrot.slane %v6510, %v6531
    %v6534 = vunpack.c.l.s4 1966171168
    %v6535 = vunpack.c.0.s8 %v6534
    %v6536 = vlaneseq
    %v6537 = vshrl.u32 %v6536, 7
    %v6538 = vsub.s32 %v6535, %v6537
    %v6539 = vrot.slane %v6511, %v6538
    %v6540 = vcombine.low %v6518, %v6525
    %v6541 = vcombine.low %v6532, %v6539
    %v6543 = vunpack.c.l.s4 1966171168
    %v6544 = vunpack.c.0.s8 %v6543
    %v6545 = vlaneseq
    %v6546 = vshrl.u32 %v6545, 7
    %v6547 = vsub.s32 %v6544, %v6546
    %v6548 = vrot.slane %v6540, %v6547
    %v6550 = vunpack.c.l.s4 1966171168
    %v6551 = vunpack.c.0.s8 %v6550
    %v6552 = vlaneseq
    %v6553 = vshrl.u32 %v6552, 7
    %v6554 = vsub.s32 %v6551, %v6553
    %v6555 = vrot.slane %v6541, %v6554
    %v6556 = vcombine.low %v6548, %v6555
    %6561 = vst [vmem:[#allocation8] sm:$0xff] %v6409
    %6562 = vst [vmem:[#allocation8 + $0x8] sm:$0xff] %v6458
    %6563 = vst [vmem:[#allocation8 + $0x10] sm:$0xff] %v6507
    %6564 = vst [vmem:[#allocation8 + $0x18] sm:$0xff] %v6556
    // Predicated region
    $region26: #{tpu_custom_call.1} parent=1 // pred_check
      _
    $region27: #{tpu_custom_call.1} parent=1 // pred_check_branch
      %6566 = sbr.rel (0) target = $region29
    $region28: #{tpu_custom_call.1} parent=1 // pred_region
      %s6568 = ssub.s32 512, 512
      %6569 = vsyncadd [#allocation4], %s6568
      %s6571 = sshll.u32 [#allocation8], 4
      %s6572 = int_to_ptr.vmem [resolvable:$true] %s6571
      %6574 = dma.vmem_to_hbm [thread:$0]  %s6572, 512, %s3, [#allocation4]
    $region29: #{tpu_custom_call.1} parent=1 // pred_fallthru
      _
    // Predicated region
    $region30: #{tpu_custom_call.1} parent=1 // pred_check
      _
    $region31: #{tpu_custom_call.1} parent=1 // pred_check_branch
      %6576 = sbr.rel (0) target = $region33
    $region32: #{tpu_custom_call.1} parent=1 // pred_region
      %6577 = dma.done [#allocation4], 512
    $region33: #{tpu_custom_call.1} parent=1 // pred_fallthru
      _
    %6578 = vsyncpa [#allocation3], 1
    %6579 = vsyncpa [#allocation6], 1
    %6580 = vsyncpa [#allocation4], 1

</llo_original>
